<compile_context>
chip_gen: v5e
topology: v5e:2x2
jax: 0.10.0
libtpu: 0.0.40
codegen_flags: <defaults>
</compile_context>

<pallas_src>
import functools

import numpy as np
import jax
import jax.numpy as jnp
from jax import lax
from jax.experimental import pallas as pl
from jax.experimental.pallas import tpu as pltpu


_SUBLANE = 8  # f32 sublane tile


def _round_up(n, m):
    return ((n + m - 1) // m) * m


# ----------------------------- Pallas kernel -------------------------------

def _convlstm_layer_kernel(x_ref, w_ref, b_ref, m_ref,
                           h_seq_ref, c_ref,
                           h_prev_ref, cols_ref,
                           *, H, W, K, Cinp, Chp, Ch, pad):
    """One (batch sample, timestep) of one ConvLSTM layer.

    grid = (B, T); axis 0 = batch ("parallel"), axis 1 = time ("arbitrary").

    x_ref      : (Cinp, H*W)   x_t, channels-in-sublanes (zero-padded to Cinp)
    w_ref      : (4*Ch, Kdim)  packed gate weights, rows [i|f|o|c], columns
                               [x taps | h taps], tap-major / channel-minor
    b_ref      : (4*Ch, 1)     fused gate bias (input-conv biases only)
    m_ref      : (K*K, H*W)    0/1 border masks per conv tap
    h_seq_ref  : (Ch, H*W)     h_t output block (block (b, t)), lane-dense
    c_ref      : (Ch, H*W)     cell state; block (b) -> VMEM-resident across t
    h_prev_ref : (Chp, H*W)    scratch: h_{t-1} in matmul dtype
    cols_ref   : (Kdim, H*W)   scratch: fused im2col LHS for the gate matmul
    """
    t = pl.program_id(1)
    HW = H * W
    mm_dtype = cols_ref.dtype

    @pl.when(t == 0)
    def _init():
        h_prev_ref[...] = jnp.zeros(h_prev_ref.shape, h_prev_ref.dtype)
        c_ref[...] = jnp.zeros(c_ref.shape, c_ref.dtype)

    masks = m_ref[...]            # (K*K, HW)
    x_t = x_ref[...]              # (Cinp, HW)
    h_p = h_prev_ref[...]         # (Chp, HW)

    def lane_shift(v, s):
        # result[:, p] = v[:, (p + s) mod HW]   (s is a static Python int)
        s = s % HW
        if s == 0:
            return v
        return jnp.concatenate([v[:, s:], v[:, :s]], axis=1)

    # ---- build the fused im2col LHS: K*K taps of x_t and h_{t-1} ----------
    h_base = K * K * Cinp
    for ky in range(K):
        for kx in range(K):
            tap = ky * K + kx
            s = (ky - pad) * W + (kx - pad)
            m = masks[tap:tap + 1, :]                                  # (1, HW)
            cols_ref[tap * Cinp:(tap + 1) * Cinp, :] = lane_shift(x_t, s) * m
            cols_ref[h_base + tap * Chp:h_base + (tap + 1) * Chp, :] = (
                lane_shift(h_p, s) * m)

    # ---- single fused-gate matmul (f32 accumulation) + fused bias add -----
    gates = jnp.dot(w_ref[...], cols_ref[...],
                    preferred_element_type=jnp.float32) + b_ref[...]

    # ---- gate elementwise math in f32, lane-dense (H*W lanes) -------------
    # (peephole terms c*Wci / c*Wcf / cc*Wco are exactly zero in the reference)
    sig = jax.nn.sigmoid(gates[:3 * Ch, :])      # [i | f | o]
    i_g = sig[0 * Ch:1 * Ch, :]
    f_g = sig[1 * Ch:2 * Ch, :]
    o_g = sig[2 * Ch:3 * Ch, :]
    g_c = jnp.tanh(gates[3 * Ch:, :])            # candidate
    c_new = f_g * c_ref[...] + i_g * g_c
    h_new = o_g * jnp.tanh(c_new)

    c_ref[...] = c_new
    h_seq_ref[...] = h_new.astype(h_seq_ref.dtype)
    # recurrent handoff to step t+1 (matmul dtype; padded rows stay zero)
    h_new_mm = h_new.astype(mm_dtype)
    if Chp == Ch:
        h_prev_ref[...] = h_new_mm
    else:
        h_prev_ref[0:Ch, :] = h_new_mm


# ------------------------------- JAX glue ----------------------------------

def _convlstm_layer(x_cols, w_full, b_full, masks, *, H, W, K, Ch,
                    mm_dtype, vmem_limit):
    """Run one ConvLSTM layer over the full sequence with a single pallas_call.

    x_cols: (B, T, Cin_p, H*W) channels-in-sublanes sequence (mm_dtype).
    Returns (h_seq (B, T, Ch, H*W) in mm_dtype, c_last (B, Ch, H*W) f32).
    """
    B, T, Cinp, HW = x_cols.shape
    Chp = _round_up(Ch, _SUBLANE)
    KK = K * K
    Kdim = KK * (Cinp + Chp)
    pad = (K - 1) // 2
    assert w_full.shape == (4 * Ch, Kdim)

    kernel = functools.partial(_convlstm_layer_kernel, H=H, W=W, K=K,
                               Cinp=Cinp, Chp=Chp, Ch=Ch, pad=pad)
    h_seq, c_last = pl.pallas_call(
        kernel,
        out_shape=(jax.ShapeDtypeStruct((B, T, Ch, HW), mm_dtype),
                   jax.ShapeDtypeStruct((B, Ch, HW), jnp.float32)),
        grid_spec=pltpu.PrefetchScalarGridSpec(
            num_scalar_prefetch=0,
            grid=(B, T),
            in_specs=[
                # per-(b, t) frame: streamed, auto double-buffered
                pl.BlockSpec((None, None, Cinp, HW), lambda b, t: (b, t, 0, 0)),
                # packed weights / bias / tap masks: constant -> VMEM resident
                pl.BlockSpec((4 * Ch, Kdim), lambda b, t: (0, 0)),
                pl.BlockSpec((4 * Ch, 1), lambda b, t: (0, 0)),
                pl.BlockSpec((KK, HW), lambda b, t: (0, 0)),
            ],
            out_specs=(
                # h_t: written every step (pipelined, lane-dense writeback)
                pl.BlockSpec((None, None, Ch, HW), lambda b, t: (b, t, 0, 0)),
                # c: same block across t -> VMEM-resident accumulator per b
                pl.BlockSpec((None, Ch, HW), lambda b, t: (b, 0, 0)),
            ),
            scratch_shapes=[
                pltpu.VMEM((Chp, HW), mm_dtype),     # h_{t-1}
                pltpu.VMEM((Kdim, HW), mm_dtype),    # fused im2col LHS
            ],
        ),
        compiler_params=pltpu.CompilerParams(
            dimension_semantics=("parallel", "arbitrary"),
            vmem_limit_bytes=vmem_limit,
        ),
    )(x_cols, w_full, b_full, masks)
    return h_seq, c_last


def init_params(key, input_channels, hidden_channels, k):
    """Deterministic parameter init, PyTorch Conv2d weight layout (O, I, K, K)."""
    in_chs = [input_channels] + list(hidden_channels)
    params = []
    for i, ch in enumerate(hidden_channels):
        cin = in_chs[i]
        keys = jax.random.split(jax.random.fold_in(key, i), 12)
        layer = {}
        for j, name in enumerate(['Wxi', 'Wxf', 'Wxc', 'Wxo']):
            layer[name] = 0.1 * jax.random.normal(keys[j], (ch, cin, k, k), jnp.float32)
            layer['b' + name[1:]] = 0.1 * jax.random.normal(keys[j + 4], (ch,), jnp.float32)
        for j, name in enumerate(['Whi', 'Whf', 'Whc', 'Who']):
            layer[name] = 0.1 * jax.random.normal(keys[j + 8], (ch, ch, k, k), jnp.float32)
        params.append(layer)
    return params


def _pack_gate_weights(layer, k, cin, ch, mm_dtype):
    """PyTorch (O, I, K, K) conv weights -> one packed fused-gate matmul weight
    of shape (4*Ch, K*K*(Cin_p + Ch_p)) + a (4*Ch, 1) bias.

    Gate row order: [i | f | o | c].  Column order matches the kernel's im2col
    rows: x taps first, then h taps, each tap-major / channel-minor, channels
    zero-padded to a sublane multiple.
    """
    kk = k * k
    cinp = _round_up(cin, _SUBLANE)
    chp = _round_up(ch, _SUBLANE)

    def taps(w, cp):   # (O, I, K, K) -> (O, K*K*cp), col = (ky*K + kx)*cp + i
        o, i = w.shape[0], w.shape[1]
        wt = jnp.transpose(w, (0, 2, 3, 1))                     # (O, K, K, I)
        wt = jnp.pad(wt, ((0, 0), (0, 0), (0, 0), (0, cp - i)))
        return wt.reshape(o, kk * cp)

    wx = jnp.concatenate([taps(layer[n], cinp)
                          for n in ('Wxi', 'Wxf', 'Wxo', 'Wxc')], axis=0)
    wh = jnp.concatenate([taps(layer[n], chp)
                          for n in ('Whi', 'Whf', 'Who', 'Whc')], axis=0)
    w_full = jnp.concatenate([wx, wh], axis=1).astype(mm_dtype)
    b_full = jnp.concatenate([layer['bxi'], layer['bxf'],
                              layer['bxo'], layer['bxc']])[:, None].astype(jnp.float32)
    return w_full, b_full


def _make_tap_masks(h, w, k, dtype):
    """(K*K, H*W) 0/1 masks: mask[tap, y*W+x] = 1 iff the conv tap (ky, kx)
    reads a real pixel at output position (y, x) (i.e. not 'same' zero pad)."""
    pad = (k - 1) // 2
    ys = np.arange(h)
    xs = np.arange(w)
    m = np.zeros((k * k, h * w), np.float32)
    for ky in range(k):
        for kx in range(k):
            vy = (ys + ky - pad >= 0) & (ys + ky - pad < h)
            vx = (xs + kx - pad >= 0) & (xs + kx - pad < w)
            m[ky * k + kx] = np.outer(vy, vx).reshape(-1).astype(np.float32)
    return jnp.asarray(m, dtype)


def convlstm_forward(params, inputs, hidden_channels, kernel_size,
                     batch_first=False, matmul_dtype=jnp.bfloat16,
                     vmem_limit=32 * 1024 * 1024):
    """Pallas-backed ConvLSTM.forward.

    inputs: (t, b, c, h, w) if batch_first=False (PyTorch default), else
            (b, t, c, h, w).  Returns (outputs[b, t, c_hid, h, w],
            (h_last, c_last)) in NCHW, matching the reference module.
    """
    if not batch_first:
        inputs = jnp.transpose(inputs, (1, 0, 2, 3, 4))       # -> (b, t, c, h, w)
    B, T, Cin, H, W = inputs.shape
    HW = H * W

    # Layout change hoisted out of the time loop: channels-in-sublanes /
    # positions-in-lanes, channel-padded to a sublane multiple, streamed in
    # matmul dtype (bf16 by default -> half the HBM traffic for x).
    x = inputs.reshape(B, T, Cin, HW)
    cinp = _round_up(Cin, _SUBLANE)
    if cinp != Cin:
        x = jnp.pad(x, ((0, 0), (0, 0), (0, cinp - Cin), (0, 0)))
    x = x.astype(matmul_dtype)

    masks = _make_tap_masks(H, W, kernel_size, matmul_dtype)

    c_last = None
    cin = Cin
    n_layers = len(hidden_channels)
    for i, ch in enumerate(hidden_channels):
        w_full, b_full = _pack_gate_weights(params[i], kernel_size, cin, ch,
                                            matmul_dtype)
        x, c_last = _convlstm_layer(x, w_full, b_full, masks, H=H, W=W,
                                    K=kernel_size, Ch=ch, mm_dtype=matmul_dtype,
                                    vmem_limit=vmem_limit)
        chp = _round_up(ch, _SUBLANE)
        if i + 1 < n_layers and chp != ch:
            # pad hidden channels to a sublane multiple for the next layer
            x = jnp.pad(x, ((0, 0), (0, 0), (0, chp - ch), (0, 0)))
        cin = ch

    ch_last = hidden_channels[-1]
    # last layer's h_seq is (B, T, Ch, H*W): already NCHW up to a pure reshape
    outputs = x.astype(jnp.float32).reshape(B, T, ch_last, H, W)
    h_last = outputs[:, -1]
    c_last = c_last.reshape(B, ch_last, H, W)                  # already NCHW
    return outputs, (h_last, c_last)


# --------------------------- pure-JAX reference ----------------------------

def _conv2d_nchw(x, w, b, pad):
    out = lax.conv_general_dilated(
        x, w, window_strides=(1, 1), padding=[(pad, pad), (pad, pad)],
        dimension_numbers=('NCHW', 'OIHW', 'NCHW'),
        precision=lax.Precision.HIGHEST)
    if b is not None:
        out = out + b[None, :, None, None]
    return out


def convlstm_reference(params, inputs, hidden_channels, k, batch_first=False):
    if not batch_first:
        inputs = jnp.transpose(inputs, (1, 0, 2, 3, 4))
    B, T, _, H, W = inputs.shape
    pad = (k - 1) // 2
    state = [(jnp.zeros((B, ch, H, W), jnp.float32),
              jnp.zeros((B, ch, H, W), jnp.float32)) for ch in hidden_channels]
    outputs = []
    for t in range(T):
        x = inputs[:, t]
        for i, p in enumerate(params):
            h, c = state[i]
            ci = jax.nn.sigmoid(_conv2d_nchw(x, p['Wxi'], p['bxi'], pad)
                                + _conv2d_nchw(h, p['Whi'], None, pad))
            cf = jax.nn.sigmoid(_conv2d_nchw(x, p['Wxf'], p['bxf'], pad)
                                + _conv2d_nchw(h, p['Whf'], None, pad))
            cc = cf * c + ci * jnp.tanh(_conv2d_nchw(x, p['Wxc'], p['bxc'], pad)
                                        + _conv2d_nchw(h, p['Whc'], None, pad))
            co = jax.nn.sigmoid(_conv2d_nchw(x, p['Wxo'], p['bxo'], pad)
                                + _conv2d_nchw(h, p['Who'], None, pad))
            x = co * jnp.tanh(cc)
            state[i] = (x, cc)
        outputs.append(x)
    return jnp.stack(outputs, axis=1), state[-1]


# --------------------------------- main -------------------------------------

if __name__ == "__main__":
    key = jax.random.PRNGKey(0)
    input_channels = 4
    hidden_channels = [8, 16]
    kernel_size = 3
    T, B, H, W = 8, 2, 16, 16

    params = init_params(key, input_channels, hidden_channels, kernel_size)
    # batch_first=False -> (t, b, c, h, w), matching the PyTorch default.
    x = jax.random.normal(jax.random.fold_in(key, 123),
                          (T, B, input_channels, H, W), jnp.float32)

    ref_out, (ref_h, ref_c) = convlstm_reference(params, x, hidden_channels,
                                                 kernel_size, batch_first=False)

    # Exact-semantics check: f32 everywhere in the kernel.
    fwd_f32 = jax.jit(functools.partial(
        convlstm_forward, hidden_channels=hidden_channels,
        kernel_size=kernel_size, batch_first=False, matmul_dtype=jnp.float32))
    out32, (h32, c32) = fwd_f32(params, x)
    jax.block_until_ready((out32, h32, c32))
    assert out32.shape == (B, T, hidden_channels[-1], H, W)
    np.testing.assert_allclose(np.asarray(out32), np.asarray(ref_out),
                               atol=1e-3, rtol=1e-3)
    np.testing.assert_allclose(np.asarray(h32), np.asarray(ref_h),
                               atol=1e-3, rtol=1e-3)
    np.testing.assert_allclose(np.asarray(c32), np.asarray(ref_c),
                               atol=1e-3, rtol=1e-3)

    # Default optimized path: bf16 streamed x / h / weights, f32 accumulation,
    # f32 gate math and cell state.
    fwd_bf16 = jax.jit(functools.partial(
        convlstm_forward, hidden_channels=hidden_channels,
        kernel_size=kernel_size, batch_first=False))
    out, (h_last, c_last) = fwd_bf16(params, x)
    jax.block_until_ready((out, h_last, c_last))
    assert out.shape == (B, T, hidden_channels[-1], H, W)
    # Loose sanity check for the bf16 path (the f32 path above is tight).
    np.testing.assert_allclose(np.asarray(out), np.asarray(ref_out),
                               atol=1.5e-1, rtol=1.5e-1)
    np.testing.assert_allclose(np.asarray(c_last), np.asarray(ref_c),
                               atol=1.5e-1, rtol=1.5e-1)

    print("KERNEL_OK")
</pallas_src>

<mosaic_0001>
module attributes {stable_mosaic.version = 11 : i64} {
  func.func @_convlstm_layer_kernel(%arg0: i32, %arg1: i32, %arg2: memref<1x1x8x256xf32, #tpu.memory_space<vmem>>, %arg3: memref<32x144xf32, #tpu.memory_space<vmem>>, %arg4: memref<32x1xf32, #tpu.memory_space<vmem>>, %arg5: memref<9x256xf32, #tpu.memory_space<vmem>>, %arg6: memref<1x1x8x256xf32, #tpu.memory_space<vmem>>, %arg7: memref<1x8x256xf32, #tpu.memory_space<vmem>>, %arg8: memref<8x256xf32, #tpu.memory_space<vmem>>, %arg9: memref<144x256xf32, #tpu.memory_space<vmem>>) attributes {dimension_semantics = [#tpu.dimension_semantics<parallel>, #tpu.dimension_semantics<arbitrary>], iteration_bounds = array<i64: 2, 8>, scalar_prefetch = 0 : i64, scratch_operands = 2 : i64, tpu.core_type = #tpu.core_type<tc>, window_params = [{transform_indices = @transform_0, window_bounds = array<i64: 1, 1, 8, 256>}, {pipeline_mode = #tpu.pipeline_mode<synchronous>, transform_indices = @transform_1, window_bounds = array<i64: 32, 144>}, {pipeline_mode = #tpu.pipeline_mode<synchronous>, transform_indices = @transform_2, window_bounds = array<i64: 32, 1>}, {pipeline_mode = #tpu.pipeline_mode<synchronous>, transform_indices = @transform_3, window_bounds = array<i64: 9, 256>}, {transform_indices = @transform_4, window_bounds = array<i64: 1, 1, 8, 256>}, {transform_indices = @transform_5, window_bounds = array<i64: 1, 8, 256>}]} {
    %c0_i32 = arith.constant 0 : i32
    %0 = arith.cmpi eq, %arg1, %c0_i32 : i32
    %1 = arith.extui %0 : i1 to i32
    %c0_i32_0 = arith.constant 0 : i32
    %2 = arith.cmpi ne, %1, %c0_i32_0 : i32
    scf.if %2 {
      %cst_46 = arith.constant 0.000000e+00 : f32
      %149 = vector.broadcast %cst_46 : f32 to vector<8x256xf32>
      %c0_47 = arith.constant 0 : index
      %c0_48 = arith.constant 0 : index
      %150 = vector.load %arg8[%c0_47, %c0_48] : memref<8x256xf32, #tpu.memory_space<vmem>>, vector<8x256xf32>
      tpu.vector_store %arg8[%c0_47, %c0_48], %149 {strides = array<i32>} : memref<8x256xf32, #tpu.memory_space<vmem>>, vector<8x256xf32>,
      %cst_49 = arith.constant 0.000000e+00 : f32
      %151 = vector.broadcast %cst_49 : f32 to vector<8x256xf32>
      %c0_50 = arith.constant 0 : index
      %c0_51 = arith.constant 0 : index
      %c0_52 = arith.constant 0 : index
      %152 = vector.load %arg7[%c0_50, %c0_51, %c0_52] : memref<1x8x256xf32, #tpu.memory_space<vmem>>, vector<1x8x256xf32>
      %153 = vector.shape_cast %152 : vector<1x8x256xf32> to vector<8x256xf32>
      %154 = vector.shape_cast %151 : vector<8x256xf32> to vector<1x8x256xf32>
      tpu.vector_store %arg7[%c0_50, %c0_51, %c0_52], %154 {strides = array<i32>} : memref<1x8x256xf32, #tpu.memory_space<vmem>>, vector<1x8x256xf32>,
    } else {
    }
    %c0 = arith.constant 0 : index
    %c0_1 = arith.constant 0 : index
    %3 = vector.load %arg5[%c0, %c0_1] : memref<9x256xf32, #tpu.memory_space<vmem>>, vector<9x256xf32>
    %c0_2 = arith.constant 0 : index
    %c0_3 = arith.constant 0 : index
    %c0_4 = arith.constant 0 : index
    %c0_5 = arith.constant 0 : index
    %4 = vector.load %arg2[%c0_2, %c0_3, %c0_4, %c0_5] : memref<1x1x8x256xf32, #tpu.memory_space<vmem>>, vector<1x1x8x256xf32>
    %5 = vector.shape_cast %4 : vector<1x1x8x256xf32> to vector<8x256xf32>
    %c0_6 = arith.constant 0 : index
    %c0_7 = arith.constant 0 : index
    %6 = vector.load %arg8[%c0_6, %c0_7] : memref<8x256xf32, #tpu.memory_space<vmem>>, vector<8x256xf32>
    %7 = vector.extract_strided_slice %3 {offsets = [0, 0], sizes = [1, 256], strides = [1, 1]} : vector<9x256xf32> to vector<1x256xf32>
    %8 = vector.extract_strided_slice %5 {offsets = [0, 239], sizes = [8, 17], strides = [1, 1]} : vector<8x256xf32> to vector<8x17xf32>
    %9 = vector.extract_strided_slice %5 {offsets = [0, 0], sizes = [8, 239], strides = [1, 1]} : vector<8x256xf32> to vector<8x239xf32>
    %10 = tpu.concatenate %8, %9 in 1 : vector<8x17xf32>, vector<8x239xf32> -> vector<8x256xf32>
    %11 = vector.broadcast %7 : vector<1x256xf32> to vector<8x256xf32>
    %12 = arith.mulf %10, %11 : vector<8x256xf32>
    %c0_8 = arith.constant 0 : index
    %c0_9 = arith.constant 0 : index
    %13 = vector.load %arg9[%c0_8, %c0_9] : memref<144x256xf32, #tpu.memory_space<vmem>>, vector<8x256xf32>
    tpu.vector_store %arg9[%c0_8, %c0_9], %12 {strides = array<i32>} : memref<144x256xf32, #tpu.memory_space<vmem>>, vector<8x256xf32>,
    %14 = vector.extract_strided_slice %6 {offsets = [0, 239], sizes = [8, 17], strides = [1, 1]} : vector<8x256xf32> to vector<8x17xf32>
    %15 = vector.extract_strided_slice %6 {offsets = [0, 0], sizes = [8, 239], strides = [1, 1]} : vector<8x256xf32> to vector<8x239xf32>
    %16 = tpu.concatenate %14, %15 in 1 : vector<8x17xf32>, vector<8x239xf32> -> vector<8x256xf32>
    %17 = vector.broadcast %7 : vector<1x256xf32> to vector<8x256xf32>
    %18 = arith.mulf %16, %17 : vector<8x256xf32>
    %c72 = arith.constant 72 : index
    %c0_10 = arith.constant 0 : index
    %19 = vector.load %arg9[%c72, %c0_10] : memref<144x256xf32, #tpu.memory_space<vmem>>, vector<8x256xf32>
    tpu.vector_store %arg9[%c72, %c0_10], %18 {strides = array<i32>} : memref<144x256xf32, #tpu.memory_space<vmem>>, vector<8x256xf32>,
    %20 = vector.extract_strided_slice %3 {offsets = [1, 0], sizes = [1, 256], strides = [1, 1]} : vector<9x256xf32> to vector<1x256xf32>
    %21 = vector.extract_strided_slice %5 {offsets = [0, 240], sizes = [8, 16], strides = [1, 1]} : vector<8x256xf32> to vector<8x16xf32>
    %22 = vector.extract_strided_slice %5 {offsets = [0, 0], sizes = [8, 240], strides = [1, 1]} : vector<8x256xf32> to vector<8x240xf32>
    %23 = tpu.concatenate %21, %22 in 1 : vector<8x16xf32>, vector<8x240xf32> -> vector<8x256xf32>
    %24 = vector.broadcast %20 : vector<1x256xf32> to vector<8x256xf32>
    %25 = arith.mulf %23, %24 : vector<8x256xf32>
    %c8 = arith.constant 8 : index
    %c0_11 = arith.constant 0 : index
    %26 = vector.load %arg9[%c8, %c0_11] : memref<144x256xf32, #tpu.memory_space<vmem>>, vector<8x256xf32>
    tpu.vector_store %arg9[%c8, %c0_11], %25 {strides = array<i32>} : memref<144x256xf32, #tpu.memory_space<vmem>>, vector<8x256xf32>,
    %27 = vector.extract_strided_slice %6 {offsets = [0, 240], sizes = [8, 16], strides = [1, 1]} : vector<8x256xf32> to vector<8x16xf32>
    %28 = vector.extract_strided_slice %6 {offsets = [0, 0], sizes = [8, 240], strides = [1, 1]} : vector<8x256xf32> to vector<8x240xf32>
    %29 = tpu.concatenate %27, %28 in 1 : vector<8x16xf32>, vector<8x240xf32> -> vector<8x256xf32>
    %30 = vector.broadcast %20 : vector<1x256xf32> to vector<8x256xf32>
    %31 = arith.mulf %29, %30 : vector<8x256xf32>
    %c80 = arith.constant 80 : index
    %c0_12 = arith.constant 0 : index
    %32 = vector.load %arg9[%c80, %c0_12] : memref<144x256xf32, #tpu.memory_space<vmem>>, vector<8x256xf32>
    tpu.vector_store %arg9[%c80, %c0_12], %31 {strides = array<i32>} : memref<144x256xf32, #tpu.memory_space<vmem>>, vector<8x256xf32>,
    %33 = vector.extract_strided_slice %3 {offsets = [2, 0], sizes = [1, 256], strides = [1, 1]} : vector<9x256xf32> to vector<1x256xf32>
    %34 = vector.extract_strided_slice %5 {offsets = [0, 241], sizes = [8, 15], strides = [1, 1]} : vector<8x256xf32> to vector<8x15xf32>
    %35 = vector.extract_strided_slice %5 {offsets = [0, 0], sizes = [8, 241], strides = [1, 1]} : vector<8x256xf32> to vector<8x241xf32>
    %36 = tpu.concatenate %34, %35 in 1 : vector<8x15xf32>, vector<8x241xf32> -> vector<8x256xf32>
    %37 = vector.broadcast %33 : vector<1x256xf32> to vector<8x256xf32>
    %38 = arith.mulf %36, %37 : vector<8x256xf32>
    %c16 = arith.constant 16 : index
    %c0_13 = arith.constant 0 : index
    %39 = vector.load %arg9[%c16, %c0_13] : memref<144x256xf32, #tpu.memory_space<vmem>>, vector<8x256xf32>
    tpu.vector_store %arg9[%c16, %c0_13], %38 {strides = array<i32>} : memref<144x256xf32, #tpu.memory_space<vmem>>, vector<8x256xf32>,
    %40 = vector.extract_strided_slice %6 {offsets = [0, 241], sizes = [8, 15], strides = [1, 1]} : vector<8x256xf32> to vector<8x15xf32>
    %41 = vector.extract_strided_slice %6 {offsets = [0, 0], sizes = [8, 241], strides = [1, 1]} : vector<8x256xf32> to vector<8x241xf32>
    %42 = tpu.concatenate %40, %41 in 1 : vector<8x15xf32>, vector<8x241xf32> -> vector<8x256xf32>
    %43 = vector.broadcast %33 : vector<1x256xf32> to vector<8x256xf32>
    %44 = arith.mulf %42, %43 : vector<8x256xf32>
    %c88 = arith.constant 88 : index
    %c0_14 = arith.constant 0 : index
    %45 = vector.load %arg9[%c88, %c0_14] : memref<144x256xf32, #tpu.memory_space<vmem>>, vector<8x256xf32>
    tpu.vector_store %arg9[%c88, %c0_14], %44 {strides = array<i32>} : memref<144x256xf32, #tpu.memory_space<vmem>>, vector<8x256xf32>,
    %46 = vector.extract_strided_slice %3 {offsets = [3, 0], sizes = [1, 256], strides = [1, 1]} : vector<9x256xf32> to vector<1x256xf32>
    %47 = vector.extract_strided_slice %5 {offsets = [0, 255], sizes = [8, 1], strides = [1, 1]} : vector<8x256xf32> to vector<8x1xf32>
    %48 = vector.extract_strided_slice %5 {offsets = [0, 0], sizes = [8, 255], strides = [1, 1]} : vector<8x256xf32> to vector<8x255xf32>
    %49 = tpu.concatenate %47, %48 in 1 : vector<8x1xf32>, vector<8x255xf32> -> vector<8x256xf32>
    %50 = vector.broadcast %46 : vector<1x256xf32> to vector<8x256xf32>
    %51 = arith.mulf %49, %50 : vector<8x256xf32>
    %c24 = arith.constant 24 : index
    %c0_15 = arith.constant 0 : index
    %52 = vector.load %arg9[%c24, %c0_15] : memref<144x256xf32, #tpu.memory_space<vmem>>, vector<8x256xf32>
    tpu.vector_store %arg9[%c24, %c0_15], %51 {strides = array<i32>} : memref<144x256xf32, #tpu.memory_space<vmem>>, vector<8x256xf32>,
    %53 = vector.extract_strided_slice %6 {offsets = [0, 255], sizes = [8, 1], strides = [1, 1]} : vector<8x256xf32> to vector<8x1xf32>
    %54 = vector.extract_strided_slice %6 {offsets = [0, 0], sizes = [8, 255], strides = [1, 1]} : vector<8x256xf32> to vector<8x255xf32>
    %55 = tpu.concatenate %53, %54 in 1 : vector<8x1xf32>, vector<8x255xf32> -> vector<8x256xf32>
    %56 = vector.broadcast %46 : vector<1x256xf32> to vector<8x256xf32>
    %57 = arith.mulf %55, %56 : vector<8x256xf32>
    %c96 = arith.constant 96 : index
    %c0_16 = arith.constant 0 : index
    %58 = vector.load %arg9[%c96, %c0_16] : memref<144x256xf32, #tpu.memory_space<vmem>>, vector<8x256xf32>
    tpu.vector_store %arg9[%c96, %c0_16], %57 {strides = array<i32>} : memref<144x256xf32, #tpu.memory_space<vmem>>, vector<8x256xf32>,
    %59 = vector.extract_strided_slice %3 {offsets = [4, 0], sizes = [1, 256], strides = [1, 1]} : vector<9x256xf32> to vector<1x256xf32>
    %60 = vector.broadcast %59 : vector<1x256xf32> to vector<8x256xf32>
    %61 = arith.mulf %5, %60 : vector<8x256xf32>
    %c32 = arith.constant 32 : index
    %c0_17 = arith.constant 0 : index
    %62 = vector.load %arg9[%c32, %c0_17] : memref<144x256xf32, #tpu.memory_space<vmem>>, vector<8x256xf32>
    tpu.vector_store %arg9[%c32, %c0_17], %61 {strides = array<i32>} : memref<144x256xf32, #tpu.memory_space<vmem>>, vector<8x256xf32>,
    %63 = vector.broadcast %59 : vector<1x256xf32> to vector<8x256xf32>
    %64 = arith.mulf %6, %63 : vector<8x256xf32>
    %c104 = arith.constant 104 : index
    %c0_18 = arith.constant 0 : index
    %65 = vector.load %arg9[%c104, %c0_18] : memref<144x256xf32, #tpu.memory_space<vmem>>, vector<8x256xf32>
    tpu.vector_store %arg9[%c104, %c0_18], %64 {strides = array<i32>} : memref<144x256xf32, #tpu.memory_space<vmem>>, vector<8x256xf32>,
    %66 = vector.extract_strided_slice %3 {offsets = [5, 0], sizes = [1, 256], strides = [1, 1]} : vector<9x256xf32> to vector<1x256xf32>
    %67 = vector.extract_strided_slice %5 {offsets = [0, 1], sizes = [8, 255], strides = [1, 1]} : vector<8x256xf32> to vector<8x255xf32>
    %68 = vector.extract_strided_slice %5 {offsets = [0, 0], sizes = [8, 1], strides = [1, 1]} : vector<8x256xf32> to vector<8x1xf32>
    %69 = tpu.concatenate %67, %68 in 1 : vector<8x255xf32>, vector<8x1xf32> -> vector<8x256xf32>
    %70 = vector.broadcast %66 : vector<1x256xf32> to vector<8x256xf32>
    %71 = arith.mulf %69, %70 : vector<8x256xf32>
    %c40 = arith.constant 40 : index
    %c0_19 = arith.constant 0 : index
    %72 = vector.load %arg9[%c40, %c0_19] : memref<144x256xf32, #tpu.memory_space<vmem>>, vector<8x256xf32>
    tpu.vector_store %arg9[%c40, %c0_19], %71 {strides = array<i32>} : memref<144x256xf32, #tpu.memory_space<vmem>>, vector<8x256xf32>,
    %73 = vector.extract_strided_slice %6 {offsets = [0, 1], sizes = [8, 255], strides = [1, 1]} : vector<8x256xf32> to vector<8x255xf32>
    %74 = vector.extract_strided_slice %6 {offsets = [0, 0], sizes = [8, 1], strides = [1, 1]} : vector<8x256xf32> to vector<8x1xf32>
    %75 = tpu.concatenate %73, %74 in 1 : vector<8x255xf32>, vector<8x1xf32> -> vector<8x256xf32>
    %76 = vector.broadcast %66 : vector<1x256xf32> to vector<8x256xf32>
    %77 = arith.mulf %75, %76 : vector<8x256xf32>
    %c112 = arith.constant 112 : index
    %c0_20 = arith.constant 0 : index
    %78 = vector.load %arg9[%c112, %c0_20] : memref<144x256xf32, #tpu.memory_space<vmem>>, vector<8x256xf32>
    tpu.vector_store %arg9[%c112, %c0_20], %77 {strides = array<i32>} : memref<144x256xf32, #tpu.memory_space<vmem>>, vector<8x256xf32>,
    %79 = vector.extract_strided_slice %3 {offsets = [6, 0], sizes = [1, 256], strides = [1, 1]} : vector<9x256xf32> to vector<1x256xf32>
    %80 = vector.extract_strided_slice %5 {offsets = [0, 15], sizes = [8, 241], strides = [1, 1]} : vector<8x256xf32> to vector<8x241xf32>
    %81 = vector.extract_strided_slice %5 {offsets = [0, 0], sizes = [8, 15], strides = [1, 1]} : vector<8x256xf32> to vector<8x15xf32>
    %82 = tpu.concatenate %80, %81 in 1 : vector<8x241xf32>, vector<8x15xf32> -> vector<8x256xf32>
    %83 = vector.broadcast %79 : vector<1x256xf32> to vector<8x256xf32>
    %84 = arith.mulf %82, %83 : vector<8x256xf32>
    %c48 = arith.constant 48 : index
    %c0_21 = arith.constant 0 : index
    %85 = vector.load %arg9[%c48, %c0_21] : memref<144x256xf32, #tpu.memory_space<vmem>>, vector<8x256xf32>
    tpu.vector_store %arg9[%c48, %c0_21], %84 {strides = array<i32>} : memref<144x256xf32, #tpu.memory_space<vmem>>, vector<8x256xf32>,
    %86 = vector.extract_strided_slice %6 {offsets = [0, 15], sizes = [8, 241], strides = [1, 1]} : vector<8x256xf32> to vector<8x241xf32>
    %87 = vector.extract_strided_slice %6 {offsets = [0, 0], sizes = [8, 15], strides = [1, 1]} : vector<8x256xf32> to vector<8x15xf32>
    %88 = tpu.concatenate %86, %87 in 1 : vector<8x241xf32>, vector<8x15xf32> -> vector<8x256xf32>
    %89 = vector.broadcast %79 : vector<1x256xf32> to vector<8x256xf32>
    %90 = arith.mulf %88, %89 : vector<8x256xf32>
    %c120 = arith.constant 120 : index
    %c0_22 = arith.constant 0 : index
    %91 = vector.load %arg9[%c120, %c0_22] : memref<144x256xf32, #tpu.memory_space<vmem>>, vector<8x256xf32>
    tpu.vector_store %arg9[%c120, %c0_22], %90 {strides = array<i32>} : memref<144x256xf32, #tpu.memory_space<vmem>>, vector<8x256xf32>,
    %92 = vector.extract_strided_slice %3 {offsets = [7, 0], sizes = [1, 256], strides = [1, 1]} : vector<9x256xf32> to vector<1x256xf32>
    %93 = vector.extract_strided_slice %5 {offsets = [0, 16], sizes = [8, 240], strides = [1, 1]} : vector<8x256xf32> to vector<8x240xf32>
    %94 = vector.extract_strided_slice %5 {offsets = [0, 0], sizes = [8, 16], strides = [1, 1]} : vector<8x256xf32> to vector<8x16xf32>
    %95 = tpu.concatenate %93, %94 in 1 : vector<8x240xf32>, vector<8x16xf32> -> vector<8x256xf32>
    %96 = vector.broadcast %92 : vector<1x256xf32> to vector<8x256xf32>
    %97 = arith.mulf %95, %96 : vector<8x256xf32>
    %c56 = arith.constant 56 : index
    %c0_23 = arith.constant 0 : index
    %98 = vector.load %arg9[%c56, %c0_23] : memref<144x256xf32, #tpu.memory_space<vmem>>, vector<8x256xf32>
    tpu.vector_store %arg9[%c56, %c0_23], %97 {strides = array<i32>} : memref<144x256xf32, #tpu.memory_space<vmem>>, vector<8x256xf32>,
    %99 = vector.extract_strided_slice %6 {offsets = [0, 16], sizes = [8, 240], strides = [1, 1]} : vector<8x256xf32> to vector<8x240xf32>
    %100 = vector.extract_strided_slice %6 {offsets = [0, 0], sizes = [8, 16], strides = [1, 1]} : vector<8x256xf32> to vector<8x16xf32>
    %101 = tpu.concatenate %99, %100 in 1 : vector<8x240xf32>, vector<8x16xf32> -> vector<8x256xf32>
    %102 = vector.broadcast %92 : vector<1x256xf32> to vector<8x256xf32>
    %103 = arith.mulf %101, %102 : vector<8x256xf32>
    %c128 = arith.constant 128 : index
    %c0_24 = arith.constant 0 : index
    %104 = vector.load %arg9[%c128, %c0_24] : memref<144x256xf32, #tpu.memory_space<vmem>>, vector<8x256xf32>
    tpu.vector_store %arg9[%c128, %c0_24], %103 {strides = array<i32>} : memref<144x256xf32, #tpu.memory_space<vmem>>, vector<8x256xf32>,
    %105 = vector.extract_strided_slice %3 {offsets = [8, 0], sizes = [1, 256], strides = [1, 1]} : vector<9x256xf32> to vector<1x256xf32>
    %106 = vector.extract_strided_slice %5 {offsets = [0, 17], sizes = [8, 239], strides = [1, 1]} : vector<8x256xf32> to vector<8x239xf32>
    %107 = vector.extract_strided_slice %5 {offsets = [0, 0], sizes = [8, 17], strides = [1, 1]} : vector<8x256xf32> to vector<8x17xf32>
    %108 = tpu.concatenate %106, %107 in 1 : vector<8x239xf32>, vector<8x17xf32> -> vector<8x256xf32>
    %109 = vector.broadcast %105 : vector<1x256xf32> to vector<8x256xf32>
    %110 = arith.mulf %108, %109 : vector<8x256xf32>
    %c64 = arith.constant 64 : index
    %c0_25 = arith.constant 0 : index
    %111 = vector.load %arg9[%c64, %c0_25] : memref<144x256xf32, #tpu.memory_space<vmem>>, vector<8x256xf32>
    tpu.vector_store %arg9[%c64, %c0_25], %110 {strides = array<i32>} : memref<144x256xf32, #tpu.memory_space<vmem>>, vector<8x256xf32>,
    %112 = vector.extract_strided_slice %6 {offsets = [0, 17], sizes = [8, 239], strides = [1, 1]} : vector<8x256xf32> to vector<8x239xf32>
    %113 = vector.extract_strided_slice %6 {offsets = [0, 0], sizes = [8, 17], strides = [1, 1]} : vector<8x256xf32> to vector<8x17xf32>
    %114 = tpu.concatenate %112, %113 in 1 : vector<8x239xf32>, vector<8x17xf32> -> vector<8x256xf32>
    %115 = vector.broadcast %105 : vector<1x256xf32> to vector<8x256xf32>
    %116 = arith.mulf %114, %115 : vector<8x256xf32>
    %c136 = arith.constant 136 : index
    %c0_26 = arith.constant 0 : index
    %117 = vector.load %arg9[%c136, %c0_26] : memref<144x256xf32, #tpu.memory_space<vmem>>, vector<8x256xf32>
    tpu.vector_store %arg9[%c136, %c0_26], %116 {strides = array<i32>} : memref<144x256xf32, #tpu.memory_space<vmem>>, vector<8x256xf32>,
    %c0_27 = arith.constant 0 : index
    %c0_28 = arith.constant 0 : index
    %118 = vector.load %arg3[%c0_27, %c0_28] : memref<32x144xf32, #tpu.memory_space<vmem>>, vector<32x144xf32>
    %c0_29 = arith.constant 0 : index
    %c0_30 = arith.constant 0 : index
    %119 = vector.load %arg9[%c0_29, %c0_30] : memref<144x256xf32, #tpu.memory_space<vmem>>, vector<144x256xf32>
    %cst = arith.constant dense<0.000000e+00> : vector<32x256xf32>
    %120 = tpu.matmul %118, %119, %cst {dimension_numbers = #tpu.dot_dimension_numbers<[1], [0], [0], [1], [0, 0, 1, 1], [], []>} : vector<32x144xf32>, vector<144x256xf32>, vector<32x256xf32> -> vector<32x256xf32>
    %c0_31 = arith.constant 0 : index
    %c0_32 = arith.constant 0 : index
    %121 = vector.load %arg4[%c0_31, %c0_32] : memref<32x1xf32, #tpu.memory_space<vmem>>, vector<32x1xf32>
    %122 = vector.broadcast %121 : vector<32x1xf32> to vector<32x256xf32>
    %123 = arith.addf %120, %122 : vector<32x256xf32>
    %124 = vector.extract_strided_slice %123 {offsets = [0, 0], sizes = [24, 256], strides = [1, 1]} : vector<32x256xf32> to vector<24x256xf32>
    %125 = arith.negf %124 : vector<24x256xf32>
    %126 = math.exp %125 : vector<24x256xf32>
    %cst_33 = arith.constant 1.000000e+00 : f32
    %127 = vector.broadcast %cst_33 : f32 to vector<24x256xf32>
    %128 = arith.addf %127, %126 : vector<24x256xf32>
    %129 = arith.divf %127, %128 : vector<24x256xf32>
    %130 = vector.extract_strided_slice %129 {offsets = [0, 0], sizes = [8, 256], strides = [1, 1]} : vector<24x256xf32> to vector<8x256xf32>
    %131 = vector.extract_strided_slice %129 {offsets = [8, 0], sizes = [8, 256], strides = [1, 1]} : vector<24x256xf32> to vector<8x256xf32>
    %132 = vector.extract_strided_slice %129 {offsets = [16, 0], sizes = [8, 256], strides = [1, 1]} : vector<24x256xf32> to vector<8x256xf32>
    %133 = vector.extract_strided_slice %123 {offsets = [24, 0], sizes = [8, 256], strides = [1, 1]} : vector<32x256xf32> to vector<8x256xf32>
    %134 = math.tanh %133 : vector<8x256xf32>
    %c0_34 = arith.constant 0 : index
    %c0_35 = arith.constant 0 : index
    %c0_36 = arith.constant 0 : index
    %135 = vector.load %arg7[%c0_34, %c0_35, %c0_36] : memref<1x8x256xf32, #tpu.memory_space<vmem>>, vector<1x8x256xf32>
    %136 = vector.shape_cast %135 : vector<1x8x256xf32> to vector<8x256xf32>
    %137 = arith.mulf %131, %136 : vector<8x256xf32>
    %138 = arith.mulf %130, %134 : vector<8x256xf32>
    %139 = arith.addf %137, %138 : vector<8x256xf32>
    %140 = math.tanh %139 : vector<8x256xf32>
    %141 = arith.mulf %132, %140 : vector<8x256xf32>
    %c0_37 = arith.constant 0 : index
    %c0_38 = arith.constant 0 : index
    %c0_39 = arith.constant 0 : index
    %142 = vector.load %arg7[%c0_37, %c0_38, %c0_39] : memref<1x8x256xf32, #tpu.memory_space<vmem>>, vector<1x8x256xf32>
    %143 = vector.shape_cast %142 : vector<1x8x256xf32> to vector<8x256xf32>
    %144 = vector.shape_cast %139 : vector<8x256xf32> to vector<1x8x256xf32>
    tpu.vector_store %arg7[%c0_37, %c0_38, %c0_39], %144 {strides = array<i32>} : memref<1x8x256xf32, #tpu.memory_space<vmem>>, vector<1x8x256xf32>,
    %c0_40 = arith.constant 0 : index
    %c0_41 = arith.constant 0 : index
    %c0_42 = arith.constant 0 : index
    %c0_43 = arith.constant 0 : index
    %145 = vector.load %arg6[%c0_40, %c0_41, %c0_42, %c0_43] : memref<1x1x8x256xf32, #tpu.memory_space<vmem>>, vector<1x1x8x256xf32>
    %146 = vector.shape_cast %145 : vector<1x1x8x256xf32> to vector<8x256xf32>
    %147 = vector.shape_cast %141 : vector<8x256xf32> to vector<1x1x8x256xf32>
    tpu.vector_store %arg6[%c0_40, %c0_41, %c0_42, %c0_43], %147 {strides = array<i32>} : memref<1x1x8x256xf32, #tpu.memory_space<vmem>>, vector<1x1x8x256xf32>,
    %c0_44 = arith.constant 0 : index
    %c0_45 = arith.constant 0 : index
    %148 = vector.load %arg8[%c0_44, %c0_45] : memref<8x256xf32, #tpu.memory_space<vmem>>, vector<8x256xf32>
    tpu.vector_store %arg8[%c0_44, %c0_45], %141 {strides = array<i32>} : memref<8x256xf32, #tpu.memory_space<vmem>>, vector<8x256xf32>,
    return
  }
  func.func @transform_0(%arg0: i32, %arg1: i32) -> (i32, i32, i32, i32) {
    %c0_i32 = arith.constant 0 : i32
    %c0_i32_0 = arith.constant 0 : i32
    %c0_i32_1 = arith.constant 0 : i32
    return %arg0, %arg1, %c0_i32, %c0_i32_0 : i32, i32, i32, i32
  }
  func.func @transform_1(%arg0: i32, %arg1: i32) -> (i32, i32) {
    %c0_i32 = arith.constant 0 : i32
    %c0_i32_0 = arith.constant 0 : i32
    %c0_i32_1 = arith.constant 0 : i32
    return %c0_i32, %c0_i32_0 : i32, i32
  }
  func.func @transform_2(%arg0: i32, %arg1: i32) -> (i32, i32) {
    %c0_i32 = arith.constant 0 : i32
    %c0_i32_0 = arith.constant 0 : i32
    %c0_i32_1 = arith.constant 0 : i32
    return %c0_i32, %c0_i32_0 : i32, i32
  }
  func.func @transform_3(%arg0: i32, %arg1: i32) -> (i32, i32) {
    %c0_i32 = arith.constant 0 : i32
    %c0_i32_0 = arith.constant 0 : i32
    %c0_i32_1 = arith.constant 0 : i32
    return %c0_i32, %c0_i32_0 : i32, i32
  }
  func.func @transform_4(%arg0: i32, %arg1: i32) -> (i32, i32, i32, i32) {
    %c0_i32 = arith.constant 0 : i32
    %c0_i32_0 = arith.constant 0 : i32
    %c0_i32_1 = arith.constant 0 : i32
    return %arg0, %arg1, %c0_i32, %c0_i32_0 : i32, i32, i32, i32
  }
  func.func @transform_5(%arg0: i32, %arg1: i32) -> (i32, i32, i32) {
    %c0_i32 = arith.constant 0 : i32
    %c0_i32_0 = arith.constant 0 : i32
    %c0_i32_1 = arith.constant 0 : i32
    return %arg0, %c0_i32, %c0_i32_0 : i32, i32, i32
  }
}

module attributes {stable_mosaic.version = 11 : i64} {
  func.func @_convlstm_layer_kernel(%arg0: i32, %arg1: i32, %arg2: memref<1x1x8x256xf32, #tpu.memory_space<vmem>>, %arg3: memref<64x216xf32, #tpu.memory_space<vmem>>, %arg4: memref<64x1xf32, #tpu.memory_space<vmem>>, %arg5: memref<9x256xf32, #tpu.memory_space<vmem>>, %arg6: memref<1x1x16x256xf32, #tpu.memory_space<vmem>>, %arg7: memref<1x16x256xf32, #tpu.memory_space<vmem>>, %arg8: memref<16x256xf32, #tpu.memory_space<vmem>>, %arg9: memref<216x256xf32, #tpu.memory_space<vmem>>) attributes {dimension_semantics = [#tpu.dimension_semantics<parallel>, #tpu.dimension_semantics<arbitrary>], iteration_bounds = array<i64: 2, 8>, scalar_prefetch = 0 : i64, scratch_operands = 2 : i64, tpu.core_type = #tpu.core_type<tc>, window_params = [{transform_indices = @transform_0, window_bounds = array<i64: 1, 1, 8, 256>}, {pipeline_mode = #tpu.pipeline_mode<synchronous>, transform_indices = @transform_1, window_bounds = array<i64: 64, 216>}, {pipeline_mode = #tpu.pipeline_mode<synchronous>, transform_indices = @transform_2, window_bounds = array<i64: 64, 1>}, {pipeline_mode = #tpu.pipeline_mode<synchronous>, transform_indices = @transform_3, window_bounds = array<i64: 9, 256>}, {transform_indices = @transform_4, window_bounds = array<i64: 1, 1, 16, 256>}, {transform_indices = @transform_5, window_bounds = array<i64: 1, 16, 256>}]} {
    %c0_i32 = arith.constant 0 : i32
    %0 = arith.cmpi eq, %arg1, %c0_i32 : i32
    %1 = arith.extui %0 : i1 to i32
    %c0_i32_0 = arith.constant 0 : i32
    %2 = arith.cmpi ne, %1, %c0_i32_0 : i32
    scf.if %2 {
      %cst_46 = arith.constant 0.000000e+00 : f32
      %149 = vector.broadcast %cst_46 : f32 to vector<16x256xf32>
      %c0_47 = arith.constant 0 : index
      %c0_48 = arith.constant 0 : index
      %150 = vector.load %arg8[%c0_47, %c0_48] : memref<16x256xf32, #tpu.memory_space<vmem>>, vector<16x256xf32>
      tpu.vector_store %arg8[%c0_47, %c0_48], %149 {strides = array<i32>} : memref<16x256xf32, #tpu.memory_space<vmem>>, vector<16x256xf32>,
      %cst_49 = arith.constant 0.000000e+00 : f32
      %151 = vector.broadcast %cst_49 : f32 to vector<16x256xf32>
      %c0_50 = arith.constant 0 : index
      %c0_51 = arith.constant 0 : index
      %c0_52 = arith.constant 0 : index
      %152 = vector.load %arg7[%c0_50, %c0_51, %c0_52] : memref<1x16x256xf32, #tpu.memory_space<vmem>>, vector<1x16x256xf32>
      %153 = vector.shape_cast %152 : vector<1x16x256xf32> to vector<16x256xf32>
      %154 = vector.shape_cast %151 : vector<16x256xf32> to vector<1x16x256xf32>
      tpu.vector_store %arg7[%c0_50, %c0_51, %c0_52], %154 {strides = array<i32>} : memref<1x16x256xf32, #tpu.memory_space<vmem>>, vector<1x16x256xf32>,
    } else {
    }
    %c0 = arith.constant 0 : index
    %c0_1 = arith.constant 0 : index
    %3 = vector.load %arg5[%c0, %c0_1] : memref<9x256xf32, #tpu.memory_space<vmem>>, vector<9x256xf32>
    %c0_2 = arith.constant 0 : index
    %c0_3 = arith.constant 0 : index
    %c0_4 = arith.constant 0 : index
    %c0_5 = arith.constant 0 : index
    %4 = vector.load %arg2[%c0_2, %c0_3, %c0_4, %c0_5] : memref<1x1x8x256xf32, #tpu.memory_space<vmem>>, vector<1x1x8x256xf32>
    %5 = vector.shape_cast %4 : vector<1x1x8x256xf32> to vector<8x256xf32>
    %c0_6 = arith.constant 0 : index
    %c0_7 = arith.constant 0 : index
    %6 = vector.load %arg8[%c0_6, %c0_7] : memref<16x256xf32, #tpu.memory_space<vmem>>, vector<16x256xf32>
    %7 = vector.extract_strided_slice %3 {offsets = [0, 0], sizes = [1, 256], strides = [1, 1]} : vector<9x256xf32> to vector<1x256xf32>
    %8 = vector.extract_strided_slice %5 {offsets = [0, 239], sizes = [8, 17], strides = [1, 1]} : vector<8x256xf32> to vector<8x17xf32>
    %9 = vector.extract_strided_slice %5 {offsets = [0, 0], sizes = [8, 239], strides = [1, 1]} : vector<8x256xf32> to vector<8x239xf32>
    %10 = tpu.concatenate %8, %9 in 1 : vector<8x17xf32>, vector<8x239xf32> -> vector<8x256xf32>
    %11 = vector.broadcast %7 : vector<1x256xf32> to vector<8x256xf32>
    %12 = arith.mulf %10, %11 : vector<8x256xf32>
    %c0_8 = arith.constant 0 : index
    %c0_9 = arith.constant 0 : index
    %13 = vector.load %arg9[%c0_8, %c0_9] : memref<216x256xf32, #tpu.memory_space<vmem>>, vector<8x256xf32>
    tpu.vector_store %arg9[%c0_8, %c0_9], %12 {strides = array<i32>} : memref<216x256xf32, #tpu.memory_space<vmem>>, vector<8x256xf32>,
    %14 = vector.extract_strided_slice %6 {offsets = [0, 239], sizes = [16, 17], strides = [1, 1]} : vector<16x256xf32> to vector<16x17xf32>
    %15 = vector.extract_strided_slice %6 {offsets = [0, 0], sizes = [16, 239], strides = [1, 1]} : vector<16x256xf32> to vector<16x239xf32>
    %16 = tpu.concatenate %14, %15 in 1 : vector<16x17xf32>, vector<16x239xf32> -> vector<16x256xf32>
    %17 = vector.broadcast %7 : vector<1x256xf32> to vector<16x256xf32>
    %18 = arith.mulf %16, %17 : vector<16x256xf32>
    %c72 = arith.constant 72 : index
    %c0_10 = arith.constant 0 : index
    %19 = vector.load %arg9[%c72, %c0_10] : memref<216x256xf32, #tpu.memory_space<vmem>>, vector<16x256xf32>
    tpu.vector_store %arg9[%c72, %c0_10], %18 {strides = array<i32>} : memref<216x256xf32, #tpu.memory_space<vmem>>, vector<16x256xf32>,
    %20 = vector.extract_strided_slice %3 {offsets = [1, 0], sizes = [1, 256], strides = [1, 1]} : vector<9x256xf32> to vector<1x256xf32>
    %21 = vector.extract_strided_slice %5 {offsets = [0, 240], sizes = [8, 16], strides = [1, 1]} : vector<8x256xf32> to vector<8x16xf32>
    %22 = vector.extract_strided_slice %5 {offsets = [0, 0], sizes = [8, 240], strides = [1, 1]} : vector<8x256xf32> to vector<8x240xf32>
    %23 = tpu.concatenate %21, %22 in 1 : vector<8x16xf32>, vector<8x240xf32> -> vector<8x256xf32>
    %24 = vector.broadcast %20 : vector<1x256xf32> to vector<8x256xf32>
    %25 = arith.mulf %23, %24 : vector<8x256xf32>
    %c8 = arith.constant 8 : index
    %c0_11 = arith.constant 0 : index
    %26 = vector.load %arg9[%c8, %c0_11] : memref<216x256xf32, #tpu.memory_space<vmem>>, vector<8x256xf32>
    tpu.vector_store %arg9[%c8, %c0_11], %25 {strides = array<i32>} : memref<216x256xf32, #tpu.memory_space<vmem>>, vector<8x256xf32>,
    %27 = vector.extract_strided_slice %6 {offsets = [0, 240], sizes = [16, 16], strides = [1, 1]} : vector<16x256xf32> to vector<16x16xf32>
    %28 = vector.extract_strided_slice %6 {offsets = [0, 0], sizes = [16, 240], strides = [1, 1]} : vector<16x256xf32> to vector<16x240xf32>
    %29 = tpu.concatenate %27, %28 in 1 : vector<16x16xf32>, vector<16x240xf32> -> vector<16x256xf32>
    %30 = vector.broadcast %20 : vector<1x256xf32> to vector<16x256xf32>
    %31 = arith.mulf %29, %30 : vector<16x256xf32>
    %c88 = arith.constant 88 : index
    %c0_12 = arith.constant 0 : index
    %32 = vector.load %arg9[%c88, %c0_12] : memref<216x256xf32, #tpu.memory_space<vmem>>, vector<16x256xf32>
    tpu.vector_store %arg9[%c88, %c0_12], %31 {strides = array<i32>} : memref<216x256xf32, #tpu.memory_space<vmem>>, vector<16x256xf32>,
    %33 = vector.extract_strided_slice %3 {offsets = [2, 0], sizes = [1, 256], strides = [1, 1]} : vector<9x256xf32> to vector<1x256xf32>
    %34 = vector.extract_strided_slice %5 {offsets = [0, 241], sizes = [8, 15], strides = [1, 1]} : vector<8x256xf32> to vector<8x15xf32>
    %35 = vector.extract_strided_slice %5 {offsets = [0, 0], sizes = [8, 241], strides = [1, 1]} : vector<8x256xf32> to vector<8x241xf32>
    %36 = tpu.concatenate %34, %35 in 1 : vector<8x15xf32>, vector<8x241xf32> -> vector<8x256xf32>
    %37 = vector.broadcast %33 : vector<1x256xf32> to vector<8x256xf32>
    %38 = arith.mulf %36, %37 : vector<8x256xf32>
    %c16 = arith.constant 16 : index
    %c0_13 = arith.constant 0 : index
    %39 = vector.load %arg9[%c16, %c0_13] : memref<216x256xf32, #tpu.memory_space<vmem>>, vector<8x256xf32>
    tpu.vector_store %arg9[%c16, %c0_13], %38 {strides = array<i32>} : memref<216x256xf32, #tpu.memory_space<vmem>>, vector<8x256xf32>,
    %40 = vector.extract_strided_slice %6 {offsets = [0, 241], sizes = [16, 15], strides = [1, 1]} : vector<16x256xf32> to vector<16x15xf32>
    %41 = vector.extract_strided_slice %6 {offsets = [0, 0], sizes = [16, 241], strides = [1, 1]} : vector<16x256xf32> to vector<16x241xf32>
    %42 = tpu.concatenate %40, %41 in 1 : vector<16x15xf32>, vector<16x241xf32> -> vector<16x256xf32>
    %43 = vector.broadcast %33 : vector<1x256xf32> to vector<16x256xf32>
    %44 = arith.mulf %42, %43 : vector<16x256xf32>
    %c104 = arith.constant 104 : index
    %c0_14 = arith.constant 0 : index
    %45 = vector.load %arg9[%c104, %c0_14] : memref<216x256xf32, #tpu.memory_space<vmem>>, vector<16x256xf32>
    tpu.vector_store %arg9[%c104, %c0_14], %44 {strides = array<i32>} : memref<216x256xf32, #tpu.memory_space<vmem>>, vector<16x256xf32>,
    %46 = vector.extract_strided_slice %3 {offsets = [3, 0], sizes = [1, 256], strides = [1, 1]} : vector<9x256xf32> to vector<1x256xf32>
    %47 = vector.extract_strided_slice %5 {offsets = [0, 255], sizes = [8, 1], strides = [1, 1]} : vector<8x256xf32> to vector<8x1xf32>
    %48 = vector.extract_strided_slice %5 {offsets = [0, 0], sizes = [8, 255], strides = [1, 1]} : vector<8x256xf32> to vector<8x255xf32>
    %49 = tpu.concatenate %47, %48 in 1 : vector<8x1xf32>, vector<8x255xf32> -> vector<8x256xf32>
    %50 = vector.broadcast %46 : vector<1x256xf32> to vector<8x256xf32>
    %51 = arith.mulf %49, %50 : vector<8x256xf32>
    %c24 = arith.constant 24 : index
    %c0_15 = arith.constant 0 : index
    %52 = vector.load %arg9[%c24, %c0_15] : memref<216x256xf32, #tpu.memory_space<vmem>>, vector<8x256xf32>
    tpu.vector_store %arg9[%c24, %c0_15], %51 {strides = array<i32>} : memref<216x256xf32, #tpu.memory_space<vmem>>, vector<8x256xf32>,
    %53 = vector.extract_strided_slice %6 {offsets = [0, 255], sizes = [16, 1], strides = [1, 1]} : vector<16x256xf32> to vector<16x1xf32>
    %54 = vector.extract_strided_slice %6 {offsets = [0, 0], sizes = [16, 255], strides = [1, 1]} : vector<16x256xf32> to vector<16x255xf32>
    %55 = tpu.concatenate %53, %54 in 1 : vector<16x1xf32>, vector<16x255xf32> -> vector<16x256xf32>
    %56 = vector.broadcast %46 : vector<1x256xf32> to vector<16x256xf32>
    %57 = arith.mulf %55, %56 : vector<16x256xf32>
    %c120 = arith.constant 120 : index
    %c0_16 = arith.constant 0 : index
    %58 = vector.load %arg9[%c120, %c0_16] : memref<216x256xf32, #tpu.memory_space<vmem>>, vector<16x256xf32>
    tpu.vector_store %arg9[%c120, %c0_16], %57 {strides = array<i32>} : memref<216x256xf32, #tpu.memory_space<vmem>>, vector<16x256xf32>,
    %59 = vector.extract_strided_slice %3 {offsets = [4, 0], sizes = [1, 256], strides = [1, 1]} : vector<9x256xf32> to vector<1x256xf32>
    %60 = vector.broadcast %59 : vector<1x256xf32> to vector<8x256xf32>
    %61 = arith.mulf %5, %60 : vector<8x256xf32>
    %c32 = arith.constant 32 : index
    %c0_17 = arith.constant 0 : index
    %62 = vector.load %arg9[%c32, %c0_17] : memref<216x256xf32, #tpu.memory_space<vmem>>, vector<8x256xf32>
    tpu.vector_store %arg9[%c32, %c0_17], %61 {strides = array<i32>} : memref<216x256xf32, #tpu.memory_space<vmem>>, vector<8x256xf32>,
    %63 = vector.broadcast %59 : vector<1x256xf32> to vector<16x256xf32>
    %64 = arith.mulf %6, %63 : vector<16x256xf32>
    %c136 = arith.constant 136 : index
    %c0_18 = arith.constant 0 : index
    %65 = vector.load %arg9[%c136, %c0_18] : memref<216x256xf32, #tpu.memory_space<vmem>>, vector<16x256xf32>
    tpu.vector_store %arg9[%c136, %c0_18], %64 {strides = array<i32>} : memref<216x256xf32, #tpu.memory_space<vmem>>, vector<16x256xf32>,
    %66 = vector.extract_strided_slice %3 {offsets = [5, 0], sizes = [1, 256], strides = [1, 1]} : vector<9x256xf32> to vector<1x256xf32>
    %67 = vector.extract_strided_slice %5 {offsets = [0, 1], sizes = [8, 255], strides = [1, 1]} : vector<8x256xf32> to vector<8x255xf32>
    %68 = vector.extract_strided_slice %5 {offsets = [0, 0], sizes = [8, 1], strides = [1, 1]} : vector<8x256xf32> to vector<8x1xf32>
    %69 = tpu.concatenate %67, %68 in 1 : vector<8x255xf32>, vector<8x1xf32> -> vector<8x256xf32>
    %70 = vector.broadcast %66 : vector<1x256xf32> to vector<8x256xf32>
    %71 = arith.mulf %69, %70 : vector<8x256xf32>
    %c40 = arith.constant 40 : index
    %c0_19 = arith.constant 0 : index
    %72 = vector.load %arg9[%c40, %c0_19] : memref<216x256xf32, #tpu.memory_space<vmem>>, vector<8x256xf32>
    tpu.vector_store %arg9[%c40, %c0_19], %71 {strides = array<i32>} : memref<216x256xf32, #tpu.memory_space<vmem>>, vector<8x256xf32>,
    %73 = vector.extract_strided_slice %6 {offsets = [0, 1], sizes = [16, 255], strides = [1, 1]} : vector<16x256xf32> to vector<16x255xf32>
    %74 = vector.extract_strided_slice %6 {offsets = [0, 0], sizes = [16, 1], strides = [1, 1]} : vector<16x256xf32> to vector<16x1xf32>
    %75 = tpu.concatenate %73, %74 in 1 : vector<16x255xf32>, vector<16x1xf32> -> vector<16x256xf32>
    %76 = vector.broadcast %66 : vector<1x256xf32> to vector<16x256xf32>
    %77 = arith.mulf %75, %76 : vector<16x256xf32>
    %c152 = arith.constant 152 : index
    %c0_20 = arith.constant 0 : index
    %78 = vector.load %arg9[%c152, %c0_20] : memref<216x256xf32, #tpu.memory_space<vmem>>, vector<16x256xf32>
    tpu.vector_store %arg9[%c152, %c0_20], %77 {strides = array<i32>} : memref<216x256xf32, #tpu.memory_space<vmem>>, vector<16x256xf32>,
    %79 = vector.extract_strided_slice %3 {offsets = [6, 0], sizes = [1, 256], strides = [1, 1]} : vector<9x256xf32> to vector<1x256xf32>
    %80 = vector.extract_strided_slice %5 {offsets = [0, 15], sizes = [8, 241], strides = [1, 1]} : vector<8x256xf32> to vector<8x241xf32>
    %81 = vector.extract_strided_slice %5 {offsets = [0, 0], sizes = [8, 15], strides = [1, 1]} : vector<8x256xf32> to vector<8x15xf32>
    %82 = tpu.concatenate %80, %81 in 1 : vector<8x241xf32>, vector<8x15xf32> -> vector<8x256xf32>
    %83 = vector.broadcast %79 : vector<1x256xf32> to vector<8x256xf32>
    %84 = arith.mulf %82, %83 : vector<8x256xf32>
    %c48 = arith.constant 48 : index
    %c0_21 = arith.constant 0 : index
    %85 = vector.load %arg9[%c48, %c0_21] : memref<216x256xf32, #tpu.memory_space<vmem>>, vector<8x256xf32>
    tpu.vector_store %arg9[%c48, %c0_21], %84 {strides = array<i32>} : memref<216x256xf32, #tpu.memory_space<vmem>>, vector<8x256xf32>,
    %86 = vector.extract_strided_slice %6 {offsets = [0, 15], sizes = [16, 241], strides = [1, 1]} : vector<16x256xf32> to vector<16x241xf32>
    %87 = vector.extract_strided_slice %6 {offsets = [0, 0], sizes = [16, 15], strides = [1, 1]} : vector<16x256xf32> to vector<16x15xf32>
    %88 = tpu.concatenate %86, %87 in 1 : vector<16x241xf32>, vector<16x15xf32> -> vector<16x256xf32>
    %89 = vector.broadcast %79 : vector<1x256xf32> to vector<16x256xf32>
    %90 = arith.mulf %88, %89 : vector<16x256xf32>
    %c168 = arith.constant 168 : index
    %c0_22 = arith.constant 0 : index
    %91 = vector.load %arg9[%c168, %c0_22] : memref<216x256xf32, #tpu.memory_space<vmem>>, vector<16x256xf32>
    tpu.vector_store %arg9[%c168, %c0_22], %90 {strides = array<i32>} : memref<216x256xf32, #tpu.memory_space<vmem>>, vector<16x256xf32>,
    %92 = vector.extract_strided_slice %3 {offsets = [7, 0], sizes = [1, 256], strides = [1, 1]} : vector<9x256xf32> to vector<1x256xf32>
    %93 = vector.extract_strided_slice %5 {offsets = [0, 16], sizes = [8, 240], strides = [1, 1]} : vector<8x256xf32> to vector<8x240xf32>
    %94 = vector.extract_strided_slice %5 {offsets = [0, 0], sizes = [8, 16], strides = [1, 1]} : vector<8x256xf32> to vector<8x16xf32>
    %95 = tpu.concatenate %93, %94 in 1 : vector<8x240xf32>, vector<8x16xf32> -> vector<8x256xf32>
    %96 = vector.broadcast %92 : vector<1x256xf32> to vector<8x256xf32>
    %97 = arith.mulf %95, %96 : vector<8x256xf32>
    %c56 = arith.constant 56 : index
    %c0_23 = arith.constant 0 : index
    %98 = vector.load %arg9[%c56, %c0_23] : memref<216x256xf32, #tpu.memory_space<vmem>>, vector<8x256xf32>
    tpu.vector_store %arg9[%c56, %c0_23], %97 {strides = array<i32>} : memref<216x256xf32, #tpu.memory_space<vmem>>, vector<8x256xf32>,
    %99 = vector.extract_strided_slice %6 {offsets = [0, 16], sizes = [16, 240], strides = [1, 1]} : vector<16x256xf32> to vector<16x240xf32>
    %100 = vector.extract_strided_slice %6 {offsets = [0, 0], sizes = [16, 16], strides = [1, 1]} : vector<16x256xf32> to vector<16x16xf32>
    %101 = tpu.concatenate %99, %100 in 1 : vector<16x240xf32>, vector<16x16xf32> -> vector<16x256xf32>
    %102 = vector.broadcast %92 : vector<1x256xf32> to vector<16x256xf32>
    %103 = arith.mulf %101, %102 : vector<16x256xf32>
    %c184 = arith.constant 184 : index
    %c0_24 = arith.constant 0 : index
    %104 = vector.load %arg9[%c184, %c0_24] : memref<216x256xf32, #tpu.memory_space<vmem>>, vector<16x256xf32>
    tpu.vector_store %arg9[%c184, %c0_24], %103 {strides = array<i32>} : memref<216x256xf32, #tpu.memory_space<vmem>>, vector<16x256xf32>,
    %105 = vector.extract_strided_slice %3 {offsets = [8, 0], sizes = [1, 256], strides = [1, 1]} : vector<9x256xf32> to vector<1x256xf32>
    %106 = vector.extract_strided_slice %5 {offsets = [0, 17], sizes = [8, 239], strides = [1, 1]} : vector<8x256xf32> to vector<8x239xf32>
    %107 = vector.extract_strided_slice %5 {offsets = [0, 0], sizes = [8, 17], strides = [1, 1]} : vector<8x256xf32> to vector<8x17xf32>
    %108 = tpu.concatenate %106, %107 in 1 : vector<8x239xf32>, vector<8x17xf32> -> vector<8x256xf32>
    %109 = vector.broadcast %105 : vector<1x256xf32> to vector<8x256xf32>
    %110 = arith.mulf %108, %109 : vector<8x256xf32>
    %c64 = arith.constant 64 : index
    %c0_25 = arith.constant 0 : index
    %111 = vector.load %arg9[%c64, %c0_25] : memref<216x256xf32, #tpu.memory_space<vmem>>, vector<8x256xf32>
    tpu.vector_store %arg9[%c64, %c0_25], %110 {strides = array<i32>} : memref<216x256xf32, #tpu.memory_space<vmem>>, vector<8x256xf32>,
    %112 = vector.extract_strided_slice %6 {offsets = [0, 17], sizes = [16, 239], strides = [1, 1]} : vector<16x256xf32> to vector<16x239xf32>
    %113 = vector.extract_strided_slice %6 {offsets = [0, 0], sizes = [16, 17], strides = [1, 1]} : vector<16x256xf32> to vector<16x17xf32>
    %114 = tpu.concatenate %112, %113 in 1 : vector<16x239xf32>, vector<16x17xf32> -> vector<16x256xf32>
    %115 = vector.broadcast %105 : vector<1x256xf32> to vector<16x256xf32>
    %116 = arith.mulf %114, %115 : vector<16x256xf32>
    %c200 = arith.constant 200 : index
    %c0_26 = arith.constant 0 : index
    %117 = vector.load %arg9[%c200, %c0_26] : memref<216x256xf32, #tpu.memory_space<vmem>>, vector<16x256xf32>
    tpu.vector_store %arg9[%c200, %c0_26], %116 {strides = array<i32>} : memref<216x256xf32, #tpu.memory_space<vmem>>, vector<16x256xf32>,
    %c0_27 = arith.constant 0 : index
    %c0_28 = arith.constant 0 : index
    %118 = vector.load %arg3[%c0_27, %c0_28] : memref<64x216xf32, #tpu.memory_space<vmem>>, vector<64x216xf32>
    %c0_29 = arith.constant 0 : index
    %c0_30 = arith.constant 0 : index
    %119 = vector.load %arg9[%c0_29, %c0_30] : memref<216x256xf32, #tpu.memory_space<vmem>>, vector<216x256xf32>
    %cst = arith.constant dense<0.000000e+00> : vector<64x256xf32>
    %120 = tpu.matmul %118, %119, %cst {dimension_numbers = #tpu.dot_dimension_numbers<[1], [0], [0], [1], [0, 0, 1, 1], [], []>} : vector<64x216xf32>, vector<216x256xf32>, vector<64x256xf32> -> vector<64x256xf32>
    %c0_31 = arith.constant 0 : index
    %c0_32 = arith.constant 0 : index
    %121 = vector.load %arg4[%c0_31, %c0_32] : memref<64x1xf32, #tpu.memory_space<vmem>>, vector<64x1xf32>
    %122 = vector.broadcast %121 : vector<64x1xf32> to vector<64x256xf32>
    %123 = arith.addf %120, %122 : vector<64x256xf32>
    %124 = vector.extract_strided_slice %123 {offsets = [0, 0], sizes = [48, 256], strides = [1, 1]} : vector<64x256xf32> to vector<48x256xf32>
    %125 = arith.negf %124 : vector<48x256xf32>
    %126 = math.exp %125 : vector<48x256xf32>
    %cst_33 = arith.constant 1.000000e+00 : f32
    %127 = vector.broadcast %cst_33 : f32 to vector<48x256xf32>
    %128 = arith.addf %127, %126 : vector<48x256xf32>
    %129 = arith.divf %127, %128 : vector<48x256xf32>
    %130 = vector.extract_strided_slice %129 {offsets = [0, 0], sizes = [16, 256], strides = [1, 1]} : vector<48x256xf32> to vector<16x256xf32>
    %131 = vector.extract_strided_slice %129 {offsets = [16, 0], sizes = [16, 256], strides = [1, 1]} : vector<48x256xf32> to vector<16x256xf32>
    %132 = vector.extract_strided_slice %129 {offsets = [32, 0], sizes = [16, 256], strides = [1, 1]} : vector<48x256xf32> to vector<16x256xf32>
    %133 = vector.extract_strided_slice %123 {offsets = [48, 0], sizes = [16, 256], strides = [1, 1]} : vector<64x256xf32> to vector<16x256xf32>
    %134 = math.tanh %133 : vector<16x256xf32>
    %c0_34 = arith.constant 0 : index
    %c0_35 = arith.constant 0 : index
    %c0_36 = arith.constant 0 : index
    %135 = vector.load %arg7[%c0_34, %c0_35, %c0_36] : memref<1x16x256xf32, #tpu.memory_space<vmem>>, vector<1x16x256xf32>
    %136 = vector.shape_cast %135 : vector<1x16x256xf32> to vector<16x256xf32>
    %137 = arith.mulf %131, %136 : vector<16x256xf32>
    %138 = arith.mulf %130, %134 : vector<16x256xf32>
    %139 = arith.addf %137, %138 : vector<16x256xf32>
    %140 = math.tanh %139 : vector<16x256xf32>
    %141 = arith.mulf %132, %140 : vector<16x256xf32>
    %c0_37 = arith.constant 0 : index
    %c0_38 = arith.constant 0 : index
    %c0_39 = arith.constant 0 : index
    %142 = vector.load %arg7[%c0_37, %c0_38, %c0_39] : memref<1x16x256xf32, #tpu.memory_space<vmem>>, vector<1x16x256xf32>
    %143 = vector.shape_cast %142 : vector<1x16x256xf32> to vector<16x256xf32>
    %144 = vector.shape_cast %139 : vector<16x256xf32> to vector<1x16x256xf32>
    tpu.vector_store %arg7[%c0_37, %c0_38, %c0_39], %144 {strides = array<i32>} : memref<1x16x256xf32, #tpu.memory_space<vmem>>, vector<1x16x256xf32>,
    %c0_40 = arith.constant 0 : index
    %c0_41 = arith.constant 0 : index
    %c0_42 = arith.constant 0 : index
    %c0_43 = arith.constant 0 : index
    %145 = vector.load %arg6[%c0_40, %c0_41, %c0_42, %c0_43] : memref<1x1x16x256xf32, #tpu.memory_space<vmem>>, vector<1x1x16x256xf32>
    %146 = vector.shape_cast %145 : vector<1x1x16x256xf32> to vector<16x256xf32>
    %147 = vector.shape_cast %141 : vector<16x256xf32> to vector<1x1x16x256xf32>
    tpu.vector_store %arg6[%c0_40, %c0_41, %c0_42, %c0_43], %147 {strides = array<i32>} : memref<1x1x16x256xf32, #tpu.memory_space<vmem>>, vector<1x1x16x256xf32>,
    %c0_44 = arith.constant 0 : index
    %c0_45 = arith.constant 0 : index
    %148 = vector.load %arg8[%c0_44, %c0_45] : memref<16x256xf32, #tpu.memory_space<vmem>>, vector<16x256xf32>
    tpu.vector_store %arg8[%c0_44, %c0_45], %141 {strides = array<i32>} : memref<16x256xf32, #tpu.memory_space<vmem>>, vector<16x256xf32>,
    return
  }
  func.func @transform_0(%arg0: i32, %arg1: i32) -> (i32, i32, i32, i32) {
    %c0_i32 = arith.constant 0 : i32
    %c0_i32_0 = arith.constant 0 : i32
    %c0_i32_1 = arith.constant 0 : i32
    return %arg0, %arg1, %c0_i32, %c0_i32_0 : i32, i32, i32, i32
  }
  func.func @transform_1(%arg0: i32, %arg1: i32) -> (i32, i32) {
    %c0_i32 = arith.constant 0 : i32
    %c0_i32_0 = arith.constant 0 : i32
    %c0_i32_1 = arith.constant 0 : i32
    return %c0_i32, %c0_i32_0 : i32, i32
  }
  func.func @transform_2(%arg0: i32, %arg1: i32) -> (i32, i32) {
    %c0_i32 = arith.constant 0 : i32
    %c0_i32_0 = arith.constant 0 : i32
    %c0_i32_1 = arith.constant 0 : i32
    return %c0_i32, %c0_i32_0 : i32, i32
  }
  func.func @transform_3(%arg0: i32, %arg1: i32) -> (i32, i32) {
    %c0_i32 = arith.constant 0 : i32
    %c0_i32_0 = arith.constant 0 : i32
    %c0_i32_1 = arith.constant 0 : i32
    return %c0_i32, %c0_i32_0 : i32, i32
  }
  func.func @transform_4(%arg0: i32, %arg1: i32) -> (i32, i32, i32, i32) {
    %c0_i32 = arith.constant 0 : i32
    %c0_i32_0 = arith.constant 0 : i32
    %c0_i32_1 = arith.constant 0 : i32
    return %arg0, %arg1, %c0_i32, %c0_i32_0 : i32, i32, i32, i32
  }
  func.func @transform_5(%arg0: i32, %arg1: i32) -> (i32, i32, i32) {
    %c0_i32 = arith.constant 0 : i32
    %c0_i32_0 = arith.constant 0 : i32
    %c0_i32_1 = arith.constant 0 : i32
    return %arg0, %c0_i32, %c0_i32_0 : i32, i32, i32
  }
}

</mosaic_0001>

<llo_original>
// kernel: convlstm_forward.2
$region0: #{convlstm_forward.2}
  #allocation0 [shape = 'u32[]', space=smem, size = 0x4, offset = 0x4, fixed_abs, tag = 'smem constant byte address 0x4 - core index']
  #allocation1 [shape = 'u32[72,128]{1,0:T(1,128)}', space=vmem, size = 0x9000, scoped, tag = 'internal scratch']
  #allocation2 [shape = 'f32[8,256]{1,0:T(8,128)}', space=vmem, size = 0x2000, scoped, tag = 'scratch operand']
  #allocation3 [shape = 'f32[144,256]{1,0:T(8,128)}', space=vmem, size = 0x24000, scoped, tag = 'scratch operand']
  %s0 = inlined_call_operand.vmem [shape: f32[2,8,8,256], index: 0, kind: input, shape index: {}]
  %s1 = inlined_call_operand.vmem [shape: f32[32,144], index: 1, kind: input, shape index: {}]
  %s2 = inlined_call_operand.vmem [shape: f32[32,1], index: 2, kind: input, shape index: {}]
  %s3 = inlined_call_operand.vmem [shape: f32[9,256], index: 3, kind: input, shape index: {}]
  %s4 = inlined_call_operand.vmem [shape: f32[2,8,8,256], index: 4, kind: output, shape index: {0}]
  %s5 = inlined_call_operand.hbm [shape: f32[2,8,256], index: 5, kind: output, shape index: {1}]
  %6 = xla_tuple %s4, %s5
  %s7 = sld [smem:[#allocation0]]
  $region61: #{convlstm_forward.2} parent=0
    _
  %s9 = ssub.s32 1, %s7
  %s10 = scalar_select 0, %s9, %s7
  $region1: #{convlstm_forward.2} parent=0
    #allocation4 [shape = 'u8[16384]{0}', space=vmem, size = 0x4000, scoped, tag = 'output window, operand 1']
    #allocation5 [shape = 's32[2]{0}', space=sflag, size = 0x8, scoped, tag = 'scoped memory for convlstm_forward.2']
    %11 = vsyncpa [#allocation5], 0
    %s12 = scalar_lea.sflag [#allocation5], 1
    %13 = vsyncpa %s12, 0
    loop: start=0, step=1, limit=18
    $region2: #{convlstm_forward.2} parent=1 // loop_pre_header
      _
    $region3: #{convlstm_forward.2} parent=1 // loop_header
      %s15 = sphi 0, %s19
      %p16 = scmp.ge.s32.totalorder %s15, 18
      %s22 = sphi 0, %s34
      %s23 = sphi 0, %s30
      %s24 = sphi 0, %s22
      %s25 = sphi 0, %s23
      %s26 = sphi 0, %s24
      %s27 = sphi 0, %s25
      %s39 = sphi 0, %s41
      %s42 = sphi 0, %s39
      %s43 = sphi 0, %s42
      %s59 = sphi 0, %s43
      %s63 = sphi 0, %s63
      %s65 = sphi 0, %s63
      %s66 = sphi 0, %s65
      %s80 = sphi 0, %s66
      %s84 = sphi 0, %s84
      %s86 = sphi 0, %s84
      %s87 = sphi 0, %s86
      %s101 = sphi 0, %s87
      %s105 = sphi 0, %s105
      %s107 = sphi 0, %s105
      %s108 = sphi 0, %s107
      %s122 = sphi 0, %s108
      %s130 = sphi 0, %s132
      %s133 = sphi 0, %s130
      %s134 = sphi 0, %s133
      %s150 = sphi 0, %s134
      %s156 = sphi 0, %s158
      %s159 = sphi 0, %s156
      %s160 = sphi 0, %s159
      %s176 = sphi 0, %s160
    $region4: #{convlstm_forward.2} parent=1 // loop_header_branch
      %18 = sbr.rel (%p16) target = $region8
    $region5: #{convlstm_forward.2} parent=1 // loop_body
      %s20 = ssub.s32 %s15, 1
      %s21 = ssub.s32 %s15, 2
      %s28 = sadd.s32 1, %s23
      %p29 = scmp.ge.s32.totalorder %s28, 8
      %s30 = scalar_select %p29, 0, %s28
      %s31 = sadd.s32 1, %s22
      %s32 = scalar_select %p29, %s31, %s22
      %p33 = scmp.ge.s32.totalorder %s32, 2
      %s34 = scalar_select %p33, 0, %s32
      %s35 = ssub.s32 %s22, %s34
      %s36 = ssub.s32 %s23, %s30
      %s37 = sor.u32 %s35, %s36
      %p38 = scmp.eq.s32.totalorder %s37, 0
      %s40 = sadd.s32 %s39, 1
      %s41 = scalar_select %p38, %s39, %s40
      %p44 = pneg %p38
      %p45 = scmp.eq.s32.totalorder %s15, 15
      %p46 = por %p44, %p45
      %p47 = scmp.ne.s32.totalorder %s39, %s42
      %p48 = scmp.eq.s32.totalorder %s15, 0
      %p49 = por %p47, %p48
      %p50 = scmp.ne.s32.totalorder %s39, %s42
      %p51 = scmp.eq.s32.totalorder %s20, 15
      %p52 = por %p50, %p51
      %p53 = scmp.ne.s32.totalorder %s42, %s43
      %p54 = scmp.eq.s32.totalorder %s20, 0
      %p55 = por %p53, %p54
      %p56 = scmp.ne.s32.totalorder %s42, %s43
      %p57 = scmp.eq.s32.totalorder %s21, 15
      %p58 = por %p56, %p57
      %p60 = scmp.ne.s32.totalorder %s43, %s59
      %p61 = scmp.eq.s32.totalorder %s21, 0
      %p62 = por %p60, %p61
      %s64 = sadd.s32 %s63, 1
      %p67 = scmp.eq.s32.totalorder %s15, 15
      %p68 = scmp.ne.s32.totalorder %s63, %s65
      %p69 = scmp.eq.s32.totalorder %s15, 0
      %p70 = por %p68, %p69
      %p71 = scmp.ne.s32.totalorder %s63, %s65
      %p72 = scmp.eq.s32.totalorder %s20, 15
      %p73 = por %p71, %p72
      %p74 = scmp.ne.s32.totalorder %s65, %s66
      %p75 = scmp.eq.s32.totalorder %s20, 0
      %p76 = por %p74, %p75
      %p77 = scmp.ne.s32.totalorder %s65, %s66
      %p78 = scmp.eq.s32.totalorder %s21, 15
      %p79 = por %p77, %p78
      %p81 = scmp.ne.s32.totalorder %s66, %s80
      %p82 = scmp.eq.s32.totalorder %s21, 0
      %p83 = por %p81, %p82
      %s85 = sadd.s32 %s84, 1
      %p88 = scmp.eq.s32.totalorder %s15, 15
      %p89 = scmp.ne.s32.totalorder %s84, %s86
      %p90 = scmp.eq.s32.totalorder %s15, 0
      %p91 = por %p89, %p90
      %p92 = scmp.ne.s32.totalorder %s84, %s86
      %p93 = scmp.eq.s32.totalorder %s20, 15
      %p94 = por %p92, %p93
      %p95 = scmp.ne.s32.totalorder %s86, %s87
      %p96 = scmp.eq.s32.totalorder %s20, 0
      %p97 = por %p95, %p96
      %p98 = scmp.ne.s32.totalorder %s86, %s87
      %p99 = scmp.eq.s32.totalorder %s21, 15
      %p100 = por %p98, %p99
      %p102 = scmp.ne.s32.totalorder %s87, %s101
      %p103 = scmp.eq.s32.totalorder %s21, 0
      %p104 = por %p102, %p103
      %s106 = sadd.s32 %s105, 1
      %p109 = scmp.eq.s32.totalorder %s15, 15
      %p110 = scmp.ne.s32.totalorder %s105, %s107
      %p111 = scmp.eq.s32.totalorder %s15, 0
      %p112 = por %p110, %p111
      %p113 = scmp.ne.s32.totalorder %s105, %s107
      %p114 = scmp.eq.s32.totalorder %s20, 15
      %p115 = por %p113, %p114
      %p116 = scmp.ne.s32.totalorder %s107, %s108
      %p117 = scmp.eq.s32.totalorder %s20, 0
      %p118 = por %p116, %p117
      %p119 = scmp.ne.s32.totalorder %s107, %s108
      %p120 = scmp.eq.s32.totalorder %s21, 15
      %p121 = por %p119, %p120
      %p123 = scmp.ne.s32.totalorder %s108, %s122
      %p124 = scmp.eq.s32.totalorder %s21, 0
      %p125 = por %p123, %p124
      %s126 = ssub.s32 %s22, %s34
      %s127 = ssub.s32 %s23, %s30
      %s128 = sor.u32 %s126, %s127
      %p129 = scmp.eq.s32.totalorder %s128, 0
      %s131 = sadd.s32 %s130, 1
      %s132 = scalar_select %p129, %s130, %s131
      %p135 = pneg %p129
      %p136 = scmp.eq.s32.totalorder %s15, 15
      %p137 = por %p135, %p136
      %p138 = scmp.ne.s32.totalorder %s130, %s133
      %p139 = scmp.eq.s32.totalorder %s15, 0
      %p140 = por %p138, %p139
      %p141 = scmp.ne.s32.totalorder %s130, %s133
      %p142 = scmp.eq.s32.totalorder %s20, 15
      %p143 = por %p141, %p142
      %p144 = scmp.ne.s32.totalorder %s133, %s134
      %p145 = scmp.eq.s32.totalorder %s20, 0
      %p146 = por %p144, %p145
      %p147 = scmp.ne.s32.totalorder %s133, %s134
      %p148 = scmp.eq.s32.totalorder %s21, 15
      %p149 = por %p147, %p148
      %p151 = scmp.ne.s32.totalorder %s134, %s150
      %p152 = scmp.eq.s32.totalorder %s21, 0
      %p153 = por %p151, %p152
      %s154 = ssub.s32 %s22, %s34
      %p155 = scmp.eq.s32.totalorder %s154, 0
      %s157 = sadd.s32 %s156, 1
      %s158 = scalar_select %p155, %s156, %s157
      %p161 = pneg %p155
      %p162 = scmp.eq.s32.totalorder %s15, 15
      %p163 = por %p161, %p162
      %p164 = scmp.ne.s32.totalorder %s156, %s159
      %p165 = scmp.eq.s32.totalorder %s15, 0
      %p166 = por %p164, %p165
      %p167 = scmp.ne.s32.totalorder %s156, %s159
      %p168 = scmp.eq.s32.totalorder %s20, 15
      %p169 = por %p167, %p168
      %p170 = scmp.ne.s32.totalorder %s159, %s160
      %p171 = scmp.eq.s32.totalorder %s20, 0
      %p172 = por %p170, %p171
      %p173 = scmp.ne.s32.totalorder %s159, %s160
      %p174 = scmp.eq.s32.totalorder %s21, 15
      %p175 = por %p173, %p174
      %p177 = scmp.ne.s32.totalorder %s160, %s176
      %p178 = scmp.eq.s32.totalorder %s21, 0
      %p179 = por %p177, %p178
      %p180 = scmp.le.s32.totalorder 1, %s15
      %p181 = scmp.lt.s32.totalorder %s15, 17
      %p182 = pnand %p180, %p181
      %p183 = pneg %p182
      // Predicated region
      $region9: #{convlstm_forward.2} parent=5 // pred_check
        _
      $region10: #{convlstm_forward.2} parent=5 // pred_check_branch
        %185 = sbr.rel (%p182) target = $region12
      $region11: #{convlstm_forward.2} parent=5 // pred_region
        %s186 = ssub.s32 %s15, 1
        // Predicated region
        $region13: #{convlstm_forward.2} parent=11 // pred_check
          %p187 = pneg %p76
        $region14: #{convlstm_forward.2} parent=11 // pred_check_branch
          %189 = sbr.rel (%p187) target = $region16
        $region15: #{convlstm_forward.2} parent=11 // pred_region
          _
        $region16: #{convlstm_forward.2} parent=11 // pred_fallthru
          _
        // Predicated region
        $region17: #{convlstm_forward.2} parent=11 // pred_check
          %p190 = pneg %p97
        $region18: #{convlstm_forward.2} parent=11 // pred_check_branch
          %192 = sbr.rel (%p190) target = $region20
        $region19: #{convlstm_forward.2} parent=11 // pred_region
          _
        $region20: #{convlstm_forward.2} parent=11 // pred_fallthru
          _
        // Predicated region
        $region21: #{convlstm_forward.2} parent=11 // pred_check
          %p193 = pneg %p118
        $region22: #{convlstm_forward.2} parent=11 // pred_check_branch
          %195 = sbr.rel (%p193) target = $region24
        $region23: #{convlstm_forward.2} parent=11 // pred_region
          _
        $region24: #{convlstm_forward.2} parent=11 // pred_fallthru
          _
      $region12: #{convlstm_forward.2} parent=5 // pred_fallthru
        _
      %p196 = scmp.lt.s32.totalorder %s15, 16
      // Predicated region
      $region25: #{convlstm_forward.2} parent=5 // pred_check
        %p197 = pneg %p196
      $region26: #{convlstm_forward.2} parent=5 // pred_check_branch
        %199 = sbr.rel (%p197) target = $region28
      $region27: #{convlstm_forward.2} parent=5 // pred_region
        // Predicated region
        $region29: #{convlstm_forward.2} parent=27 // pred_check
          %p200 = pneg %p49
        $region30: #{convlstm_forward.2} parent=27 // pred_check_branch
          %202 = sbr.rel (%p200) target = $region32
        $region31: #{convlstm_forward.2} parent=27 // pred_region
          %p203 = scmp.lt.s32.totalorder %s22, 1
          %s204 = scalar_select %p203, %s22, 1
          %p205 = scmp.lt.s32.totalorder %s23, 7
          %s206 = scalar_select %p205, %s23, 7
          %s207 = smul.addr %s206, 2
          %s208 = smul.addr %s204, 16
          %s209 = sadd.s32 %s207, %s208
          %s210 = smul.addr %s209, 8
          %s211 = scalar_lea.vmem %s0, %s210
        $region32: #{convlstm_forward.2} parent=27 // pred_fallthru
          _
      $region28: #{convlstm_forward.2} parent=5 // pred_fallthru
        _
      %p212 = scmp.le.s32.totalorder 1, %s15
      %p213 = scmp.lt.s32.totalorder %s15, 17
      %p214 = pnand %p212, %p213
      %p215 = pneg %p214
      // Predicated region
      $region33: #{convlstm_forward.2} parent=5 // pred_check
        _
      $region34: #{convlstm_forward.2} parent=5 // pred_check_branch
        %217 = sbr.rel (%p214) target = $region36
      $region35: #{convlstm_forward.2} parent=5 // pred_region
        %s218 = ssub.s32 %s15, 1
        %p219 = scmp.lt.s32.totalorder %s24, 1
        %s220 = scalar_select %p219, %s24, 1
        %p221 = scmp.lt.s32.totalorder %s25, 7
        %s222 = scalar_select %p221, %s25, 7
        %s223 = smul.addr %s222, 2
        %s224 = smul.addr %s220, 16
        %s225 = sadd.s32 %s223, %s224
        %s226 = smul.addr %s225, 8
        %s227 = scalar_lea.vmem %s0, %s226
        %p228 = pneg %p55
        %p229 = pneg %p52
        %p230 = pneg %p76
        %p231 = pneg %p73
        %p232 = pneg %p97
        %p233 = pneg %p94
        %p234 = pneg %p118
        %p235 = pneg %p115
        %p236 = pneg %p146
        %p237 = pneg %p143
        %p238 = scmp.lt.s32.totalorder %s24, 1
        %s239 = scalar_select %p238, %s24, 1
        %p240 = scmp.lt.s32.totalorder %s25, 7
        %s241 = scalar_select %p240, %s25, 7
        %s242 = smul.addr %s241, 2
        %s243 = smul.addr %s239, 16
        %s244 = sadd.s32 %s242, %s243
        %s245 = smul.addr %s244, 8
        %s246 = scalar_lea.vmem %s4, %s245
        %p247 = pneg %p172
        %p248 = pneg %p169
        %s249 = sand.u32 %s159, 1
        %s250 = scalar_lea.sflag [#allocation5], %s249
        %s251 = sand.u32 %s159, 1
        %s252 = smul.addr %s251, 16
        %s253 = scalar_lea.vmem [#allocation4], %s252
        %p254 = scmp.lt.s32.totalorder %s24, 1
        %s255 = scalar_select %p254, %s24, 1
        %p256 = scmp.lt.s32.totalorder %s25, 7
        %s257 = scalar_select %p256, %s25, 7
        %s258 = smul.addr %s257, 2
        %s259 = smul.addr %s255, 16
        %s260 = sadd.s32 %s258, %s259
        %s261 = smul.addr %s260, 8
        %s262 = scalar_lea.vmem %s0, %s261
        %p263 = scmp.lt.s32.totalorder %s24, 1
        %s264 = scalar_select %p263, %s24, 1
        %p265 = scmp.lt.s32.totalorder %s25, 7
        %s266 = scalar_select %p265, %s25, 7
        %s267 = smul.addr %s266, 2
        %s268 = smul.addr %s264, 16
        %s269 = sadd.s32 %s267, %s268
        %s270 = smul.addr %s269, 8
        %s271 = scalar_lea.vmem %s4, %s270
        %p272 = scmp.eq.s32.totalorder %s25, 0
        // Predicated region
        $region37: #{convlstm_forward.2} parent=35 // pred_check
          %p273 = pneg %p272
        $region38: #{convlstm_forward.2} parent=35 // pred_check_branch
          %275 = sbr.rel (%p273) target = $region40
        $region39: #{convlstm_forward.2} parent=35 // pred_region
          %276 = vst [vmem:[#allocation2] sm:$0xff] 0.0
          %277 = vst [vmem:[#allocation2 + $0x8] sm:$0xff] 0.0
          %278 = vst [vmem:[%s253] sm:$0xff] 0.0
          %279 = vst [vmem:[%s253 + $0x8] sm:$0xff] 0.0
        $region40: #{convlstm_forward.2} parent=35 // pred_fallthru
          _
        %v280 = vld [vmem:[%s3] sm:$0xff]
        %v281 = vld [vmem:[%s3 + $0x8] sm:$0xff]
        %v282 = vld [vmem:[%s3 + $0x10] sm:$0x1]
        %v283 = vld [vmem:[%s3 + $0x18] sm:$0x1]
        %v284 = vld [vmem:[%s262] sm:$0xff]
        %v285 = vld [vmem:[%s262 + $0x8] sm:$0xff]
        %v286 = vld [vmem:[#allocation2] sm:$0xff]
        %v287 = vld [vmem:[#allocation2 + $0x8] sm:$0xff]
        %289 = vrot.lane.b32.xlu0 %v285, 17
        %v290 = vpop.permute.xlu0 %289
        %293 = vrot.lane.b32.xlu0 %v284, 17
        %v294 = vpop.permute.xlu0 %293
        %vm295 = vcmask 138240
        %v296 = vsel %vm295, %v294, %v290
        %v299 = vsel %vm295, %v290, %v294
        %v300 = vperm.slane %v280, 0
        %v301 = vperm.slane %v281, 0
        %v302 = vmul.f32 %v299, %v300
        %v303 = vmul.f32 %v296, %v301
        %304 = vst [vmem:[#allocation3] sm:$0xff] %v302
        %305 = vst [vmem:[#allocation3 + $0x8] sm:$0xff] %v303
        %307 = vrot.lane.b32.xlu0 %v287, 17
        %v308 = vpop.permute.xlu0 %307
        %311 = vrot.lane.b32.xlu0 %v286, 17
        %v312 = vpop.permute.xlu0 %311
        %v313 = vsel %vm295, %v312, %v308
        %v316 = vsel %vm295, %v308, %v312
        %v317 = vmul.f32 %v316, %v300
        %v318 = vmul.f32 %v313, %v301
        %319 = vst [vmem:[#allocation3 + $0x90] sm:$0xff] %v317
        %320 = vst [vmem:[#allocation3 + $0x98] sm:$0xff] %v318
        %321 = vrot.lane.b32.xlu0 %v285, 16
        %v322 = vpop.permute.xlu0 %321
        %324 = vrot.lane.b32.xlu0 %v284, 16
        %v325 = vpop.permute.xlu0 %324
        %vm326 = vcmask 130048
        %v327 = vsel %vm326, %v325, %v322
        %v330 = vsel %vm326, %v322, %v325
        %v331 = vperm.slane %v280, 1
        %v332 = vperm.slane %v281, 1
        %v333 = vmul.f32 %v330, %v331
        %v334 = vmul.f32 %v327, %v332
        %335 = vst [vmem:[#allocation3 + $0x10] sm:$0xff] %v333
        %336 = vst [vmem:[#allocation3 + $0x18] sm:$0xff] %v334
        %337 = vrot.lane.b32.xlu0 %v287, 16
        %v338 = vpop.permute.xlu0 %337
        %340 = vrot.lane.b32.xlu0 %v286, 16
        %v341 = vpop.permute.xlu0 %340
        %v342 = vsel %vm326, %v341, %v338
        %v345 = vsel %vm326, %v338, %v341
        %v346 = vmul.f32 %v345, %v331
        %v347 = vmul.f32 %v342, %v332
        %348 = vst [vmem:[#allocation3 + $0xa0] sm:$0xff] %v346
        %349 = vst [vmem:[#allocation3 + $0xa8] sm:$0xff] %v347
        %350 = vrot.lane.b32.xlu0 %v285, 15
        %v351 = vpop.permute.xlu0 %350
        %353 = vrot.lane.b32.xlu0 %v284, 15
        %v354 = vpop.permute.xlu0 %353
        %vm355 = vcmask 121856
        %v356 = vsel %vm355, %v354, %v351
        %v359 = vsel %vm355, %v351, %v354
        %v360 = vperm.slane %v280, 2
        %v361 = vperm.slane %v281, 2
        %v362 = vmul.f32 %v359, %v360
        %v363 = vmul.f32 %v356, %v361
        %364 = vst [vmem:[#allocation3 + $0x20] sm:$0xff] %v362
        %365 = vst [vmem:[#allocation3 + $0x28] sm:$0xff] %v363
        %366 = vrot.lane.b32.xlu0 %v287, 15
        %v367 = vpop.permute.xlu0 %366
        %369 = vrot.lane.b32.xlu0 %v286, 15
        %v370 = vpop.permute.xlu0 %369
        %v371 = vsel %vm355, %v370, %v367
        %v374 = vsel %vm355, %v367, %v370
        %v375 = vmul.f32 %v374, %v360
        %v376 = vmul.f32 %v371, %v361
        %377 = vst [vmem:[#allocation3 + $0xb0] sm:$0xff] %v375
        %378 = vst [vmem:[#allocation3 + $0xb8] sm:$0xff] %v376
        %379 = vrot.lane.b32.xlu0 %v285, 1
        %v380 = vpop.permute.xlu0 %379
        %382 = vrot.lane.b32.xlu0 %v284, 1
        %v383 = vpop.permute.xlu0 %382
        %vm384 = vcmask 7168
        %v385 = vsel %vm384, %v383, %v380
        %v388 = vsel %vm384, %v380, %v383
        %v389 = vperm.slane %v280, 3
        %v390 = vperm.slane %v281, 3
        %v391 = vmul.f32 %v388, %v389
        %v392 = vmul.f32 %v385, %v390
        %393 = vst [vmem:[#allocation3 + $0x30] sm:$0xff] %v391
        %394 = vst [vmem:[#allocation3 + $0x38] sm:$0xff] %v392
        %395 = vrot.lane.b32.xlu0 %v287, 1
        %v396 = vpop.permute.xlu0 %395
        %398 = vrot.lane.b32.xlu0 %v286, 1
        %v399 = vpop.permute.xlu0 %398
        %v400 = vsel %vm384, %v399, %v396
        %v403 = vsel %vm384, %v396, %v399
        %v404 = vmul.f32 %v403, %v389
        %v405 = vmul.f32 %v400, %v390
        %406 = vst [vmem:[#allocation3 + $0xc0] sm:$0xff] %v404
        %407 = vst [vmem:[#allocation3 + $0xc8] sm:$0xff] %v405
        %v408 = vperm.slane %v280, 4
        %v409 = vperm.slane %v281, 4
        %v410 = vmul.f32 %v284, %v408
        %v411 = vmul.f32 %v285, %v409
        %412 = vst [vmem:[#allocation3 + $0x40] sm:$0xff] %v410
        %413 = vst [vmem:[#allocation3 + $0x48] sm:$0xff] %v411
        %v414 = vmul.f32 %v286, %v408
        %v415 = vmul.f32 %v287, %v409
        %416 = vst [vmem:[#allocation3 + $0xd0] sm:$0xff] %v414
        %417 = vst [vmem:[#allocation3 + $0xd8] sm:$0xff] %v415
        %418 = vrot.lane.b32.xlu0 %v284, 127
        %v419 = vpop.permute.xlu0 %418
        %420 = vrot.lane.b32.xlu0 %v285, 127
        %v421 = vpop.permute.xlu0 %420
        %vm422 = vcmask 1039360
        %v423 = vsel %vm422, %v419, %v421
        %v427 = vsel %vm422, %v421, %v419
        %v428 = vperm.slane %v280, 5
        %v429 = vperm.slane %v281, 5
        %v430 = vmul.f32 %v423, %v428
        %v431 = vmul.f32 %v427, %v429
        %432 = vst [vmem:[#allocation3 + $0x50] sm:$0xff] %v430
        %433 = vst [vmem:[#allocation3 + $0x58] sm:$0xff] %v431
        %434 = vrot.lane.b32.xlu0 %v286, 127
        %v435 = vpop.permute.xlu0 %434
        %436 = vrot.lane.b32.xlu0 %v287, 127
        %v437 = vpop.permute.xlu0 %436
        %v438 = vsel %vm422, %v435, %v437
        %v442 = vsel %vm422, %v437, %v435
        %v443 = vmul.f32 %v438, %v428
        %v444 = vmul.f32 %v442, %v429
        %445 = vst [vmem:[#allocation3 + $0xe0] sm:$0xff] %v443
        %446 = vst [vmem:[#allocation3 + $0xe8] sm:$0xff] %v444
        %447 = vrot.lane.b32.xlu0 %v284, 113
        %v448 = vpop.permute.xlu0 %447
        %449 = vrot.lane.b32.xlu0 %v285, 113
        %v450 = vpop.permute.xlu0 %449
        %vm451 = vcmask 924672
        %v452 = vsel %vm451, %v448, %v450
        %v456 = vsel %vm451, %v450, %v448
        %v457 = vperm.slane %v280, 6
        %v458 = vperm.slane %v281, 6
        %v459 = vmul.f32 %v452, %v457
        %v460 = vmul.f32 %v456, %v458
        %461 = vst [vmem:[#allocation3 + $0x60] sm:$0xff] %v459
        %462 = vst [vmem:[#allocation3 + $0x68] sm:$0xff] %v460
        %463 = vrot.lane.b32.xlu0 %v286, 113
        %v464 = vpop.permute.xlu0 %463
        %465 = vrot.lane.b32.xlu0 %v287, 113
        %v466 = vpop.permute.xlu0 %465
        %v467 = vsel %vm451, %v464, %v466
        %v471 = vsel %vm451, %v466, %v464
        %v472 = vmul.f32 %v467, %v457
        %v473 = vmul.f32 %v471, %v458
        %474 = vst [vmem:[#allocation3 + $0xf0] sm:$0xff] %v472
        %475 = vst [vmem:[#allocation3 + $0xf8] sm:$0xff] %v473
        %476 = vrot.lane.b32.xlu0 %v284, 112
        %v477 = vpop.permute.xlu0 %476
        %478 = vrot.lane.b32.xlu0 %v285, 112
        %v479 = vpop.permute.xlu0 %478
        %vm480 = vcmask 916480
        %v481 = vsel %vm480, %v477, %v479
        %v485 = vsel %vm480, %v479, %v477
        %v486 = vperm.slane %v280, 7
        %v487 = vperm.slane %v281, 7
        %v488 = vmul.f32 %v481, %v486
        %v489 = vmul.f32 %v485, %v487
        %490 = vst [vmem:[#allocation3 + $0x70] sm:$0xff] %v488
        %491 = vst [vmem:[#allocation3 + $0x78] sm:$0xff] %v489
        %492 = vrot.lane.b32.xlu0 %v286, 112
        %v493 = vpop.permute.xlu0 %492
        %494 = vrot.lane.b32.xlu0 %v287, 112
        %v495 = vpop.permute.xlu0 %494
        %v496 = vsel %vm480, %v493, %v495
        %v500 = vsel %vm480, %v495, %v493
        %v501 = vmul.f32 %v496, %v486
        %v502 = vmul.f32 %v500, %v487
        %503 = vst [vmem:[#allocation3 + $0x100] sm:$0xff] %v501
        %504 = vst [vmem:[#allocation3 + $0x108] sm:$0xff] %v502
        %505 = vrot.lane.b32.xlu0 %v284, 111
        %v506 = vpop.permute.xlu0 %505
        %507 = vrot.lane.b32.xlu0 %v285, 111
        %v508 = vpop.permute.xlu0 %507
        %vm509 = vcmask 908288
        %v510 = vsel %vm509, %v506, %v508
        %v514 = vsel %vm509, %v508, %v506
        %v515 = vperm.slane %v282, 0
        %v516 = vperm.slane %v283, 0
        %v517 = vmul.f32 %v510, %v515
        %v518 = vmul.f32 %v514, %v516
        %519 = vst [vmem:[#allocation3 + $0x80] sm:$0xff] %v517
        %520 = vst [vmem:[#allocation3 + $0x88] sm:$0xff] %v518
        %521 = vrot.lane.b32.xlu0 %v286, 111
        %v522 = vpop.permute.xlu0 %521
        %523 = vrot.lane.b32.xlu0 %v287, 111
        %v524 = vpop.permute.xlu0 %523
        %v525 = vsel %vm509, %v522, %v524
        %v529 = vsel %vm509, %v524, %v522
        %v530 = vmul.f32 %v525, %v515
        %v531 = vmul.f32 %v529, %v516
        %532 = vst [vmem:[#allocation3 + $0x110] sm:$0xff] %v530
        %533 = vst [vmem:[#allocation3 + $0x118] sm:$0xff] %v531
        %v534 = vld [vmem:[%s1] sm:$0xff]
        %v535 = vld [vmem:[%s1 + $0x8] sm:$0xff]
        %v536 = vld [vmem:[%s1 + $0x10] sm:$0xff]
        %v537 = vld [vmem:[%s1 + $0x18] sm:$0xff]
        %v538 = vld [vmem:[%s1 + $0x20] sm:$0xff]
        %v539 = vld [vmem:[%s1 + $0x28] sm:$0xff]
        %v540 = vld [vmem:[%s1 + $0x30] sm:$0xff]
        %v541 = vld [vmem:[%s1 + $0x38] sm:$0xff]
        %v542 = vld [vmem:[#allocation3] sm:$0xff]
        %v543 = vld [vmem:[#allocation3 + $0x8] sm:$0xff]
        %v544 = vld [vmem:[#allocation3 + $0x10] sm:$0xff]
        %v545 = vld [vmem:[#allocation3 + $0x18] sm:$0xff]
        %v546 = vld [vmem:[#allocation3 + $0x20] sm:$0xff]
        %v547 = vld [vmem:[#allocation3 + $0x28] sm:$0xff]
        %v548 = vld [vmem:[#allocation3 + $0x30] sm:$0xff]
        %v549 = vld [vmem:[#allocation3 + $0x38] sm:$0xff]
        %v550 = vld [vmem:[#allocation3 + $0x40] sm:$0xff]
        %v551 = vld [vmem:[#allocation3 + $0x48] sm:$0xff]
        %v552 = vld [vmem:[#allocation3 + $0x50] sm:$0xff]
        %v553 = vld [vmem:[#allocation3 + $0x58] sm:$0xff]
        %v554 = vld [vmem:[#allocation3 + $0x60] sm:$0xff]
        %v555 = vld [vmem:[#allocation3 + $0x68] sm:$0xff]
        %v556 = vld [vmem:[#allocation3 + $0x70] sm:$0xff]
        %v557 = vld [vmem:[#allocation3 + $0x78] sm:$0xff]
        %v558 = vld [vmem:[#allocation3 + $0x80] sm:$0xff]
        %v559 = vld [vmem:[#allocation3 + $0x88] sm:$0xff]
        %v560 = vld [vmem:[#allocation3 + $0x90] sm:$0xff]
        %v561 = vld [vmem:[#allocation3 + $0x98] sm:$0xff]
        %v562 = vld [vmem:[#allocation3 + $0xa0] sm:$0xff]
        %v563 = vld [vmem:[#allocation3 + $0xa8] sm:$0xff]
        %v564 = vld [vmem:[#allocation3 + $0xb0] sm:$0xff]
        %v565 = vld [vmem:[#allocation3 + $0xb8] sm:$0xff]
        %v566 = vld [vmem:[#allocation3 + $0xc0] sm:$0xff]
        %v567 = vld [vmem:[#allocation3 + $0xc8] sm:$0xff]
        %v568 = vld [vmem:[#allocation3 + $0xd0] sm:$0xff]
        %v569 = vld [vmem:[#allocation3 + $0xd8] sm:$0xff]
        %v570 = vld [vmem:[#allocation3 + $0xe0] sm:$0xff]
        %v571 = vld [vmem:[#allocation3 + $0xe8] sm:$0xff]
        %v572 = vld [vmem:[#allocation3 + $0xf0] sm:$0xff]
        %v573 = vld [vmem:[#allocation3 + $0xf8] sm:$0xff]
        %v574 = vld [vmem:[#allocation3 + $0x100] sm:$0xff]
        %v575 = vld [vmem:[#allocation3 + $0x108] sm:$0xff]
        %v576 = vld [vmem:[#allocation3 + $0x110] sm:$0xff]
        %v577 = vld [vmem:[#allocation3 + $0x118] sm:$0xff]
        %v578 = vld [vmem:[%s2] sm:$0xff]
        %v579 = vld [vmem:[%s2 + $0x8] sm:$0xff]
        %v580 = vld [vmem:[%s2 + $0x10] sm:$0xff]
        %v581 = vld [vmem:[%s2 + $0x18] sm:$0xff]
        %583 = vset.pattern.permute.xlu0 0
        %584 = vperm.xlu0 %583, %v578
        %v585 = vpop.permute.xlu0 %584
        %588 = vset.pattern.permute.xlu0 0
        %589 = vperm.xlu0 %588, %v579
        %v590 = vpop.permute.xlu0 %589
        %593 = vset.pattern.permute.xlu0 0
        %594 = vperm.xlu0 %593, %v580
        %v595 = vpop.permute.xlu0 %594
        %598 = vset.pattern.permute.xlu0 0
        %599 = vperm.xlu0 %598, %v581
        %v600 = vpop.permute.xlu0 %599
        %v603 = vsel %vm326, %v535, 0
        %v606 = vsel %vm326, %v537, 0
        %v609 = vsel %vm326, %v539, 0
        %v612 = vsel %vm326, %v541, 0
        %614 = vmatpush.msra.mxu0 %v572
        %615 = vmatpush.msra.mxu0 %v570
        %616 = vmatpush.msra.mxu0 %v568
        %617 = vmatpush.msra.mxu0 %v566
        %618 = vmatpush.msra.mxu0 %v564
        %619 = vmatpush.msra.mxu0 %v562
        %620 = vmatpush.msra.mxu0 %v560
        %621 = vmatpush.msra.mxu0 %v558
        %622 = vmatpush.msra.mxu0 %v556
        %623 = vmatpush.msra.mxu0 %v554
        %624 = vmatpush.msra.mxu0 %v552
        %625 = vmatpush.msra.mxu0 %v550
        %626 = vmatpush.msra.mxu0 %v548
        %627 = vmatpush.msra.mxu0 %v546
        %628 = vmatpush.msra.mxu0 %v544
        %629 = vmatpush.msra.mxu0 %v542
        %630 = vmatmul.f32.gmra.mxu0 %v534
        %v631 = vpop.f32.mrf.mxu0
        %v632 = vadd.f32 %v585, %v631
        %633 = vmatmul.f32.gmra.mxu0 %v536
        %v634 = vpop.f32.mrf.mxu0
        %v635 = vadd.f32 %v590, %v634
        %636 = vmatmul.f32.gmra.mxu0 %v538
        %v637 = vpop.f32.mrf.mxu0
        %v638 = vadd.f32 %v595, %v637
        %639 = vmatmul.f32.gmra.mxu0 %v540
        %v640 = vpop.f32.mrf.mxu0
        %v641 = vadd.f32 %v600, %v640
        %642 = vdwg.mxu0
        %643 = vmatpush.msra.mxu0 0.0
        %644 = vmatpush.msra.mxu0 0.0
        %645 = vmatpush.msra.mxu0 0.0
        %646 = vmatpush.msra.mxu0 0.0
        %647 = vmatpush.msra.mxu0 0.0
        %648 = vmatpush.msra.mxu0 0.0
        %649 = vmatpush.msra.mxu0 0.0
        %650 = vmatpush.msra.mxu0 0.0
        %651 = vmatpush.msra.mxu0 0.0
        %652 = vmatpush.msra.mxu0 0.0
        %653 = vmatpush.msra.mxu0 0.0
        %654 = vmatpush.msra.mxu0 0.0
        %655 = vmatpush.msra.mxu0 0.0
        %656 = vmatpush.msra.mxu0 0.0
        %657 = vmatpush.msra.mxu0 %v576
        %658 = vmatpush.msra.mxu0 %v574
        %659 = vmatmul.f32.gmra.mxu0 %v603
        %v660 = vpop.f32.mrf.mxu0
        %v661 = vadd.f32 %v632, %v660
        %662 = vmatmul.f32.gmra.mxu0 %v606
        %v663 = vpop.f32.mrf.mxu0
        %v664 = vadd.f32 %v635, %v663
        %665 = vmatmul.f32.gmra.mxu0 %v609
        %v666 = vpop.f32.mrf.mxu0
        %v667 = vadd.f32 %v638, %v666
        %668 = vmatmul.f32.gmra.mxu0 %v612
        %v669 = vpop.f32.mrf.mxu0
        %v670 = vadd.f32 %v641, %v669
        %671 = vdwg.mxu0
        %672 = vmatpush.msra.mxu0 %v573
        %673 = vmatpush.msra.mxu0 %v571
        %674 = vmatpush.msra.mxu0 %v569
        %675 = vmatpush.msra.mxu0 %v567
        %676 = vmatpush.msra.mxu0 %v565
        %677 = vmatpush.msra.mxu0 %v563
        %678 = vmatpush.msra.mxu0 %v561
        %679 = vmatpush.msra.mxu0 %v559
        %680 = vmatpush.msra.mxu0 %v557
        %681 = vmatpush.msra.mxu0 %v555
        %682 = vmatpush.msra.mxu0 %v553
        %683 = vmatpush.msra.mxu0 %v551
        %684 = vmatpush.msra.mxu0 %v549
        %685 = vmatpush.msra.mxu0 %v547
        %686 = vmatpush.msra.mxu0 %v545
        %687 = vmatpush.msra.mxu0 %v543
        %688 = vmatmul.f32.gmra.mxu0 %v534
        %v689 = vpop.f32.mrf.mxu0
        %v690 = vadd.f32 %v585, %v689
        %691 = vmatmul.f32.gmra.mxu0 %v536
        %v692 = vpop.f32.mrf.mxu0
        %v693 = vadd.f32 %v590, %v692
        %694 = vmatmul.f32.gmra.mxu0 %v538
        %v695 = vpop.f32.mrf.mxu0
        %v696 = vadd.f32 %v595, %v695
        %697 = vmatmul.f32.gmra.mxu0 %v540
        %v698 = vpop.f32.mrf.mxu0
        %v699 = vadd.f32 %v600, %v698
        %700 = vdwg.mxu0
        %701 = vmatpush.msra.mxu0 0.0
        %702 = vmatpush.msra.mxu0 0.0
        %703 = vmatpush.msra.mxu0 0.0
        %704 = vmatpush.msra.mxu0 0.0
        %705 = vmatpush.msra.mxu0 0.0
        %706 = vmatpush.msra.mxu0 0.0
        %707 = vmatpush.msra.mxu0 0.0
        %708 = vmatpush.msra.mxu0 0.0
        %709 = vmatpush.msra.mxu0 0.0
        %710 = vmatpush.msra.mxu0 0.0
        %711 = vmatpush.msra.mxu0 0.0
        %712 = vmatpush.msra.mxu0 0.0
        %713 = vmatpush.msra.mxu0 0.0
        %714 = vmatpush.msra.mxu0 0.0
        %715 = vmatpush.msra.mxu0 %v577
        %716 = vmatpush.msra.mxu0 %v575
        %717 = vmatmul.f32.gmra.mxu0 %v603
        %v718 = vpop.f32.mrf.mxu0
        %v719 = vadd.f32 %v690, %v718
        %720 = vmatmul.f32.gmra.mxu0 %v606
        %v721 = vpop.f32.mrf.mxu0
        %v722 = vadd.f32 %v693, %v721
        %723 = vmatmul.f32.gmra.mxu0 %v609
        %v724 = vpop.f32.mrf.mxu0
        %v725 = vadd.f32 %v696, %v724
        %726 = vmatmul.f32.gmra.mxu0 %v612
        %v727 = vpop.f32.mrf.mxu0
        %v728 = vadd.f32 %v699, %v727
        %729 = vdwg.mxu0
        %v730 = vxor.u32 %v661, 2147483648
        %v731 = vxor.u32 %v719, 2147483648
        %v732 = vxor.u32 %v664, 2147483648
        %v733 = vxor.u32 %v722, 2147483648
        %v734 = vxor.u32 %v667, 2147483648
        %v735 = vxor.u32 %v725, 2147483648
        %v736 = vmul.f32 %v730, 1.442695
        %v737 = vpow.pop %v736
        %v738 = vmul.f32 %v731, 1.442695
        %v739 = vpow.pop %v738
        %v740 = vmul.f32 %v732, 1.442695
        %v741 = vpow.pop %v740
        %v742 = vmul.f32 %v733, 1.442695
        %v743 = vpow.pop %v742
        %v744 = vmul.f32 %v734, 1.442695
        %v745 = vpow.pop %v744
        %v746 = vmul.f32 %v735, 1.442695
        %v747 = vpow.pop %v746
        %v748 = vadd.f32 %v737, 1.0
        %v749 = vadd.f32 %v739, 1.0
        %v750 = vadd.f32 %v741, 1.0
        %v751 = vadd.f32 %v743, 1.0
        %v752 = vadd.f32 %v745, 1.0
        %v753 = vadd.f32 %v747, 1.0
        %v754 = vrcp.pop %v748
        %v755 = vmul.f32 %v748, %v754
        %v756 = vsub.f32 1.0, %v755
        %v757 = vmul.f32 %v754, %v756
        %v758 = vadd.f32 %v754, %v757
        %vm759 = vweird.f32 %v748
        %vm760 = vweird.f32 %v754
        %vm761 = vmor %vm759, %vm760
        %v762 = vsel %vm761, %v754, %v758
        %v763 = vand.u32 2147483647, %v748
        %vm764 = vcmp.eq.f32.partialorder %v763, 8.507059e+37
        %v765 = vand.u32 %v748, 2147483648
        %v766 = vor.u32 1.1754944e-38, %v765
        %v767 = vsel %vm764, %v766, %v762
        %v768 = vmul.f32 1.0, %v767
        %v769 = vrcp.pop %v749
        %v770 = vmul.f32 %v749, %v769
        %v771 = vsub.f32 1.0, %v770
        %v772 = vmul.f32 %v769, %v771
        %v773 = vadd.f32 %v769, %v772
        %vm774 = vweird.f32 %v749
        %vm775 = vweird.f32 %v769
        %vm776 = vmor %vm774, %vm775
        %v777 = vsel %vm776, %v769, %v773
        %v778 = vand.u32 2147483647, %v749
        %vm779 = vcmp.eq.f32.partialorder %v778, 8.507059e+37
        %v780 = vand.u32 %v749, 2147483648
        %v781 = vor.u32 1.1754944e-38, %v780
        %v782 = vsel %vm779, %v781, %v777
        %v783 = vmul.f32 1.0, %v782
        %v784 = vrcp.pop %v750
        %v785 = vmul.f32 %v750, %v784
        %v786 = vsub.f32 1.0, %v785
        %v787 = vmul.f32 %v784, %v786
        %v788 = vadd.f32 %v784, %v787
        %vm789 = vweird.f32 %v750
        %vm790 = vweird.f32 %v784
        %vm791 = vmor %vm789, %vm790
        %v792 = vsel %vm791, %v784, %v788
        %v793 = vand.u32 2147483647, %v750
        %vm794 = vcmp.eq.f32.partialorder %v793, 8.507059e+37
        %v795 = vand.u32 %v750, 2147483648
        %v796 = vor.u32 1.1754944e-38, %v795
        %v797 = vsel %vm794, %v796, %v792
        %v798 = vmul.f32 1.0, %v797
        %v799 = vrcp.pop %v751
        %v800 = vmul.f32 %v751, %v799
        %v801 = vsub.f32 1.0, %v800
        %v802 = vmul.f32 %v799, %v801
        %v803 = vadd.f32 %v799, %v802
        %vm804 = vweird.f32 %v751
        %vm805 = vweird.f32 %v799
        %vm806 = vmor %vm804, %vm805
        %v807 = vsel %vm806, %v799, %v803
        %v808 = vand.u32 2147483647, %v751
        %vm809 = vcmp.eq.f32.partialorder %v808, 8.507059e+37
        %v810 = vand.u32 %v751, 2147483648
        %v811 = vor.u32 1.1754944e-38, %v810
        %v812 = vsel %vm809, %v811, %v807
        %v813 = vmul.f32 1.0, %v812
        %v814 = vrcp.pop %v752
        %v815 = vmul.f32 %v752, %v814
        %v816 = vsub.f32 1.0, %v815
        %v817 = vmul.f32 %v814, %v816
        %v818 = vadd.f32 %v814, %v817
        %vm819 = vweird.f32 %v752
        %vm820 = vweird.f32 %v814
        %vm821 = vmor %vm819, %vm820
        %v822 = vsel %vm821, %v814, %v818
        %v823 = vand.u32 2147483647, %v752
        %vm824 = vcmp.eq.f32.partialorder %v823, 8.507059e+37
        %v825 = vand.u32 %v752, 2147483648
        %v826 = vor.u32 1.1754944e-38, %v825
        %v827 = vsel %vm824, %v826, %v822
        %v828 = vmul.f32 1.0, %v827
        %v829 = vrcp.pop %v753
        %v830 = vmul.f32 %v753, %v829
        %v831 = vsub.f32 1.0, %v830
        %v832 = vmul.f32 %v829, %v831
        %v833 = vadd.f32 %v829, %v832
        %vm834 = vweird.f32 %v753
        %vm835 = vweird.f32 %v829
        %vm836 = vmor %vm834, %vm835
        %v837 = vsel %vm836, %v829, %v833
        %v838 = vand.u32 2147483647, %v753
        %vm839 = vcmp.eq.f32.partialorder %v838, 8.507059e+37
        %v840 = vand.u32 %v753, 2147483648
        %v841 = vor.u32 1.1754944e-38, %v840
        %v842 = vsel %vm839, %v841, %v837
        %v843 = vmul.f32 1.0, %v842
        %v844 = vtanh.pop %v670
        %v845 = vtanh.pop %v728
        %v846 = vld [vmem:[%s253] sm:$0xff]
        %v847 = vld [vmem:[%s253 + $0x8] sm:$0xff]
        %v848 = vmul.f32 %v798, %v846
        %v849 = vmul.f32 %v813, %v847
        %v850 = vmul.f32 %v768, %v844
        %v851 = vmul.f32 %v783, %v845
        %v852 = vadd.f32 %v848, %v850
        %v853 = vadd.f32 %v849, %v851
        %v854 = vtanh.pop %v852
        %v855 = vtanh.pop %v853
        %v856 = vmul.f32 %v828, %v854
        %v857 = vmul.f32 %v843, %v855
        %858 = vst [vmem:[%s253] sm:$0xff] %v852
        %859 = vst [vmem:[%s253 + $0x8] sm:$0xff] %v853
        %860 = vst [vmem:[%s271] sm:$0xff] %v856
        %861 = vst [vmem:[%s271 + $0x8] sm:$0xff] %v857
        %862 = vst [vmem:[#allocation2] sm:$0xff] %v856
        %863 = vst [vmem:[#allocation2 + $0x8] sm:$0xff] %v857
        %p864 = scmp.lt.s32.totalorder %s24, 1
        %s865 = scalar_select %p864, %s24, 1
        %p866 = scmp.lt.s32.totalorder %s25, 7
        %s867 = scalar_select %p866, %s25, 7
        %s868 = smul.addr %s867, 2
        %s869 = smul.addr %s865, 16
        %s870 = sadd.s32 %s868, %s869
        %s871 = smul.addr %s870, 8
        %s872 = scalar_lea.vmem %s4, %s871
        %s873 = sand.u32 %s159, 1
        %s874 = scalar_lea.sflag [#allocation5], %s873
        %s875 = sand.u32 %s159, 1
        %s876 = smul.addr %s875, 16
        %s877 = scalar_lea.vmem [#allocation4], %s876
        // Predicated region
        $region41: #{convlstm_forward.2} parent=35 // pred_check
          %p878 = pneg %p143
        $region42: #{convlstm_forward.2} parent=35 // pred_check_branch
          %880 = sbr.rel (%p878) target = $region44
        $region43: #{convlstm_forward.2} parent=35 // pred_region
          _
        $region44: #{convlstm_forward.2} parent=35 // pred_fallthru
          _
        // Predicated region
        $region45: #{convlstm_forward.2} parent=35 // pred_check
          %p881 = pneg %p169
        $region46: #{convlstm_forward.2} parent=35 // pred_check_branch
          %883 = sbr.rel (%p881) target = $region48
        $region47: #{convlstm_forward.2} parent=35 // pred_region
          %885 = vsyncadd %s874, 0
          %s886 = smul.addr %s24, 2
          %s887 = smul.addr %s886, 8
          %s888 = scalar_lea.hbm %s5, %s887
          %s890 = sshll.u32 %s877, 4
          %s891 = int_to_ptr.vmem [resolvable:$true] %s890
          %s892 = sshll.u32 %s888, 4
          %s893 = int_to_ptr.hbm [resolvable:$true] %s892
          %895 = dma.vmem_to_hbm [thread:$0]  %s891, 256, %s893, %s874
        $region48: #{convlstm_forward.2} parent=35 // pred_fallthru
          _
      $region36: #{convlstm_forward.2} parent=5 // pred_fallthru
        _
      %p896 = scmp.le.s32.totalorder 2, %s15
      // Predicated region
      $region49: #{convlstm_forward.2} parent=5 // pred_check
        %p897 = pneg %p896
      $region50: #{convlstm_forward.2} parent=5 // pred_check_branch
        %899 = sbr.rel (%p897) target = $region52
      $region51: #{convlstm_forward.2} parent=5 // pred_region
        %s900 = ssub.s32 %s15, 2
        // Predicated region
        $region53: #{convlstm_forward.2} parent=51 // pred_check
          %p901 = pneg %p149
        $region54: #{convlstm_forward.2} parent=51 // pred_check_branch
          %903 = sbr.rel (%p901) target = $region56
        $region55: #{convlstm_forward.2} parent=51 // pred_region
          %p904 = scmp.lt.s32.totalorder %s26, 1
          %s905 = scalar_select %p904, %s26, 1
          %p906 = scmp.lt.s32.totalorder %s27, 7
          %s907 = scalar_select %p906, %s27, 7
          %s908 = smul.addr %s907, 2
          %s909 = smul.addr %s905, 16
          %s910 = sadd.s32 %s908, %s909
          %s911 = smul.addr %s910, 8
          %s912 = scalar_lea.vmem %s4, %s911
        $region56: #{convlstm_forward.2} parent=51 // pred_fallthru
          _
        // Predicated region
        $region57: #{convlstm_forward.2} parent=51 // pred_check
          %p913 = pneg %p175
        $region58: #{convlstm_forward.2} parent=51 // pred_check_branch
          %915 = sbr.rel (%p913) target = $region60
        $region59: #{convlstm_forward.2} parent=51 // pred_region
          %s916 = sand.u32 %s160, 1
          %s917 = scalar_lea.sflag [#allocation5], %s916
          %s918 = sand.u32 %s160, 1
          %s919 = smul.addr %s918, 16
          %s920 = scalar_lea.vmem [#allocation4], %s919
          %922 = dma.done %s917, 256
        $region60: #{convlstm_forward.2} parent=51 // pred_fallthru
          _
      $region52: #{convlstm_forward.2} parent=5 // pred_fallthru
        _
    $region6: #{convlstm_forward.2} parent=1 // loop_footer
      %s19 = sadd.s32 1, %s15
    $region7: #{convlstm_forward.2} parent=1 // loop_footer_branch
      %14 = sbr.rel target = $region3
    $region8: #{convlstm_forward.2} parent=1 // loop_exit
      _
    %923 = vsyncpa [#allocation5], 1
    %s924 = scalar_lea.sflag [#allocation5], 1
    %925 = vsyncpa %s924, 1

// kernel: convlstm_forward.3
$region0: #{convlstm_forward.3}
  #allocation0 [shape = 'u32[]', space=smem, size = 0x4, offset = 0x4, fixed_abs, tag = 'smem constant byte address 0x4 - core index']
  #allocation1 [shape = 'u32[72,128]{1,0:T(1,128)}', space=vmem, size = 0x9000, scoped, tag = 'internal scratch']
  #allocation2 [shape = 'f32[16,256]{1,0:T(8,128)}', space=vmem, size = 0x4000, scoped, tag = 'scratch operand']
  #allocation3 [shape = 'f32[216,256]{1,0:T(8,128)}', space=vmem, size = 0x36000, scoped, tag = 'scratch operand']
  %s0 = inlined_call_operand.vmem [shape: f32[2,8,8,256], index: 0, kind: input, shape index: {}]
  %s1 = inlined_call_operand.vmem [shape: f32[64,216], index: 1, kind: input, shape index: {}]
  %s2 = inlined_call_operand.vmem [shape: f32[64,1], index: 2, kind: input, shape index: {}]
  %s3 = inlined_call_operand.vmem [shape: f32[9,256], index: 3, kind: input, shape index: {}]
  %s4 = inlined_call_operand.vmem [shape: f32[2,8,16,256], index: 4, kind: output, shape index: {0}]
  %s5 = inlined_call_operand.vmem [shape: f32[2,16,256], index: 5, kind: output, shape index: {1}]
  %6 = xla_tuple %s4, %s5
  %s7 = sld [smem:[#allocation0]]
  $region61: #{convlstm_forward.3} parent=0
    _
  %s9 = ssub.s32 1, %s7
  %s10 = scalar_select 0, %s9, %s7
  loop: start=0, step=1, limit=18
  $region2: #{convlstm_forward.3} parent=0 // loop_pre_header
    _
  $region3: #{convlstm_forward.3} parent=0 // loop_header
    %s12 = sphi 0, %s16
    %p13 = scmp.ge.s32.totalorder %s12, 18
    %s19 = sphi 0, %s31
    %s20 = sphi 0, %s27
    %s21 = sphi 0, %s19
    %s22 = sphi 0, %s20
    %s23 = sphi 0, %s21
    %s24 = sphi 0, %s22
    %s36 = sphi 0, %s38
    %s39 = sphi 0, %s36
    %s40 = sphi 0, %s39
    %s56 = sphi 0, %s40
    %s60 = sphi 0, %s60
    %s62 = sphi 0, %s60
    %s63 = sphi 0, %s62
    %s77 = sphi 0, %s63
    %s81 = sphi 0, %s81
    %s83 = sphi 0, %s81
    %s84 = sphi 0, %s83
    %s98 = sphi 0, %s84
    %s102 = sphi 0, %s102
    %s104 = sphi 0, %s102
    %s105 = sphi 0, %s104
    %s119 = sphi 0, %s105
    %s127 = sphi 0, %s129
    %s130 = sphi 0, %s127
    %s131 = sphi 0, %s130
    %s147 = sphi 0, %s131
    %s153 = sphi 0, %s155
    %s156 = sphi 0, %s153
    %s157 = sphi 0, %s156
    %s173 = sphi 0, %s157
  $region4: #{convlstm_forward.3} parent=0 // loop_header_branch
    %15 = sbr.rel (%p13) target = $region8
  $region5: #{convlstm_forward.3} parent=0 // loop_body
    %s17 = ssub.s32 %s12, 1
    %s18 = ssub.s32 %s12, 2
    %s25 = sadd.s32 1, %s20
    %p26 = scmp.ge.s32.totalorder %s25, 8
    %s27 = scalar_select %p26, 0, %s25
    %s28 = sadd.s32 1, %s19
    %s29 = scalar_select %p26, %s28, %s19
    %p30 = scmp.ge.s32.totalorder %s29, 2
    %s31 = scalar_select %p30, 0, %s29
    %s32 = ssub.s32 %s19, %s31
    %s33 = ssub.s32 %s20, %s27
    %s34 = sor.u32 %s32, %s33
    %p35 = scmp.eq.s32.totalorder %s34, 0
    %s37 = sadd.s32 %s36, 1
    %s38 = scalar_select %p35, %s36, %s37
    %p41 = pneg %p35
    %p42 = scmp.eq.s32.totalorder %s12, 15
    %p43 = por %p41, %p42
    %p44 = scmp.ne.s32.totalorder %s36, %s39
    %p45 = scmp.eq.s32.totalorder %s12, 0
    %p46 = por %p44, %p45
    %p47 = scmp.ne.s32.totalorder %s36, %s39
    %p48 = scmp.eq.s32.totalorder %s17, 15
    %p49 = por %p47, %p48
    %p50 = scmp.ne.s32.totalorder %s39, %s40
    %p51 = scmp.eq.s32.totalorder %s17, 0
    %p52 = por %p50, %p51
    %p53 = scmp.ne.s32.totalorder %s39, %s40
    %p54 = scmp.eq.s32.totalorder %s18, 15
    %p55 = por %p53, %p54
    %p57 = scmp.ne.s32.totalorder %s40, %s56
    %p58 = scmp.eq.s32.totalorder %s18, 0
    %p59 = por %p57, %p58
    %s61 = sadd.s32 %s60, 1
    %p64 = scmp.eq.s32.totalorder %s12, 15
    %p65 = scmp.ne.s32.totalorder %s60, %s62
    %p66 = scmp.eq.s32.totalorder %s12, 0
    %p67 = por %p65, %p66
    %p68 = scmp.ne.s32.totalorder %s60, %s62
    %p69 = scmp.eq.s32.totalorder %s17, 15
    %p70 = por %p68, %p69
    %p71 = scmp.ne.s32.totalorder %s62, %s63
    %p72 = scmp.eq.s32.totalorder %s17, 0
    %p73 = por %p71, %p72
    %p74 = scmp.ne.s32.totalorder %s62, %s63
    %p75 = scmp.eq.s32.totalorder %s18, 15
    %p76 = por %p74, %p75
    %p78 = scmp.ne.s32.totalorder %s63, %s77
    %p79 = scmp.eq.s32.totalorder %s18, 0
    %p80 = por %p78, %p79
    %s82 = sadd.s32 %s81, 1
    %p85 = scmp.eq.s32.totalorder %s12, 15
    %p86 = scmp.ne.s32.totalorder %s81, %s83
    %p87 = scmp.eq.s32.totalorder %s12, 0
    %p88 = por %p86, %p87
    %p89 = scmp.ne.s32.totalorder %s81, %s83
    %p90 = scmp.eq.s32.totalorder %s17, 15
    %p91 = por %p89, %p90
    %p92 = scmp.ne.s32.totalorder %s83, %s84
    %p93 = scmp.eq.s32.totalorder %s17, 0
    %p94 = por %p92, %p93
    %p95 = scmp.ne.s32.totalorder %s83, %s84
    %p96 = scmp.eq.s32.totalorder %s18, 15
    %p97 = por %p95, %p96
    %p99 = scmp.ne.s32.totalorder %s84, %s98
    %p100 = scmp.eq.s32.totalorder %s18, 0
    %p101 = por %p99, %p100
    %s103 = sadd.s32 %s102, 1
    %p106 = scmp.eq.s32.totalorder %s12, 15
    %p107 = scmp.ne.s32.totalorder %s102, %s104
    %p108 = scmp.eq.s32.totalorder %s12, 0
    %p109 = por %p107, %p108
    %p110 = scmp.ne.s32.totalorder %s102, %s104
    %p111 = scmp.eq.s32.totalorder %s17, 15
    %p112 = por %p110, %p111
    %p113 = scmp.ne.s32.totalorder %s104, %s105
    %p114 = scmp.eq.s32.totalorder %s17, 0
    %p115 = por %p113, %p114
    %p116 = scmp.ne.s32.totalorder %s104, %s105
    %p117 = scmp.eq.s32.totalorder %s18, 15
    %p118 = por %p116, %p117
    %p120 = scmp.ne.s32.totalorder %s105, %s119
    %p121 = scmp.eq.s32.totalorder %s18, 0
    %p122 = por %p120, %p121
    %s123 = ssub.s32 %s19, %s31
    %s124 = ssub.s32 %s20, %s27
    %s125 = sor.u32 %s123, %s124
    %p126 = scmp.eq.s32.totalorder %s125, 0
    %s128 = sadd.s32 %s127, 1
    %s129 = scalar_select %p126, %s127, %s128
    %p132 = pneg %p126
    %p133 = scmp.eq.s32.totalorder %s12, 15
    %p134 = por %p132, %p133
    %p135 = scmp.ne.s32.totalorder %s127, %s130
    %p136 = scmp.eq.s32.totalorder %s12, 0
    %p137 = por %p135, %p136
    %p138 = scmp.ne.s32.totalorder %s127, %s130
    %p139 = scmp.eq.s32.totalorder %s17, 15
    %p140 = por %p138, %p139
    %p141 = scmp.ne.s32.totalorder %s130, %s131
    %p142 = scmp.eq.s32.totalorder %s17, 0
    %p143 = por %p141, %p142
    %p144 = scmp.ne.s32.totalorder %s130, %s131
    %p145 = scmp.eq.s32.totalorder %s18, 15
    %p146 = por %p144, %p145
    %p148 = scmp.ne.s32.totalorder %s131, %s147
    %p149 = scmp.eq.s32.totalorder %s18, 0
    %p150 = por %p148, %p149
    %s151 = ssub.s32 %s19, %s31
    %p152 = scmp.eq.s32.totalorder %s151, 0
    %s154 = sadd.s32 %s153, 1
    %s155 = scalar_select %p152, %s153, %s154
    %p158 = pneg %p152
    %p159 = scmp.eq.s32.totalorder %s12, 15
    %p160 = por %p158, %p159
    %p161 = scmp.ne.s32.totalorder %s153, %s156
    %p162 = scmp.eq.s32.totalorder %s12, 0
    %p163 = por %p161, %p162
    %p164 = scmp.ne.s32.totalorder %s153, %s156
    %p165 = scmp.eq.s32.totalorder %s17, 15
    %p166 = por %p164, %p165
    %p167 = scmp.ne.s32.totalorder %s156, %s157
    %p168 = scmp.eq.s32.totalorder %s17, 0
    %p169 = por %p167, %p168
    %p170 = scmp.ne.s32.totalorder %s156, %s157
    %p171 = scmp.eq.s32.totalorder %s18, 15
    %p172 = por %p170, %p171
    %p174 = scmp.ne.s32.totalorder %s157, %s173
    %p175 = scmp.eq.s32.totalorder %s18, 0
    %p176 = por %p174, %p175
    %p177 = scmp.le.s32.totalorder 1, %s12
    %p178 = scmp.lt.s32.totalorder %s12, 17
    %p179 = pnand %p177, %p178
    %p180 = pneg %p179
    // Predicated region
    $region9: #{convlstm_forward.3} parent=5 // pred_check
      _
    $region10: #{convlstm_forward.3} parent=5 // pred_check_branch
      %182 = sbr.rel (%p179) target = $region12
    $region11: #{convlstm_forward.3} parent=5 // pred_region
      %s183 = ssub.s32 %s12, 1
      // Predicated region
      $region13: #{convlstm_forward.3} parent=11 // pred_check
        %p184 = pneg %p73
      $region14: #{convlstm_forward.3} parent=11 // pred_check_branch
        %186 = sbr.rel (%p184) target = $region16
      $region15: #{convlstm_forward.3} parent=11 // pred_region
        _
      $region16: #{convlstm_forward.3} parent=11 // pred_fallthru
        _
      // Predicated region
      $region17: #{convlstm_forward.3} parent=11 // pred_check
        %p187 = pneg %p94
      $region18: #{convlstm_forward.3} parent=11 // pred_check_branch
        %189 = sbr.rel (%p187) target = $region20
      $region19: #{convlstm_forward.3} parent=11 // pred_region
        _
      $region20: #{convlstm_forward.3} parent=11 // pred_fallthru
        _
      // Predicated region
      $region21: #{convlstm_forward.3} parent=11 // pred_check
        %p190 = pneg %p115
      $region22: #{convlstm_forward.3} parent=11 // pred_check_branch
        %192 = sbr.rel (%p190) target = $region24
      $region23: #{convlstm_forward.3} parent=11 // pred_region
        _
      $region24: #{convlstm_forward.3} parent=11 // pred_fallthru
        _
    $region12: #{convlstm_forward.3} parent=5 // pred_fallthru
      _
    %p193 = scmp.lt.s32.totalorder %s12, 16
    // Predicated region
    $region25: #{convlstm_forward.3} parent=5 // pred_check
      %p194 = pneg %p193
    $region26: #{convlstm_forward.3} parent=5 // pred_check_branch
      %196 = sbr.rel (%p194) target = $region28
    $region27: #{convlstm_forward.3} parent=5 // pred_region
      // Predicated region
      $region29: #{convlstm_forward.3} parent=27 // pred_check
        %p197 = pneg %p46
      $region30: #{convlstm_forward.3} parent=27 // pred_check_branch
        %199 = sbr.rel (%p197) target = $region32
      $region31: #{convlstm_forward.3} parent=27 // pred_region
        %p200 = scmp.lt.s32.totalorder %s19, 1
        %s201 = scalar_select %p200, %s19, 1
        %p202 = scmp.lt.s32.totalorder %s20, 7
        %s203 = scalar_select %p202, %s20, 7
        %s204 = smul.addr %s203, 2
        %s205 = smul.addr %s201, 16
        %s206 = sadd.s32 %s204, %s205
        %s207 = smul.addr %s206, 8
        %s208 = scalar_lea.vmem %s0, %s207
      $region32: #{convlstm_forward.3} parent=27 // pred_fallthru
        _
    $region28: #{convlstm_forward.3} parent=5 // pred_fallthru
      _
    %p209 = scmp.le.s32.totalorder 1, %s12
    %p210 = scmp.lt.s32.totalorder %s12, 17
    %p211 = pnand %p209, %p210
    %p212 = pneg %p211
    // Predicated region
    $region33: #{convlstm_forward.3} parent=5 // pred_check
      _
    $region34: #{convlstm_forward.3} parent=5 // pred_check_branch
      %214 = sbr.rel (%p211) target = $region36
    $region35: #{convlstm_forward.3} parent=5 // pred_region
      %s215 = ssub.s32 %s12, 1
      %p216 = scmp.lt.s32.totalorder %s21, 1
      %s217 = scalar_select %p216, %s21, 1
      %p218 = scmp.lt.s32.totalorder %s22, 7
      %s219 = scalar_select %p218, %s22, 7
      %s220 = smul.addr %s219, 2
      %s221 = smul.addr %s217, 16
      %s222 = sadd.s32 %s220, %s221
      %s223 = smul.addr %s222, 8
      %s224 = scalar_lea.vmem %s0, %s223
      %p225 = pneg %p52
      %p226 = pneg %p49
      %p227 = pneg %p73
      %p228 = pneg %p70
      %p229 = pneg %p94
      %p230 = pneg %p91
      %p231 = pneg %p115
      %p232 = pneg %p112
      %p233 = pneg %p143
      %p234 = pneg %p140
      %p235 = scmp.lt.s32.totalorder %s21, 1
      %s236 = scalar_select %p235, %s21, 1
      %p237 = scmp.lt.s32.totalorder %s22, 7
      %s238 = scalar_select %p237, %s22, 7
      %s239 = smul.addr %s238, 4
      %s240 = smul.addr %s236, 32
      %s241 = sadd.s32 %s239, %s240
      %s242 = smul.addr %s241, 8
      %s243 = scalar_lea.vmem %s4, %s242
      %p244 = pneg %p169
      %p245 = pneg %p166
      %p246 = scmp.lt.s32.totalorder %s21, 1
      %s247 = scalar_select %p246, %s21, 1
      %s248 = smul.addr %s247, 4
      %s249 = smul.addr %s248, 8
      %s250 = scalar_lea.vmem %s5, %s249
      %p251 = scmp.lt.s32.totalorder %s21, 1
      %s252 = scalar_select %p251, %s21, 1
      %p253 = scmp.lt.s32.totalorder %s22, 7
      %s254 = scalar_select %p253, %s22, 7
      %s255 = smul.addr %s254, 2
      %s256 = smul.addr %s252, 16
      %s257 = sadd.s32 %s255, %s256
      %s258 = smul.addr %s257, 8
      %s259 = scalar_lea.vmem %s0, %s258
      %p260 = scmp.lt.s32.totalorder %s21, 1
      %s261 = scalar_select %p260, %s21, 1
      %p262 = scmp.lt.s32.totalorder %s22, 7
      %s263 = scalar_select %p262, %s22, 7
      %s264 = smul.addr %s263, 4
      %s265 = smul.addr %s261, 32
      %s266 = sadd.s32 %s264, %s265
      %s267 = smul.addr %s266, 8
      %s268 = scalar_lea.vmem %s4, %s267
      %p269 = scmp.lt.s32.totalorder %s21, 1
      %s270 = scalar_select %p269, %s21, 1
      %s271 = smul.addr %s270, 4
      %s272 = smul.addr %s271, 8
      %s273 = scalar_lea.vmem %s5, %s272
      %p274 = scmp.eq.s32.totalorder %s22, 0
      // Predicated region
      $region37: #{convlstm_forward.3} parent=35 // pred_check
        %p275 = pneg %p274
      $region38: #{convlstm_forward.3} parent=35 // pred_check_branch
        %277 = sbr.rel (%p275) target = $region40
      $region39: #{convlstm_forward.3} parent=35 // pred_region
        %278 = vst [vmem:[#allocation2] sm:$0xff] 0.0
        %279 = vst [vmem:[#allocation2 + $0x8] sm:$0xff] 0.0
        %280 = vst [vmem:[#allocation2 + $0x10] sm:$0xff] 0.0
        %281 = vst [vmem:[#allocation2 + $0x18] sm:$0xff] 0.0
        %282 = vst [vmem:[%s273] sm:$0xff] 0.0
        %283 = vst [vmem:[%s273 + $0x8] sm:$0xff] 0.0
        %284 = vst [vmem:[%s273 + $0x10] sm:$0xff] 0.0
        %285 = vst [vmem:[%s273 + $0x18] sm:$0xff] 0.0
      $region40: #{convlstm_forward.3} parent=35 // pred_fallthru
        _
      %v286 = vld [vmem:[%s3] sm:$0xff]
      %v287 = vld [vmem:[%s3 + $0x8] sm:$0xff]
      %v288 = vld [vmem:[%s3 + $0x10] sm:$0x1]
      %v289 = vld [vmem:[%s3 + $0x18] sm:$0x1]
      %v290 = vld [vmem:[%s259] sm:$0xff]
      %v291 = vld [vmem:[%s259 + $0x8] sm:$0xff]
      %v292 = vld [vmem:[#allocation2] sm:$0xff]
      %v293 = vld [vmem:[#allocation2 + $0x8] sm:$0xff]
      %v294 = vld [vmem:[#allocation2 + $0x10] sm:$0xff]
      %v295 = vld [vmem:[#allocation2 + $0x18] sm:$0xff]
      %297 = vrot.lane.b32.xlu0 %v291, 17
      %v298 = vpop.permute.xlu0 %297
      %301 = vrot.lane.b32.xlu0 %v290, 17
      %v302 = vpop.permute.xlu0 %301
      %vm303 = vcmask 138240
      %v304 = vsel %vm303, %v302, %v298
      %v307 = vsel %vm303, %v298, %v302
      %v308 = vperm.slane %v286, 0
      %v309 = vperm.slane %v287, 0
      %v310 = vmul.f32 %v307, %v308
      %v311 = vmul.f32 %v304, %v309
      %312 = vst [vmem:[#allocation3] sm:$0xff] %v310
      %313 = vst [vmem:[#allocation3 + $0x8] sm:$0xff] %v311
      %316 = vrot.lane.b32.xlu0 %v293, 17
      %v317 = vpop.permute.xlu0 %316
      %318 = vrot.lane.b32.xlu0 %v295, 17
      %v319 = vpop.permute.xlu0 %318
      %324 = vrot.lane.b32.xlu0 %v292, 17
      %v325 = vpop.permute.xlu0 %324
      %326 = vrot.lane.b32.xlu0 %v294, 17
      %v327 = vpop.permute.xlu0 %326
      %v328 = vsel %vm303, %v325, %v317
      %v329 = vsel %vm303, %v327, %v319
      %v334 = vsel %vm303, %v317, %v325
      %v335 = vsel %vm303, %v319, %v327
      %v336 = vmul.f32 %v334, %v308
      %v337 = vmul.f32 %v328, %v309
      %v338 = vmul.f32 %v335, %v308
      %v339 = vmul.f32 %v329, %v309
      %340 = vst [vmem:[#allocation3 + $0x90] sm:$0xff] %v336
      %341 = vst [vmem:[#allocation3 + $0x98] sm:$0xff] %v337
      %342 = vst [vmem:[#allocation3 + $0xa0] sm:$0xff] %v338
      %343 = vst [vmem:[#allocation3 + $0xa8] sm:$0xff] %v339
      %344 = vrot.lane.b32.xlu0 %v291, 16
      %v345 = vpop.permute.xlu0 %344
      %347 = vrot.lane.b32.xlu0 %v290, 16
      %v348 = vpop.permute.xlu0 %347
      %vm349 = vcmask 130048
      %v350 = vsel %vm349, %v348, %v345
      %v353 = vsel %vm349, %v345, %v348
      %v354 = vperm.slane %v286, 1
      %v355 = vperm.slane %v287, 1
      %v356 = vmul.f32 %v353, %v354
      %v357 = vmul.f32 %v350, %v355
      %358 = vst [vmem:[#allocation3 + $0x10] sm:$0xff] %v356
      %359 = vst [vmem:[#allocation3 + $0x18] sm:$0xff] %v357
      %360 = vrot.lane.b32.xlu0 %v293, 16
      %v361 = vpop.permute.xlu0 %360
      %362 = vrot.lane.b32.xlu0 %v295, 16
      %v363 = vpop.permute.xlu0 %362
      %366 = vrot.lane.b32.xlu0 %v292, 16
      %v367 = vpop.permute.xlu0 %366
      %368 = vrot.lane.b32.xlu0 %v294, 16
      %v369 = vpop.permute.xlu0 %368
      %v370 = vsel %vm349, %v367, %v361
      %v371 = vsel %vm349, %v369, %v363
      %v376 = vsel %vm349, %v361, %v367
      %v377 = vsel %vm349, %v363, %v369
      %v378 = vmul.f32 %v376, %v354
      %v379 = vmul.f32 %v370, %v355
      %v380 = vmul.f32 %v377, %v354
      %v381 = vmul.f32 %v371, %v355
      %382 = vst [vmem:[#allocation3 + $0xb0] sm:$0xff] %v378
      %383 = vst [vmem:[#allocation3 + $0xb8] sm:$0xff] %v379
      %384 = vst [vmem:[#allocation3 + $0xc0] sm:$0xff] %v380
      %385 = vst [vmem:[#allocation3 + $0xc8] sm:$0xff] %v381
      %386 = vrot.lane.b32.xlu0 %v291, 15
      %v387 = vpop.permute.xlu0 %386
      %389 = vrot.lane.b32.xlu0 %v290, 15
      %v390 = vpop.permute.xlu0 %389
      %vm391 = vcmask 121856
      %v392 = vsel %vm391, %v390, %v387
      %v395 = vsel %vm391, %v387, %v390
      %v396 = vperm.slane %v286, 2
      %v397 = vperm.slane %v287, 2
      %v398 = vmul.f32 %v395, %v396
      %v399 = vmul.f32 %v392, %v397
      %400 = vst [vmem:[#allocation3 + $0x20] sm:$0xff] %v398
      %401 = vst [vmem:[#allocation3 + $0x28] sm:$0xff] %v399
      %402 = vrot.lane.b32.xlu0 %v293, 15
      %v403 = vpop.permute.xlu0 %402
      %404 = vrot.lane.b32.xlu0 %v295, 15
      %v405 = vpop.permute.xlu0 %404
      %408 = vrot.lane.b32.xlu0 %v292, 15
      %v409 = vpop.permute.xlu0 %408
      %410 = vrot.lane.b32.xlu0 %v294, 15
      %v411 = vpop.permute.xlu0 %410
      %v412 = vsel %vm391, %v409, %v403
      %v413 = vsel %vm391, %v411, %v405
      %v418 = vsel %vm391, %v403, %v409
      %v419 = vsel %vm391, %v405, %v411
      %v420 = vmul.f32 %v418, %v396
      %v421 = vmul.f32 %v412, %v397
      %v422 = vmul.f32 %v419, %v396
      %v423 = vmul.f32 %v413, %v397
      %424 = vst [vmem:[#allocation3 + $0xd0] sm:$0xff] %v420
      %425 = vst [vmem:[#allocation3 + $0xd8] sm:$0xff] %v421
      %426 = vst [vmem:[#allocation3 + $0xe0] sm:$0xff] %v422
      %427 = vst [vmem:[#allocation3 + $0xe8] sm:$0xff] %v423
      %428 = vrot.lane.b32.xlu0 %v291, 1
      %v429 = vpop.permute.xlu0 %428
      %431 = vrot.lane.b32.xlu0 %v290, 1
      %v432 = vpop.permute.xlu0 %431
      %vm433 = vcmask 7168
      %v434 = vsel %vm433, %v432, %v429
      %v437 = vsel %vm433, %v429, %v432
      %v438 = vperm.slane %v286, 3
      %v439 = vperm.slane %v287, 3
      %v440 = vmul.f32 %v437, %v438
      %v441 = vmul.f32 %v434, %v439
      %442 = vst [vmem:[#allocation3 + $0x30] sm:$0xff] %v440
      %443 = vst [vmem:[#allocation3 + $0x38] sm:$0xff] %v441
      %444 = vrot.lane.b32.xlu0 %v293, 1
      %v445 = vpop.permute.xlu0 %444
      %446 = vrot.lane.b32.xlu0 %v295, 1
      %v447 = vpop.permute.xlu0 %446
      %450 = vrot.lane.b32.xlu0 %v292, 1
      %v451 = vpop.permute.xlu0 %450
      %452 = vrot.lane.b32.xlu0 %v294, 1
      %v453 = vpop.permute.xlu0 %452
      %v454 = vsel %vm433, %v451, %v445
      %v455 = vsel %vm433, %v453, %v447
      %v460 = vsel %vm433, %v445, %v451
      %v461 = vsel %vm433, %v447, %v453
      %v462 = vmul.f32 %v460, %v438
      %v463 = vmul.f32 %v454, %v439
      %v464 = vmul.f32 %v461, %v438
      %v465 = vmul.f32 %v455, %v439
      %466 = vst [vmem:[#allocation3 + $0xf0] sm:$0xff] %v462
      %467 = vst [vmem:[#allocation3 + $0xf8] sm:$0xff] %v463
      %468 = vst [vmem:[#allocation3 + $0x100] sm:$0xff] %v464
      %469 = vst [vmem:[#allocation3 + $0x108] sm:$0xff] %v465
      %v470 = vperm.slane %v286, 4
      %v471 = vperm.slane %v287, 4
      %v472 = vmul.f32 %v290, %v470
      %v473 = vmul.f32 %v291, %v471
      %474 = vst [vmem:[#allocation3 + $0x40] sm:$0xff] %v472
      %475 = vst [vmem:[#allocation3 + $0x48] sm:$0xff] %v473
      %v476 = vmul.f32 %v292, %v470
      %v477 = vmul.f32 %v293, %v471
      %v478 = vmul.f32 %v294, %v470
      %v479 = vmul.f32 %v295, %v471
      %480 = vst [vmem:[#allocation3 + $0x110] sm:$0xff] %v476
      %481 = vst [vmem:[#allocation3 + $0x118] sm:$0xff] %v477
      %482 = vst [vmem:[#allocation3 + $0x120] sm:$0xff] %v478
      %483 = vst [vmem:[#allocation3 + $0x128] sm:$0xff] %v479
      %484 = vrot.lane.b32.xlu0 %v290, 127
      %v485 = vpop.permute.xlu0 %484
      %486 = vrot.lane.b32.xlu0 %v291, 127
      %v487 = vpop.permute.xlu0 %486
      %vm488 = vcmask 1039360
      %v489 = vsel %vm488, %v485, %v487
      %v493 = vsel %vm488, %v487, %v485
      %v494 = vperm.slane %v286, 5
      %v495 = vperm.slane %v287, 5
      %v496 = vmul.f32 %v489, %v494
      %v497 = vmul.f32 %v493, %v495
      %498 = vst [vmem:[#allocation3 + $0x50] sm:$0xff] %v496
      %499 = vst [vmem:[#allocation3 + $0x58] sm:$0xff] %v497
      %500 = vrot.lane.b32.xlu0 %v292, 127
      %v501 = vpop.permute.xlu0 %500
      %502 = vrot.lane.b32.xlu0 %v293, 127
      %v503 = vpop.permute.xlu0 %502
      %504 = vrot.lane.b32.xlu0 %v294, 127
      %v505 = vpop.permute.xlu0 %504
      %506 = vrot.lane.b32.xlu0 %v295, 127
      %v507 = vpop.permute.xlu0 %506
      %v508 = vsel %vm488, %v501, %v503
      %v509 = vsel %vm488, %v505, %v507
      %v516 = vsel %vm488, %v503, %v501
      %v517 = vsel %vm488, %v507, %v505
      %v518 = vmul.f32 %v508, %v494
      %v519 = vmul.f32 %v516, %v495
      %v520 = vmul.f32 %v509, %v494
      %v521 = vmul.f32 %v517, %v495
      %522 = vst [vmem:[#allocation3 + $0x130] sm:$0xff] %v518
      %523 = vst [vmem:[#allocation3 + $0x138] sm:$0xff] %v519
      %524 = vst [vmem:[#allocation3 + $0x140] sm:$0xff] %v520
      %525 = vst [vmem:[#allocation3 + $0x148] sm:$0xff] %v521
      %526 = vrot.lane.b32.xlu0 %v290, 113
      %v527 = vpop.permute.xlu0 %526
      %528 = vrot.lane.b32.xlu0 %v291, 113
      %v529 = vpop.permute.xlu0 %528
      %vm530 = vcmask 924672
      %v531 = vsel %vm530, %v527, %v529
      %v535 = vsel %vm530, %v529, %v527
      %v536 = vperm.slane %v286, 6
      %v537 = vperm.slane %v287, 6
      %v538 = vmul.f32 %v531, %v536
      %v539 = vmul.f32 %v535, %v537
      %540 = vst [vmem:[#allocation3 + $0x60] sm:$0xff] %v538
      %541 = vst [vmem:[#allocation3 + $0x68] sm:$0xff] %v539
      %542 = vrot.lane.b32.xlu0 %v292, 113
      %v543 = vpop.permute.xlu0 %542
      %544 = vrot.lane.b32.xlu0 %v293, 113
      %v545 = vpop.permute.xlu0 %544
      %546 = vrot.lane.b32.xlu0 %v294, 113
      %v547 = vpop.permute.xlu0 %546
      %548 = vrot.lane.b32.xlu0 %v295, 113
      %v549 = vpop.permute.xlu0 %548
      %v550 = vsel %vm530, %v543, %v545
      %v551 = vsel %vm530, %v547, %v549
      %v558 = vsel %vm530, %v545, %v543
      %v559 = vsel %vm530, %v549, %v547
      %v560 = vmul.f32 %v550, %v536
      %v561 = vmul.f32 %v558, %v537
      %v562 = vmul.f32 %v551, %v536
      %v563 = vmul.f32 %v559, %v537
      %564 = vst [vmem:[#allocation3 + $0x150] sm:$0xff] %v560
      %565 = vst [vmem:[#allocation3 + $0x158] sm:$0xff] %v561
      %566 = vst [vmem:[#allocation3 + $0x160] sm:$0xff] %v562
      %567 = vst [vmem:[#allocation3 + $0x168] sm:$0xff] %v563
      %568 = vrot.lane.b32.xlu0 %v290, 112
      %v569 = vpop.permute.xlu0 %568
      %570 = vrot.lane.b32.xlu0 %v291, 112
      %v571 = vpop.permute.xlu0 %570
      %vm572 = vcmask 916480
      %v573 = vsel %vm572, %v569, %v571
      %v577 = vsel %vm572, %v571, %v569
      %v578 = vperm.slane %v286, 7
      %v579 = vperm.slane %v287, 7
      %v580 = vmul.f32 %v573, %v578
      %v581 = vmul.f32 %v577, %v579
      %582 = vst [vmem:[#allocation3 + $0x70] sm:$0xff] %v580
      %583 = vst [vmem:[#allocation3 + $0x78] sm:$0xff] %v581
      %584 = vrot.lane.b32.xlu0 %v292, 112
      %v585 = vpop.permute.xlu0 %584
      %586 = vrot.lane.b32.xlu0 %v293, 112
      %v587 = vpop.permute.xlu0 %586
      %588 = vrot.lane.b32.xlu0 %v294, 112
      %v589 = vpop.permute.xlu0 %588
      %590 = vrot.lane.b32.xlu0 %v295, 112
      %v591 = vpop.permute.xlu0 %590
      %v592 = vsel %vm572, %v585, %v587
      %v593 = vsel %vm572, %v589, %v591
      %v600 = vsel %vm572, %v587, %v585
      %v601 = vsel %vm572, %v591, %v589
      %v602 = vmul.f32 %v592, %v578
      %v603 = vmul.f32 %v600, %v579
      %v604 = vmul.f32 %v593, %v578
      %v605 = vmul.f32 %v601, %v579
      %606 = vst [vmem:[#allocation3 + $0x170] sm:$0xff] %v602
      %607 = vst [vmem:[#allocation3 + $0x178] sm:$0xff] %v603
      %608 = vst [vmem:[#allocation3 + $0x180] sm:$0xff] %v604
      %609 = vst [vmem:[#allocation3 + $0x188] sm:$0xff] %v605
      %610 = vrot.lane.b32.xlu0 %v290, 111
      %v611 = vpop.permute.xlu0 %610
      %612 = vrot.lane.b32.xlu0 %v291, 111
      %v613 = vpop.permute.xlu0 %612
      %vm614 = vcmask 908288
      %v615 = vsel %vm614, %v611, %v613
      %v619 = vsel %vm614, %v613, %v611
      %v620 = vperm.slane %v288, 0
      %v621 = vperm.slane %v289, 0
      %v622 = vmul.f32 %v615, %v620
      %v623 = vmul.f32 %v619, %v621
      %624 = vst [vmem:[#allocation3 + $0x80] sm:$0xff] %v622
      %625 = vst [vmem:[#allocation3 + $0x88] sm:$0xff] %v623
      %626 = vrot.lane.b32.xlu0 %v292, 111
      %v627 = vpop.permute.xlu0 %626
      %628 = vrot.lane.b32.xlu0 %v293, 111
      %v629 = vpop.permute.xlu0 %628
      %630 = vrot.lane.b32.xlu0 %v294, 111
      %v631 = vpop.permute.xlu0 %630
      %632 = vrot.lane.b32.xlu0 %v295, 111
      %v633 = vpop.permute.xlu0 %632
      %v634 = vsel %vm614, %v627, %v629
      %v635 = vsel %vm614, %v631, %v633
      %v642 = vsel %vm614, %v629, %v627
      %v643 = vsel %vm614, %v633, %v631
      %v644 = vmul.f32 %v634, %v620
      %v645 = vmul.f32 %v642, %v621
      %v646 = vmul.f32 %v635, %v620
      %v647 = vmul.f32 %v643, %v621
      %648 = vst [vmem:[#allocation3 + $0x190] sm:$0xff] %v644
      %649 = vst [vmem:[#allocation3 + $0x198] sm:$0xff] %v645
      %650 = vst [vmem:[#allocation3 + $0x1a0] sm:$0xff] %v646
      %651 = vst [vmem:[#allocation3 + $0x1a8] sm:$0xff] %v647
      %v652 = vld [vmem:[%s1] sm:$0xff]
      %v653 = vld [vmem:[%s1 + $0x8] sm:$0xff]
      %v654 = vld [vmem:[%s1 + $0x10] sm:$0xff]
      %v655 = vld [vmem:[%s1 + $0x18] sm:$0xff]
      %v656 = vld [vmem:[%s1 + $0x20] sm:$0xff]
      %v657 = vld [vmem:[%s1 + $0x28] sm:$0xff]
      %v658 = vld [vmem:[%s1 + $0x30] sm:$0xff]
      %v659 = vld [vmem:[%s1 + $0x38] sm:$0xff]
      %v660 = vld [vmem:[%s1 + $0x40] sm:$0xff]
      %v661 = vld [vmem:[%s1 + $0x48] sm:$0xff]
      %v662 = vld [vmem:[%s1 + $0x50] sm:$0xff]
      %v663 = vld [vmem:[%s1 + $0x58] sm:$0xff]
      %v664 = vld [vmem:[%s1 + $0x60] sm:$0xff]
      %v665 = vld [vmem:[%s1 + $0x68] sm:$0xff]
      %v666 = vld [vmem:[%s1 + $0x70] sm:$0xff]
      %v667 = vld [vmem:[%s1 + $0x78] sm:$0xff]
      %v668 = vld [vmem:[#allocation3] sm:$0xff]
      %v669 = vld [vmem:[#allocation3 + $0x8] sm:$0xff]
      %v670 = vld [vmem:[#allocation3 + $0x10] sm:$0xff]
      %v671 = vld [vmem:[#allocation3 + $0x18] sm:$0xff]
      %v672 = vld [vmem:[#allocation3 + $0x20] sm:$0xff]
      %v673 = vld [vmem:[#allocation3 + $0x28] sm:$0xff]
      %v674 = vld [vmem:[#allocation3 + $0x30] sm:$0xff]
      %v675 = vld [vmem:[#allocation3 + $0x38] sm:$0xff]
      %v676 = vld [vmem:[#allocation3 + $0x40] sm:$0xff]
      %v677 = vld [vmem:[#allocation3 + $0x48] sm:$0xff]
      %v678 = vld [vmem:[#allocation3 + $0x50] sm:$0xff]
      %v679 = vld [vmem:[#allocation3 + $0x58] sm:$0xff]
      %v680 = vld [vmem:[#allocation3 + $0x60] sm:$0xff]
      %v681 = vld [vmem:[#allocation3 + $0x68] sm:$0xff]
      %v682 = vld [vmem:[#allocation3 + $0x70] sm:$0xff]
      %v683 = vld [vmem:[#allocation3 + $0x78] sm:$0xff]
      %v684 = vld [vmem:[#allocation3 + $0x80] sm:$0xff]
      %v685 = vld [vmem:[#allocation3 + $0x88] sm:$0xff]
      %v686 = vld [vmem:[#allocation3 + $0x90] sm:$0xff]
      %v687 = vld [vmem:[#allocation3 + $0x98] sm:$0xff]
      %v688 = vld [vmem:[#allocation3 + $0xa0] sm:$0xff]
      %v689 = vld [vmem:[#allocation3 + $0xa8] sm:$0xff]
      %v690 = vld [vmem:[#allocation3 + $0xb0] sm:$0xff]
      %v691 = vld [vmem:[#allocation3 + $0xb8] sm:$0xff]
      %v692 = vld [vmem:[#allocation3 + $0xc0] sm:$0xff]
      %v693 = vld [vmem:[#allocation3 + $0xc8] sm:$0xff]
      %v694 = vld [vmem:[#allocation3 + $0xd0] sm:$0xff]
      %v695 = vld [vmem:[#allocation3 + $0xd8] sm:$0xff]
      %v696 = vld [vmem:[#allocation3 + $0xe0] sm:$0xff]
      %v697 = vld [vmem:[#allocation3 + $0xe8] sm:$0xff]
      %v698 = vld [vmem:[#allocation3 + $0xf0] sm:$0xff]
      %v699 = vld [vmem:[#allocation3 + $0xf8] sm:$0xff]
      %v700 = vld [vmem:[#allocation3 + $0x100] sm:$0xff]
      %v701 = vld [vmem:[#allocation3 + $0x108] sm:$0xff]
      %v702 = vld [vmem:[#allocation3 + $0x110] sm:$0xff]
      %v703 = vld [vmem:[#allocation3 + $0x118] sm:$0xff]
      %v704 = vld [vmem:[#allocation3 + $0x120] sm:$0xff]
      %v705 = vld [vmem:[#allocation3 + $0x128] sm:$0xff]
      %v706 = vld [vmem:[#allocation3 + $0x130] sm:$0xff]
      %v707 = vld [vmem:[#allocation3 + $0x138] sm:$0xff]
      %v708 = vld [vmem:[#allocation3 + $0x140] sm:$0xff]
      %v709 = vld [vmem:[#allocation3 + $0x148] sm:$0xff]
      %v710 = vld [vmem:[#allocation3 + $0x150] sm:$0xff]
      %v711 = vld [vmem:[#allocation3 + $0x158] sm:$0xff]
      %v712 = vld [vmem:[#allocation3 + $0x160] sm:$0xff]
      %v713 = vld [vmem:[#allocation3 + $0x168] sm:$0xff]
      %v714 = vld [vmem:[#allocation3 + $0x170] sm:$0xff]
      %v715 = vld [vmem:[#allocation3 + $0x178] sm:$0xff]
      %v716 = vld [vmem:[#allocation3 + $0x180] sm:$0xff]
      %v717 = vld [vmem:[#allocation3 + $0x188] sm:$0xff]
      %v718 = vld [vmem:[#allocation3 + $0x190] sm:$0xff]
      %v719 = vld [vmem:[#allocation3 + $0x198] sm:$0xff]
      %v720 = vld [vmem:[#allocation3 + $0x1a0] sm:$0xff]
      %v721 = vld [vmem:[#allocation3 + $0x1a8] sm:$0xff]
      %v722 = vld [vmem:[%s2] sm:$0xff]
      %v723 = vld [vmem:[%s2 + $0x8] sm:$0xff]
      %v724 = vld [vmem:[%s2 + $0x10] sm:$0xff]
      %v725 = vld [vmem:[%s2 + $0x18] sm:$0xff]
      %v726 = vld [vmem:[%s2 + $0x20] sm:$0xff]
      %v727 = vld [vmem:[%s2 + $0x28] sm:$0xff]
      %v728 = vld [vmem:[%s2 + $0x30] sm:$0xff]
      %v729 = vld [vmem:[%s2 + $0x38] sm:$0xff]
      %731 = vset.pattern.permute.xlu0 0
      %732 = vperm.xlu0 %731, %v722
      %v733 = vpop.permute.xlu0 %732
      %736 = vset.pattern.permute.xlu0 0
      %737 = vperm.xlu0 %736, %v723
      %v738 = vpop.permute.xlu0 %737
      %741 = vset.pattern.permute.xlu0 0
      %742 = vperm.xlu0 %741, %v724
      %v743 = vpop.permute.xlu0 %742
      %746 = vset.pattern.permute.xlu0 0
      %747 = vperm.xlu0 %746, %v725
      %v748 = vpop.permute.xlu0 %747
      %751 = vset.pattern.permute.xlu0 0
      %752 = vperm.xlu0 %751, %v726
      %v753 = vpop.permute.xlu0 %752
      %756 = vset.pattern.permute.xlu0 0
      %757 = vperm.xlu0 %756, %v727
      %v758 = vpop.permute.xlu0 %757
      %761 = vset.pattern.permute.xlu0 0
      %762 = vperm.xlu0 %761, %v728
      %v763 = vpop.permute.xlu0 %762
      %766 = vset.pattern.permute.xlu0 0
      %767 = vperm.xlu0 %766, %v729
      %v768 = vpop.permute.xlu0 %767
      %vm770 = vcmask 719872
      %v772 = vsel %vm770, %v653, 0
      %v775 = vsel %vm770, %v655, 0
      %v778 = vsel %vm770, %v657, 0
      %v781 = vsel %vm770, %v659, 0
      %v784 = vsel %vm770, %v661, 0
      %v787 = vsel %vm770, %v663, 0
      %v790 = vsel %vm770, %v665, 0
      %v793 = vsel %vm770, %v667, 0
      %795 = vmatpush.msra.mxu0 %v698
      %796 = vmatpush.msra.mxu0 %v696
      %797 = vmatpush.msra.mxu0 %v694
      %798 = vmatpush.msra.mxu0 %v692
      %799 = vmatpush.msra.mxu0 %v690
      %800 = vmatpush.msra.mxu0 %v688
      %801 = vmatpush.msra.mxu0 %v686
      %802 = vmatpush.msra.mxu0 %v684
      %803 = vmatpush.msra.mxu0 %v682
      %804 = vmatpush.msra.mxu0 %v680
      %805 = vmatpush.msra.mxu0 %v678
      %806 = vmatpush.msra.mxu0 %v676
      %807 = vmatpush.msra.mxu0 %v674
      %808 = vmatpush.msra.mxu0 %v672
      %809 = vmatpush.msra.mxu0 %v670
      %810 = vmatpush.msra.mxu0 %v668
      %811 = vmatmul.f32.gmra.mxu0 %v652
      %v812 = vpop.f32.mrf.mxu0
      %v813 = vadd.f32 %v733, %v812
      %814 = vmatmul.f32.gmra.mxu0 %v654
      %v815 = vpop.f32.mrf.mxu0
      %v816 = vadd.f32 %v738, %v815
      %817 = vmatmul.f32.gmra.mxu0 %v656
      %v818 = vpop.f32.mrf.mxu0
      %v819 = vadd.f32 %v743, %v818
      %820 = vmatmul.f32.gmra.mxu0 %v658
      %v821 = vpop.f32.mrf.mxu0
      %v822 = vadd.f32 %v748, %v821
      %823 = vmatmul.f32.gmra.mxu0 %v660
      %v824 = vpop.f32.mrf.mxu0
      %v825 = vadd.f32 %v753, %v824
      %826 = vmatmul.f32.gmra.mxu0 %v662
      %v827 = vpop.f32.mrf.mxu0
      %v828 = vadd.f32 %v758, %v827
      %829 = vmatmul.f32.gmra.mxu0 %v664
      %v830 = vpop.f32.mrf.mxu0
      %v831 = vadd.f32 %v763, %v830
      %832 = vmatmul.f32.gmra.mxu0 %v666
      %v833 = vpop.f32.mrf.mxu0
      %v834 = vadd.f32 %v768, %v833
      %835 = vdwg.mxu0
      %836 = vmatpush.msra.mxu0 0.0
      %837 = vmatpush.msra.mxu0 0.0
      %838 = vmatpush.msra.mxu0 0.0
      %839 = vmatpush.msra.mxu0 0.0
      %840 = vmatpush.msra.mxu0 0.0
      %841 = vmatpush.msra.mxu0 %v720
      %842 = vmatpush.msra.mxu0 %v718
      %843 = vmatpush.msra.mxu0 %v716
      %844 = vmatpush.msra.mxu0 %v714
      %845 = vmatpush.msra.mxu0 %v712
      %846 = vmatpush.msra.mxu0 %v710
      %847 = vmatpush.msra.mxu0 %v708
      %848 = vmatpush.msra.mxu0 %v706
      %849 = vmatpush.msra.mxu0 %v704
      %850 = vmatpush.msra.mxu0 %v702
      %851 = vmatpush.msra.mxu0 %v700
      %852 = vmatmul.f32.gmra.mxu0 %v772
      %v853 = vpop.f32.mrf.mxu0
      %v854 = vadd.f32 %v813, %v853
      %855 = vmatmul.f32.gmra.mxu0 %v775
      %v856 = vpop.f32.mrf.mxu0
      %v857 = vadd.f32 %v816, %v856
      %858 = vmatmul.f32.gmra.mxu0 %v778
      %v859 = vpop.f32.mrf.mxu0
      %v860 = vadd.f32 %v819, %v859
      %861 = vmatmul.f32.gmra.mxu0 %v781
      %v862 = vpop.f32.mrf.mxu0
      %v863 = vadd.f32 %v822, %v862
      %864 = vmatmul.f32.gmra.mxu0 %v784
      %v865 = vpop.f32.mrf.mxu0
      %v866 = vadd.f32 %v825, %v865
      %867 = vmatmul.f32.gmra.mxu0 %v787
      %v868 = vpop.f32.mrf.mxu0
      %v869 = vadd.f32 %v828, %v868
      %870 = vmatmul.f32.gmra.mxu0 %v790
      %v871 = vpop.f32.mrf.mxu0
      %v872 = vadd.f32 %v831, %v871
      %873 = vmatmul.f32.gmra.mxu0 %v793
      %v874 = vpop.f32.mrf.mxu0
      %v875 = vadd.f32 %v834, %v874
      %876 = vdwg.mxu0
      %877 = vmatpush.msra.mxu0 %v699
      %878 = vmatpush.msra.mxu0 %v697
      %879 = vmatpush.msra.mxu0 %v695
      %880 = vmatpush.msra.mxu0 %v693
      %881 = vmatpush.msra.mxu0 %v691
      %882 = vmatpush.msra.mxu0 %v689
      %883 = vmatpush.msra.mxu0 %v687
      %884 = vmatpush.msra.mxu0 %v685
      %885 = vmatpush.msra.mxu0 %v683
      %886 = vmatpush.msra.mxu0 %v681
      %887 = vmatpush.msra.mxu0 %v679
      %888 = vmatpush.msra.mxu0 %v677
      %889 = vmatpush.msra.mxu0 %v675
      %890 = vmatpush.msra.mxu0 %v673
      %891 = vmatpush.msra.mxu0 %v671
      %892 = vmatpush.msra.mxu0 %v669
      %893 = vmatmul.f32.gmra.mxu0 %v652
      %v894 = vpop.f32.mrf.mxu0
      %v895 = vadd.f32 %v733, %v894
      %896 = vmatmul.f32.gmra.mxu0 %v654
      %v897 = vpop.f32.mrf.mxu0
      %v898 = vadd.f32 %v738, %v897
      %899 = vmatmul.f32.gmra.mxu0 %v656
      %v900 = vpop.f32.mrf.mxu0
      %v901 = vadd.f32 %v743, %v900
      %902 = vmatmul.f32.gmra.mxu0 %v658
      %v903 = vpop.f32.mrf.mxu0
      %v904 = vadd.f32 %v748, %v903
      %905 = vmatmul.f32.gmra.mxu0 %v660
      %v906 = vpop.f32.mrf.mxu0
      %v907 = vadd.f32 %v753, %v906
      %908 = vmatmul.f32.gmra.mxu0 %v662
      %v909 = vpop.f32.mrf.mxu0
      %v910 = vadd.f32 %v758, %v909
      %911 = vmatmul.f32.gmra.mxu0 %v664
      %v912 = vpop.f32.mrf.mxu0
      %v913 = vadd.f32 %v763, %v912
      %914 = vmatmul.f32.gmra.mxu0 %v666
      %v915 = vpop.f32.mrf.mxu0
      %v916 = vadd.f32 %v768, %v915
      %917 = vdwg.mxu0
      %918 = vmatpush.msra.mxu0 0.0
      %919 = vmatpush.msra.mxu0 0.0
      %920 = vmatpush.msra.mxu0 0.0
      %921 = vmatpush.msra.mxu0 0.0
      %922 = vmatpush.msra.mxu0 0.0
      %923 = vmatpush.msra.mxu0 %v721
      %924 = vmatpush.msra.mxu0 %v719
      %925 = vmatpush.msra.mxu0 %v717
      %926 = vmatpush.msra.mxu0 %v715
      %927 = vmatpush.msra.mxu0 %v713
      %928 = vmatpush.msra.mxu0 %v711
      %929 = vmatpush.msra.mxu0 %v709
      %930 = vmatpush.msra.mxu0 %v707
      %931 = vmatpush.msra.mxu0 %v705
      %932 = vmatpush.msra.mxu0 %v703
      %933 = vmatpush.msra.mxu0 %v701
      %934 = vmatmul.f32.gmra.mxu0 %v772
      %v935 = vpop.f32.mrf.mxu0
      %v936 = vadd.f32 %v895, %v935
      %937 = vmatmul.f32.gmra.mxu0 %v775
      %v938 = vpop.f32.mrf.mxu0
      %v939 = vadd.f32 %v898, %v938
      %940 = vmatmul.f32.gmra.mxu0 %v778
      %v941 = vpop.f32.mrf.mxu0
      %v942 = vadd.f32 %v901, %v941
      %943 = vmatmul.f32.gmra.mxu0 %v781
      %v944 = vpop.f32.mrf.mxu0
      %v945 = vadd.f32 %v904, %v944
      %946 = vmatmul.f32.gmra.mxu0 %v784
      %v947 = vpop.f32.mrf.mxu0
      %v948 = vadd.f32 %v907, %v947
      %949 = vmatmul.f32.gmra.mxu0 %v787
      %v950 = vpop.f32.mrf.mxu0
      %v951 = vadd.f32 %v910, %v950
      %952 = vmatmul.f32.gmra.mxu0 %v790
      %v953 = vpop.f32.mrf.mxu0
      %v954 = vadd.f32 %v913, %v953
      %955 = vmatmul.f32.gmra.mxu0 %v793
      %v956 = vpop.f32.mrf.mxu0
      %v957 = vadd.f32 %v916, %v956
      %958 = vdwg.mxu0
      %v959 = vxor.u32 %v854, 2147483648
      %v960 = vxor.u32 %v936, 2147483648
      %v961 = vxor.u32 %v857, 2147483648
      %v962 = vxor.u32 %v939, 2147483648
      %v963 = vxor.u32 %v860, 2147483648
      %v964 = vxor.u32 %v942, 2147483648
      %v965 = vxor.u32 %v863, 2147483648
      %v966 = vxor.u32 %v945, 2147483648
      %v967 = vxor.u32 %v866, 2147483648
      %v968 = vxor.u32 %v948, 2147483648
      %v969 = vxor.u32 %v869, 2147483648
      %v970 = vxor.u32 %v951, 2147483648
      %v971 = vmul.f32 %v959, 1.442695
      %v972 = vpow.pop %v971
      %v973 = vmul.f32 %v960, 1.442695
      %v974 = vpow.pop %v973
      %v975 = vmul.f32 %v961, 1.442695
      %v976 = vpow.pop %v975
      %v977 = vmul.f32 %v962, 1.442695
      %v978 = vpow.pop %v977
      %v979 = vmul.f32 %v963, 1.442695
      %v980 = vpow.pop %v979
      %v981 = vmul.f32 %v964, 1.442695
      %v982 = vpow.pop %v981
      %v983 = vmul.f32 %v965, 1.442695
      %v984 = vpow.pop %v983
      %v985 = vmul.f32 %v966, 1.442695
      %v986 = vpow.pop %v985
      %v987 = vmul.f32 %v967, 1.442695
      %v988 = vpow.pop %v987
      %v989 = vmul.f32 %v968, 1.442695
      %v990 = vpow.pop %v989
      %v991 = vmul.f32 %v969, 1.442695
      %v992 = vpow.pop %v991
      %v993 = vmul.f32 %v970, 1.442695
      %v994 = vpow.pop %v993
      %v995 = vadd.f32 %v972, 1.0
      %v996 = vadd.f32 %v974, 1.0
      %v997 = vadd.f32 %v976, 1.0
      %v998 = vadd.f32 %v978, 1.0
      %v999 = vadd.f32 %v980, 1.0
      %v1000 = vadd.f32 %v982, 1.0
      %v1001 = vadd.f32 %v984, 1.0
      %v1002 = vadd.f32 %v986, 1.0
      %v1003 = vadd.f32 %v988, 1.0
      %v1004 = vadd.f32 %v990, 1.0
      %v1005 = vadd.f32 %v992, 1.0
      %v1006 = vadd.f32 %v994, 1.0
      %v1007 = vrcp.pop %v995
      %v1008 = vmul.f32 %v995, %v1007
      %v1009 = vsub.f32 1.0, %v1008
      %v1010 = vmul.f32 %v1007, %v1009
      %v1011 = vadd.f32 %v1007, %v1010
      %vm1012 = vweird.f32 %v995
      %vm1013 = vweird.f32 %v1007
      %vm1014 = vmor %vm1012, %vm1013
      %v1015 = vsel %vm1014, %v1007, %v1011
      %v1016 = vand.u32 2147483647, %v995
      %vm1017 = vcmp.eq.f32.partialorder %v1016, 8.507059e+37
      %v1018 = vand.u32 %v995, 2147483648
      %v1019 = vor.u32 1.1754944e-38, %v1018
      %v1020 = vsel %vm1017, %v1019, %v1015
      %v1021 = vmul.f32 1.0, %v1020
      %v1022 = vrcp.pop %v996
      %v1023 = vmul.f32 %v996, %v1022
      %v1024 = vsub.f32 1.0, %v1023
      %v1025 = vmul.f32 %v1022, %v1024
      %v1026 = vadd.f32 %v1022, %v1025
      %vm1027 = vweird.f32 %v996
      %vm1028 = vweird.f32 %v1022
      %vm1029 = vmor %vm1027, %vm1028
      %v1030 = vsel %vm1029, %v1022, %v1026
      %v1031 = vand.u32 2147483647, %v996
      %vm1032 = vcmp.eq.f32.partialorder %v1031, 8.507059e+37
      %v1033 = vand.u32 %v996, 2147483648
      %v1034 = vor.u32 1.1754944e-38, %v1033
      %v1035 = vsel %vm1032, %v1034, %v1030
      %v1036 = vmul.f32 1.0, %v1035
      %v1037 = vrcp.pop %v997
      %v1038 = vmul.f32 %v997, %v1037
      %v1039 = vsub.f32 1.0, %v1038
      %v1040 = vmul.f32 %v1037, %v1039
      %v1041 = vadd.f32 %v1037, %v1040
      %vm1042 = vweird.f32 %v997
      %vm1043 = vweird.f32 %v1037
      %vm1044 = vmor %vm1042, %vm1043
      %v1045 = vsel %vm1044, %v1037, %v1041
      %v1046 = vand.u32 2147483647, %v997
      %vm1047 = vcmp.eq.f32.partialorder %v1046, 8.507059e+37
      %v1048 = vand.u32 %v997, 2147483648
      %v1049 = vor.u32 1.1754944e-38, %v1048
      %v1050 = vsel %vm1047, %v1049, %v1045
      %v1051 = vmul.f32 1.0, %v1050
      %v1052 = vrcp.pop %v998
      %v1053 = vmul.f32 %v998, %v1052
      %v1054 = vsub.f32 1.0, %v1053
      %v1055 = vmul.f32 %v1052, %v1054
      %v1056 = vadd.f32 %v1052, %v1055
      %vm1057 = vweird.f32 %v998
      %vm1058 = vweird.f32 %v1052
      %vm1059 = vmor %vm1057, %vm1058
      %v1060 = vsel %vm1059, %v1052, %v1056
      %v1061 = vand.u32 2147483647, %v998
      %vm1062 = vcmp.eq.f32.partialorder %v1061, 8.507059e+37
      %v1063 = vand.u32 %v998, 2147483648
      %v1064 = vor.u32 1.1754944e-38, %v1063
      %v1065 = vsel %vm1062, %v1064, %v1060
      %v1066 = vmul.f32 1.0, %v1065
      %v1067 = vrcp.pop %v999
      %v1068 = vmul.f32 %v999, %v1067
      %v1069 = vsub.f32 1.0, %v1068
      %v1070 = vmul.f32 %v1067, %v1069
      %v1071 = vadd.f32 %v1067, %v1070
      %vm1072 = vweird.f32 %v999
      %vm1073 = vweird.f32 %v1067
      %vm1074 = vmor %vm1072, %vm1073
      %v1075 = vsel %vm1074, %v1067, %v1071
      %v1076 = vand.u32 2147483647, %v999
      %vm1077 = vcmp.eq.f32.partialorder %v1076, 8.507059e+37
      %v1078 = vand.u32 %v999, 2147483648
      %v1079 = vor.u32 1.1754944e-38, %v1078
      %v1080 = vsel %vm1077, %v1079, %v1075
      %v1081 = vmul.f32 1.0, %v1080
      %v1082 = vrcp.pop %v1000
      %v1083 = vmul.f32 %v1000, %v1082
      %v1084 = vsub.f32 1.0, %v1083
      %v1085 = vmul.f32 %v1082, %v1084
      %v1086 = vadd.f32 %v1082, %v1085
      %vm1087 = vweird.f32 %v1000
      %vm1088 = vweird.f32 %v1082
      %vm1089 = vmor %vm1087, %vm1088
      %v1090 = vsel %vm1089, %v1082, %v1086
      %v1091 = vand.u32 2147483647, %v1000
      %vm1092 = vcmp.eq.f32.partialorder %v1091, 8.507059e+37
      %v1093 = vand.u32 %v1000, 2147483648
      %v1094 = vor.u32 1.1754944e-38, %v1093
      %v1095 = vsel %vm1092, %v1094, %v1090
      %v1096 = vmul.f32 1.0, %v1095
      %v1097 = vrcp.pop %v1001
      %v1098 = vmul.f32 %v1001, %v1097
      %v1099 = vsub.f32 1.0, %v1098
      %v1100 = vmul.f32 %v1097, %v1099
      %v1101 = vadd.f32 %v1097, %v1100
      %vm1102 = vweird.f32 %v1001
      %vm1103 = vweird.f32 %v1097
      %vm1104 = vmor %vm1102, %vm1103
      %v1105 = vsel %vm1104, %v1097, %v1101
      %v1106 = vand.u32 2147483647, %v1001
      %vm1107 = vcmp.eq.f32.partialorder %v1106, 8.507059e+37
      %v1108 = vand.u32 %v1001, 2147483648
      %v1109 = vor.u32 1.1754944e-38, %v1108
      %v1110 = vsel %vm1107, %v1109, %v1105
      %v1111 = vmul.f32 1.0, %v1110
      %v1112 = vrcp.pop %v1002
      %v1113 = vmul.f32 %v1002, %v1112
      %v1114 = vsub.f32 1.0, %v1113
      %v1115 = vmul.f32 %v1112, %v1114
      %v1116 = vadd.f32 %v1112, %v1115
      %vm1117 = vweird.f32 %v1002
      %vm1118 = vweird.f32 %v1112
      %vm1119 = vmor %vm1117, %vm1118
      %v1120 = vsel %vm1119, %v1112, %v1116
      %v1121 = vand.u32 2147483647, %v1002
      %vm1122 = vcmp.eq.f32.partialorder %v1121, 8.507059e+37
      %v1123 = vand.u32 %v1002, 2147483648
      %v1124 = vor.u32 1.1754944e-38, %v1123
      %v1125 = vsel %vm1122, %v1124, %v1120
      %v1126 = vmul.f32 1.0, %v1125
      %v1127 = vrcp.pop %v1003
      %v1128 = vmul.f32 %v1003, %v1127
      %v1129 = vsub.f32 1.0, %v1128
      %v1130 = vmul.f32 %v1127, %v1129
      %v1131 = vadd.f32 %v1127, %v1130
      %vm1132 = vweird.f32 %v1003
      %vm1133 = vweird.f32 %v1127
      %vm1134 = vmor %vm1132, %vm1133
      %v1135 = vsel %vm1134, %v1127, %v1131
      %v1136 = vand.u32 2147483647, %v1003
      %vm1137 = vcmp.eq.f32.partialorder %v1136, 8.507059e+37
      %v1138 = vand.u32 %v1003, 2147483648
      %v1139 = vor.u32 1.1754944e-38, %v1138
      %v1140 = vsel %vm1137, %v1139, %v1135
      %v1141 = vmul.f32 1.0, %v1140
      %v1142 = vrcp.pop %v1004
      %v1143 = vmul.f32 %v1004, %v1142
      %v1144 = vsub.f32 1.0, %v1143
      %v1145 = vmul.f32 %v1142, %v1144
      %v1146 = vadd.f32 %v1142, %v1145
      %vm1147 = vweird.f32 %v1004
      %vm1148 = vweird.f32 %v1142
      %vm1149 = vmor %vm1147, %vm1148
      %v1150 = vsel %vm1149, %v1142, %v1146
      %v1151 = vand.u32 2147483647, %v1004
      %vm1152 = vcmp.eq.f32.partialorder %v1151, 8.507059e+37
      %v1153 = vand.u32 %v1004, 2147483648
      %v1154 = vor.u32 1.1754944e-38, %v1153
      %v1155 = vsel %vm1152, %v1154, %v1150
      %v1156 = vmul.f32 1.0, %v1155
      %v1157 = vrcp.pop %v1005
      %v1158 = vmul.f32 %v1005, %v1157
      %v1159 = vsub.f32 1.0, %v1158
      %v1160 = vmul.f32 %v1157, %v1159
      %v1161 = vadd.f32 %v1157, %v1160
      %vm1162 = vweird.f32 %v1005
      %vm1163 = vweird.f32 %v1157
      %vm1164 = vmor %vm1162, %vm1163
      %v1165 = vsel %vm1164, %v1157, %v1161
      %v1166 = vand.u32 2147483647, %v1005
      %vm1167 = vcmp.eq.f32.partialorder %v1166, 8.507059e+37
      %v1168 = vand.u32 %v1005, 2147483648
      %v1169 = vor.u32 1.1754944e-38, %v1168
      %v1170 = vsel %vm1167, %v1169, %v1165
      %v1171 = vmul.f32 1.0, %v1170
      %v1172 = vrcp.pop %v1006
      %v1173 = vmul.f32 %v1006, %v1172
      %v1174 = vsub.f32 1.0, %v1173
      %v1175 = vmul.f32 %v1172, %v1174
      %v1176 = vadd.f32 %v1172, %v1175
      %vm1177 = vweird.f32 %v1006
      %vm1178 = vweird.f32 %v1172
      %vm1179 = vmor %vm1177, %vm1178
      %v1180 = vsel %vm1179, %v1172, %v1176
      %v1181 = vand.u32 2147483647, %v1006
      %vm1182 = vcmp.eq.f32.partialorder %v1181, 8.507059e+37
      %v1183 = vand.u32 %v1006, 2147483648
      %v1184 = vor.u32 1.1754944e-38, %v1183
      %v1185 = vsel %vm1182, %v1184, %v1180
      %v1186 = vmul.f32 1.0, %v1185
      %v1187 = vtanh.pop %v872
      %v1188 = vtanh.pop %v954
      %v1189 = vtanh.pop %v875
      %v1190 = vtanh.pop %v957
      %v1191 = vld [vmem:[%s273] sm:$0xff]
      %v1192 = vld [vmem:[%s273 + $0x8] sm:$0xff]
      %v1193 = vld [vmem:[%s273 + $0x10] sm:$0xff]
      %v1194 = vld [vmem:[%s273 + $0x18] sm:$0xff]
      %v1195 = vmul.f32 %v1081, %v1191
      %v1196 = vmul.f32 %v1096, %v1192
      %v1197 = vmul.f32 %v1111, %v1193
      %v1198 = vmul.f32 %v1126, %v1194
      %v1199 = vmul.f32 %v1021, %v1187
      %v1200 = vmul.f32 %v1036, %v1188
      %v1201 = vmul.f32 %v1051, %v1189
      %v1202 = vmul.f32 %v1066, %v1190
      %v1203 = vadd.f32 %v1195, %v1199
      %v1204 = vadd.f32 %v1196, %v1200
      %v1205 = vadd.f32 %v1197, %v1201
      %v1206 = vadd.f32 %v1198, %v1202
      %v1207 = vtanh.pop %v1203
      %v1208 = vtanh.pop %v1204
      %v1209 = vtanh.pop %v1205
      %v1210 = vtanh.pop %v1206
      %v1211 = vmul.f32 %v1141, %v1207
      %v1212 = vmul.f32 %v1156, %v1208
      %v1213 = vmul.f32 %v1171, %v1209
      %v1214 = vmul.f32 %v1186, %v1210
      %1215 = vst [vmem:[%s273] sm:$0xff] %v1203
      %1216 = vst [vmem:[%s273 + $0x8] sm:$0xff] %v1204
      %1217 = vst [vmem:[%s273 + $0x10] sm:$0xff] %v1205
      %1218 = vst [vmem:[%s273 + $0x18] sm:$0xff] %v1206
      %1219 = vst [vmem:[%s268] sm:$0xff] %v1211
      %1220 = vst [vmem:[%s268 + $0x8] sm:$0xff] %v1212
      %1221 = vst [vmem:[%s268 + $0x10] sm:$0xff] %v1213
      %1222 = vst [vmem:[%s268 + $0x18] sm:$0xff] %v1214
      %1223 = vst [vmem:[#allocation2] sm:$0xff] %v1211
      %1224 = vst [vmem:[#allocation2 + $0x8] sm:$0xff] %v1212
      %1225 = vst [vmem:[#allocation2 + $0x10] sm:$0xff] %v1213
      %1226 = vst [vmem:[#allocation2 + $0x18] sm:$0xff] %v1214
      %p1227 = scmp.lt.s32.totalorder %s21, 1
      %s1228 = scalar_select %p1227, %s21, 1
      %p1229 = scmp.lt.s32.totalorder %s22, 7
      %s1230 = scalar_select %p1229, %s22, 7
      %s1231 = smul.addr %s1230, 4
      %s1232 = smul.addr %s1228, 32
      %s1233 = sadd.s32 %s1231, %s1232
      %s1234 = smul.addr %s1233, 8
      %s1235 = scalar_lea.vmem %s4, %s1234
      %p1236 = scmp.lt.s32.totalorder %s21, 1
      %s1237 = scalar_select %p1236, %s21, 1
      %s1238 = smul.addr %s1237, 4
      %s1239 = smul.addr %s1238, 8
      %s1240 = scalar_lea.vmem %s5, %s1239
      // Predicated region
      $region41: #{convlstm_forward.3} parent=35 // pred_check
        %p1241 = pneg %p140
      $region42: #{convlstm_forward.3} parent=35 // pred_check_branch
        %1243 = sbr.rel (%p1241) target = $region44
      $region43: #{convlstm_forward.3} parent=35 // pred_region
        _
      $region44: #{convlstm_forward.3} parent=35 // pred_fallthru
        _
      // Predicated region
      $region45: #{convlstm_forward.3} parent=35 // pred_check
        %p1244 = pneg %p166
      $region46: #{convlstm_forward.3} parent=35 // pred_check_branch
        %1246 = sbr.rel (%p1244) target = $region48
      $region47: #{convlstm_forward.3} parent=35 // pred_region
        _
      $region48: #{convlstm_forward.3} parent=35 // pred_fallthru
        _
    $region36: #{convlstm_forward.3} parent=5 // pred_fallthru
      _
    %p1247 = scmp.le.s32.totalorder 2, %s12
    // Predicated region
    $region49: #{convlstm_forward.3} parent=5 // pred_check
      %p1248 = pneg %p1247
    $region50: #{convlstm_forward.3} parent=5 // pred_check_branch
      %1250 = sbr.rel (%p1248) target = $region52
    $region51: #{convlstm_forward.3} parent=5 // pred_region
      %s1251 = ssub.s32 %s12, 2
      // Predicated region
      $region53: #{convlstm_forward.3} parent=51 // pred_check
        %p1252 = pneg %p146
      $region54: #{convlstm_forward.3} parent=51 // pred_check_branch
        %1254 = sbr.rel (%p1252) target = $region56
      $region55: #{convlstm_forward.3} parent=51 // pred_region
        %p1255 = scmp.lt.s32.totalorder %s23, 1
        %s1256 = scalar_select %p1255, %s23, 1
        %p1257 = scmp.lt.s32.totalorder %s24, 7
        %s1258 = scalar_select %p1257, %s24, 7
        %s1259 = smul.addr %s1258, 4
        %s1260 = smul.addr %s1256, 32
        %s1261 = sadd.s32 %s1259, %s1260
        %s1262 = smul.addr %s1261, 8
        %s1263 = scalar_lea.vmem %s4, %s1262
      $region56: #{convlstm_forward.3} parent=51 // pred_fallthru
        _
      // Predicated region
      $region57: #{convlstm_forward.3} parent=51 // pred_check
        %p1264 = pneg %p172
      $region58: #{convlstm_forward.3} parent=51 // pred_check_branch
        %1266 = sbr.rel (%p1264) target = $region60
      $region59: #{convlstm_forward.3} parent=51 // pred_region
        %p1267 = scmp.lt.s32.totalorder %s23, 1
        %s1268 = scalar_select %p1267, %s23, 1
        %s1269 = smul.addr %s1268, 4
        %s1270 = smul.addr %s1269, 8
        %s1271 = scalar_lea.vmem %s5, %s1270
      $region60: #{convlstm_forward.3} parent=51 // pred_fallthru
        _
    $region52: #{convlstm_forward.3} parent=5 // pred_fallthru
      _
  $region6: #{convlstm_forward.3} parent=0 // loop_footer
    %s16 = sadd.s32 1, %s12
  $region7: #{convlstm_forward.3} parent=0 // loop_footer_branch
    %11 = sbr.rel target = $region3
  $region8: #{convlstm_forward.3} parent=0 // loop_exit
    _

</llo_original>
